<compile_context>
chip_gen: v7x
topology: tpu7x:2x2x1
jax: 0.10.0
libtpu: 0.0.40
codegen_flags: <defaults>
</compile_context>

<pallas_src>
import functools

import jax
import jax.numpy as jnp
from jax.experimental import pallas as pl
from jax.experimental.pallas import tpu as pltpu

POOL_KS = (5, 9, 13)                      # SPP spec (k=9/13 via chained 5x5)
HALO = 6                                  # 13 // 2 rows of context for the chain
NEG = float(jnp.finfo(jnp.float32).min)   # "-inf" pad for stride-1 max pooling


def _hardswish(x):
    return x * jnp.clip(x + 3.0, 0.0, 6.0) * (1.0 / 6.0)


def _spp_compute(xw, off, w1_ref, b1_ref, w2_ref, b2_ref, o_ref, pbuf,
                 *, W, tile_h, win, single_tile):
    """cv1 -> chained 5x5 max pools -> fused cv2 for one (win, W, C1) window.

    `xw` is the bf16 input row window, `off` the kept tile's offset inside it.
    `pbuf` is a (win+4, W, c_) f32 scratch whose first/last two rows stay NEG
    (row apron); rows [2, 2+win) are reused as pool-input staging and as the
    source of the cv2 row-tile slices (no extra store just for cv2).
    """
    c_ = w1_ref.shape[1]
    c2 = w2_ref.shape[1]

    # ---- cv1: 1x1 conv (bf16 MXU, f32 accum) + folded-BN bias + Hardswish ---
    y = jnp.dot(xw.reshape(win * W, xw.shape[-1]), w1_ref[...],
                preferred_element_type=jnp.float32)
    y = _hardswish(y + b1_ref[...])
    y3 = y.reshape(win, W, c_)                                # (win, W, c_) f32

    # Row apron: written once per grid step, never overwritten afterwards.
    apron = jnp.full((2, W, c_), NEG, jnp.float32)
    pbuf[pl.ds(0, 2)] = apron
    pbuf[pl.ds(2 + win, 2)] = apron

    # Column-shift masks from a tiny (1, W, c_) iota.  The |rolled - col| == d
    # test keeps the masks correct for either rotate direction convention.
    col = jax.lax.broadcasted_iota(jnp.int32, (1, W, c_), 1)
    shifts = []
    for d in (1, 2):
        for s in (d, W - d):
            shifts.append((s, jnp.abs(pltpu.roll(col, s, axis=1) - col) == d))

    def pool5(p):
        # Rows: pbuf[2:2+win) already holds p; the shifted windows are plain
        # leading-axis ref slices that read into the NEG apron at the edges.
        r = p
        for d in (1, 2):
            r = jnp.maximum(r, pbuf[pl.ds(2 - d, win)])
            r = jnp.maximum(r, pbuf[pl.ds(2 + d, win)])
        # Columns: XLU sublane rotate + boundary mask (no padded copies).
        out = r
        for s, ok in shifts:
            out = jnp.maximum(out, jnp.where(ok, pltpu.roll(r, s, axis=1), NEG))
        return out

    # ---- pool chain + fused cv2 ---------------------------------------------
    # Each stage's kept rows are sliced (bf16) and the four slices feed ONE
    # (tile_h*W, 4*c_) x (4*c_, c2) matmul (no per-stage f32 accumulate adds).
    parts = []
    p = y3
    for i in range(4):
        if single_tile:
            parts.append(p.astype(jnp.bfloat16))
            if i < 3:
                pbuf[pl.ds(2, win)] = p
                p = pool5(p)
        else:
            pbuf[pl.ds(2, win)] = p
            parts.append(pbuf[pl.ds(2 + off, tile_h)].astype(jnp.bfloat16))
            if i < 3:
                p = pool5(p)

    z = jnp.concatenate(parts, axis=-1)                       # (tile_h, W, 4c_)
    acc = jnp.dot(z.reshape(tile_h * W, 4 * c_), w2_ref[...],
                  preferred_element_type=jnp.float32)
    o = _hardswish(acc + b2_ref[...])                          # (tile_h*W, c2)
    o_ref[0] = o.reshape(tile_h, W, c2).astype(o_ref.dtype)


def _spp_kernel_resident(x_ref, w1_ref, b1_ref, w2_ref, b2_ref, o_ref, pbuf,
                         *, H, W, tile_h, win, single_tile):
    """x image resident in VMEM (auto-pipelined BlockSpec); slice the window."""
    h = pl.program_id(1)
    if single_tile:
        start, off = 0, 0
    else:
        start = jnp.clip(h * tile_h - HALO, 0, H - win)
        off = h * tile_h - start
    xw = x_ref[0, pl.ds(start, win)].astype(jnp.bfloat16)
    _spp_compute(xw, off, w1_ref, b1_ref, w2_ref, b2_ref, o_ref, pbuf,
                 W=W, tile_h=tile_h, win=win, single_tile=single_tile)


def _spp_kernel_windowed(x_hbm, w1_ref, b1_ref, w2_ref, b2_ref, o_ref,
                         xbuf, sem, pbuf,
                         *, H, W, tile_h, win, n_h, single_tile):
    """x stays in HBM; manually DMA the clamped row window, double-buffered."""
    n = pl.program_id(0)
    h = pl.program_id(1)

    def wstart(hh):
        return jnp.clip(hh * tile_h - HALO, 0, H - win)

    def fetch(hh, slot):
        pltpu.make_async_copy(x_hbm.at[n, pl.ds(wstart(hh), win)],
                              xbuf.at[slot], sem.at[slot]).start()

    slot = h % 2

    @pl.when(h == 0)                 # prime this batch's window pipeline
    def _():
        fetch(0, 0)

    @pl.when(h + 1 < n_h)            # prefetch the next window while computing
    def _():
        fetch(h + 1, 1 - slot)

    pltpu.make_async_copy(x_hbm.at[n, pl.ds(0, win)],
                          xbuf.at[slot], sem.at[slot]).wait()

    if single_tile:
        off = 0
    else:
        start = wstart(h)
        off = h * tile_h - start
    xw = xbuf[slot].astype(jnp.bfloat16)
    _spp_compute(xw, off, w1_ref, b1_ref, w2_ref, b2_ref, o_ref, pbuf,
                 W=W, tile_h=tile_h, win=win, single_tile=single_tile)


def _vmem_cap_bytes():
    get_info = getattr(pltpu, "get_tpu_info", None)
    if get_info is not None:
        try:
            cap = getattr(get_info(), "vmem_capacity_bytes", None)
            if cap:
                return int(cap)
        except Exception:
            pass
    return 64 * 1024 * 1024          # conservative default (v7x per-TensorCore)


def _footprint_bytes(H, W, C1, c_, c2, tile_h, x_bytes, windowed):
    """Rough per-core VMEM footprint for one grid step (generous estimate)."""
    f32, bf16 = 4, 2
    win = min(H, tile_h + 2 * HALO)
    x_resident = (2 * win if windowed else 2 * H) * W * C1 * x_bytes
    pbuf = (win + 4) * W * c_ * f32
    weights = 2 * ((C1 * c_ + 4 * c_ * c2) * bf16 + (c_ + c2) * f32)
    out_blk = 2 * tile_h * W * c2 * f32
    live = (win * W * C1 * bf16              # bf16 input window
            + 5 * win * W * c_ * f32         # cv1 result + pool temporaries
            + 4 * tile_h * W * c_ * bf16     # bf16 stage tiles
            + tile_h * W * 4 * c_ * bf16     # concatenated cv2 input
            + 2 * tile_h * W * c2 * f32)     # cv2 accum + activation temp
    return x_resident + pbuf + weights + out_blk + live


def _choose_config(H, W, C1, c_, c2, x_bytes, budget, tile_h, force_windowed):
    if tile_h is not None and 1 <= tile_h <= H and H % tile_h == 0:
        cands = [int(tile_h)]
    else:
        cands = sorted((d for d in range(1, H + 1) if H % d == 0), reverse=True)
    if not force_windowed:
        for t in cands:                # biggest tile that keeps x resident
            if _footprint_bytes(H, W, C1, c_, c2, t, x_bytes, False) <= budget:
                return t, False
    for t in cands:                    # otherwise window the x rows manually
        if _footprint_bytes(H, W, C1, c_, c2, t, x_bytes, True) <= budget:
            return t, True
    return cands[-1], True


@functools.partial(jax.jit,
                   static_argnames=("tile_h", "force_windowed", "out_dtype"))
def spp_forward_nhwc(x_nhwc, params, tile_h=None, force_windowed=False,
                     out_dtype=jnp.float32):
    """SPP forward on an NHWC input; `params` come from fold_params()."""
    w1, b1, w2, b2 = params
    N, H, W, C1 = x_nhwc.shape
    c_, c2 = w1.shape[1], w2.shape[1]
    assert w2.shape[0] == 4 * c_
    assert W > 4, "SPP pooling assumes W > 4"

    cap = _vmem_cap_bytes()
    x_bytes = x_nhwc.dtype.itemsize
    tile_h, windowed = _choose_config(H, W, C1, c_, c2, x_bytes,
                                      int(0.7 * cap), tile_h, force_windowed)
    n_h = H // tile_h
    win = min(H, tile_h + 2 * HALO)
    single_tile = n_h == 1

    need = _footprint_bytes(H, W, C1, c_, c2, tile_h, x_bytes, windowed)
    vmem_limit = int(min(0.9 * cap, max(1.4 * need, 24 * 1024 * 1024)))

    common = dict(H=H, W=W, tile_h=tile_h, win=win, single_tile=single_tile)
    w_specs = [
        pl.BlockSpec((C1, c_), lambda n, h: (0, 0)),
        pl.BlockSpec((1, c_), lambda n, h: (0, 0)),
        pl.BlockSpec((4 * c_, c2), lambda n, h: (0, 0)),
        pl.BlockSpec((1, c2), lambda n, h: (0, 0)),
    ]
    pbuf = pltpu.VMEM((win + 4, W, c_), jnp.float32)

    if windowed:
        kernel = functools.partial(_spp_kernel_windowed, n_h=n_h, **common)
        in_specs = [pl.BlockSpec(memory_space=pl.ANY)] + w_specs
        scratch = [pltpu.VMEM((2, win, W, C1), x_nhwc.dtype),
                   pltpu.SemaphoreType.DMA((2,)),
                   pbuf]
        dims = ("parallel", "arbitrary")   # rows sequential for the DMA chain
    else:
        kernel = functools.partial(_spp_kernel_resident, **common)
        in_specs = [pl.BlockSpec((1, H, W, C1),
                                 lambda n, h: (n, 0, 0, 0))] + w_specs
        scratch = [pbuf]
        dims = ("parallel", "parallel")

    return pl.pallas_call(
        kernel,
        out_shape=jax.ShapeDtypeStruct((N, H, W, c2), out_dtype),
        grid_spec=pltpu.PrefetchScalarGridSpec(
            num_scalar_prefetch=0,
            grid=(N, n_h),
            in_specs=in_specs,
            out_specs=pl.BlockSpec((1, tile_h, W, c2),
                                   lambda n, h: (n, h, 0, 0)),
            scratch_shapes=scratch),
        compiler_params=pltpu.CompilerParams(
            dimension_semantics=dims,
            vmem_limit_bytes=vmem_limit),
    )(x_nhwc, w1, b1, w2, b2)


def spp_forward(x_nchw, params, tile_h=None, force_windowed=False):
    # TODO(synk): keep the surrounding model NHWC so these two full-tensor
    # transposes (separate HBM round trips) disappear; the kernel is NHWC-native.
    x = jnp.transpose(x_nchw, (0, 2, 3, 1))
    out = spp_forward_nhwc(x, params, tile_h=tile_h,
                           force_windowed=force_windowed)
    return jnp.transpose(out, (0, 3, 1, 2))


def fold_params(raw):
    """Fold BN (eval) scale into the 1x1 conv weights; bf16 weights, f32 biases."""
    w1, s1, b1, w2, s2, b2 = raw
    return ((w1 * s1).astype(jnp.bfloat16), b1.astype(jnp.float32),
            (w2 * s2).astype(jnp.bfloat16), b2.astype(jnp.float32))


def make_params(key, c1, c2):
    """Deterministic synthetic parameters; BN (eval mode) as scale/bias."""
    c_ = c1 // 2
    ks = jax.random.split(key, 10)

    def fold_bn(kg, kb, km, kv, c):
        gamma = 1.0 + 0.1 * jax.random.normal(kg, (c,), jnp.float32)
        beta = 0.1 * jax.random.normal(kb, (c,), jnp.float32)
        mean = 0.1 * jax.random.normal(km, (c,), jnp.float32)
        var = jnp.abs(jax.random.normal(kv, (c,), jnp.float32)) + 0.5
        scale = gamma * jax.lax.rsqrt(var + 1e-5)
        bias = beta - mean * scale
        return scale.reshape(1, c), bias.reshape(1, c)

    w1 = 0.2 * jax.random.normal(ks[0], (c1, c_), jnp.float32)
    s1, b1 = fold_bn(ks[1], ks[2], ks[3], ks[4], c_)
    w2 = 0.2 * jax.random.normal(ks[5], (4 * c_, c2), jnp.float32)
    s2, b2 = fold_bn(ks[6], ks[7], ks[8], ks[9], c2)
    return (w1, s1, b1, w2, s2, b2)


def spp_reference(x_nchw, raw_params):
    """Pure-JAX f32 reference (same math as the PyTorch module)."""
    w1, s1, b1, w2, s2, b2 = raw_params
    x = jnp.transpose(x_nchw, (0, 2, 3, 1)).astype(jnp.float32)
    y = _hardswish(jnp.einsum("nhwc,cd->nhwd", x, w1) * s1[0] + b1[0])
    pools = [y]
    for k in POOL_KS:
        p = jax.lax.reduce_window(
            y, -jnp.inf, jax.lax.max,
            (1, k, k, 1), (1, 1, 1, 1),
            [(0, 0), (k // 2, k // 2), (k // 2, k // 2), (0, 0)],
        )
        pools.append(p)
    z = jnp.concatenate(pools, axis=-1)
    o = _hardswish(jnp.einsum("nhwc,cd->nhwd", z, w2) * s2[0] + b2[0])
    return jnp.transpose(o, (0, 3, 1, 2))


if __name__ == "__main__":
    key = jax.random.PRNGKey(0)
    kx, kp, kx2, kp2, kx3, kp3 = jax.random.split(key, 6)

    # Case 1: module-consistent small shape; tile_h=4 forces several row tiles
    # (exercises the halo window and the in-window tile slicing with off > 0).
    N, C1, H, W, C2 = 2, 4, 16, 16, 4
    x = jax.random.normal(kx, (N, C1, H, W), jnp.float32)
    raw = make_params(kp, C1, C2)
    out = jax.block_until_ready(spp_forward(x, fold_params(raw), tile_h=4))
    ref = spp_reference(x, raw)
    assert out.shape == (N, C2, H, W)
    assert jnp.allclose(out, ref, atol=5e-2, rtol=5e-2), \
        float(jnp.max(jnp.abs(out - ref)))

    # Case 2: taller image on the single-tile fast path (whole image per step).
    N2, C1b, Hb, Wb, C2b = 1, 8, 32, 16, 8
    x2 = jax.random.normal(kx2, (N2, C1b, Hb, Wb), jnp.float32)
    raw2 = make_params(kp2, C1b, C2b)
    out2 = jax.block_until_ready(spp_forward(x2, fold_params(raw2)))
    ref2 = spp_reference(x2, raw2)
    assert jnp.allclose(out2, ref2, atol=5e-2, rtol=5e-2), \
        float(jnp.max(jnp.abs(out2 - ref2)))

    # Case 3: forced manual windowed-DMA path (large-image / v7x configuration)
    # exercised at a small shape: window clamping at both edges + DMA chain.
    N3, C1c, Hc, Wc, C2c = 2, 8, 24, 16, 8
    x3 = jax.random.normal(kx3, (N3, C1c, Hc, Wc), jnp.float32)
    raw3 = make_params(kp3, C1c, C2c)
    out3 = jax.block_until_ready(
        spp_forward(x3, fold_params(raw3), tile_h=8, force_windowed=True))
    ref3 = spp_reference(x3, raw3)
    assert jnp.allclose(out3, ref3, atol=5e-2, rtol=5e-2), \
        float(jnp.max(jnp.abs(out3 - ref3)))

    print("KERNEL_OK")
</pallas_src>

<mosaic_0001>
module attributes {stable_mosaic.version = 11 : i64} {
  func.func @_spp_kernel_resident(%arg0: i32, %arg1: i32, %arg2: memref<1x16x16x4xf32, #tpu.memory_space<vmem>>, %arg3: memref<4x2xbf16, #tpu.memory_space<vmem>>, %arg4: memref<1x2xf32, #tpu.memory_space<vmem>>, %arg5: memref<8x4xbf16, #tpu.memory_space<vmem>>, %arg6: memref<1x4xf32, #tpu.memory_space<vmem>>, %arg7: memref<1x4x16x4xf32, #tpu.memory_space<vmem>>, %arg8: memref<20x16x2xf32, #tpu.memory_space<vmem>>) attributes {dimension_semantics = [#tpu.dimension_semantics<parallel>, #tpu.dimension_semantics<parallel>], iteration_bounds = array<i64: 2, 4>, scalar_prefetch = 0 : i64, scratch_operands = 1 : i64, tpu.core_type = #tpu.core_type<tc>, window_params = [{transform_indices = @transform_0, window_bounds = array<i64: 1, 16, 16, 4>}, {pipeline_mode = #tpu.pipeline_mode<synchronous>, transform_indices = @transform_1, window_bounds = array<i64: 4, 2>}, {pipeline_mode = #tpu.pipeline_mode<synchronous>, transform_indices = @transform_2, window_bounds = array<i64: 1, 2>}, {pipeline_mode = #tpu.pipeline_mode<synchronous>, transform_indices = @transform_3, window_bounds = array<i64: 8, 4>}, {pipeline_mode = #tpu.pipeline_mode<synchronous>, transform_indices = @transform_4, window_bounds = array<i64: 1, 4>}, {transform_indices = @transform_5, window_bounds = array<i64: 1, 4, 16, 4>}]} {
    %c4_i32 = arith.constant 4 : i32
    %0 = arith.muli %arg1, %c4_i32 : i32
    %c6_i32 = arith.constant 6 : i32
    %1 = arith.subi %0, %c6_i32 : i32
    %c0_i32 = arith.constant 0 : i32
    %c0_i32_0 = arith.constant 0 : i32
    %2 = arith.maxsi %c0_i32, %1 : i32
    %3 = arith.minsi %c0_i32_0, %2 : i32
    %c4_i32_1 = arith.constant 4 : i32
    %4 = arith.muli %arg1, %c4_i32_1 : i32
    %5 = arith.subi %4, %3 : i32
    %c0 = arith.constant 0 : index
    %6 = arith.index_cast %3 : i32 to index
    %c0_2 = arith.constant 0 : index
    %c0_3 = arith.constant 0 : index
    %7 = vector.load %arg2[%c0, %6, %c0_2, %c0_3] : memref<1x16x16x4xf32, #tpu.memory_space<vmem>>, vector<1x16x16x4xf32>
    %8 = vector.shape_cast %7 : vector<1x16x16x4xf32> to vector<16x16x4xf32>
    %9 = arith.truncf %8 : vector<16x16x4xf32> to vector<16x16x4xbf16>
    %10 = vector.shape_cast %9 : vector<16x16x4xbf16> to vector<256x4xbf16>
    %c0_4 = arith.constant 0 : index
    %c0_5 = arith.constant 0 : index
    %11 = vector.load %arg3[%c0_4, %c0_5] : memref<4x2xbf16, #tpu.memory_space<vmem>>, vector<4x2xbf16>
    %cst = arith.constant dense<0.000000e+00> : vector<256x2xf32>
    %12 = tpu.matmul %10, %11, %cst {dimension_numbers = #tpu.dot_dimension_numbers<[1], [0], [0], [1], [0, 0, 1, 1], [], []>} : vector<256x4xbf16>, vector<4x2xbf16>, vector<256x2xf32> -> vector<256x2xf32>
    %c0_6 = arith.constant 0 : index
    %c0_7 = arith.constant 0 : index
    %13 = vector.load %arg4[%c0_6, %c0_7] : memref<1x2xf32, #tpu.memory_space<vmem>>, vector<1x2xf32>
    %14 = vector.broadcast %13 : vector<1x2xf32> to vector<256x2xf32>
    %15 = arith.addf %12, %14 : vector<256x2xf32>
    %cst_8 = arith.constant 3.000000e+00 : f32
    %16 = vector.broadcast %cst_8 : f32 to vector<256x2xf32>
    %17 = arith.addf %15, %16 : vector<256x2xf32>
    %cst_9 = arith.constant 0.000000e+00 : f32
    %cst_10 = arith.constant 6.000000e+00 : f32
    %18 = vector.broadcast %cst_9 : f32 to vector<256x2xf32>
    %19 = arith.maximumf %18, %17 : vector<256x2xf32>
    %20 = vector.broadcast %cst_10 : f32 to vector<256x2xf32>
    %21 = arith.minimumf %20, %19 : vector<256x2xf32>
    %22 = arith.mulf %15, %21 : vector<256x2xf32>
    %cst_11 = arith.constant 0.166666672 : f32
    %23 = vector.broadcast %cst_11 : f32 to vector<256x2xf32>
    %24 = arith.mulf %22, %23 : vector<256x2xf32>
    %25 = vector.shape_cast %24 : vector<256x2xf32> to vector<16x16x2xf32>
    %cst_12 = arith.constant -3.40282347E+38 : f32
    %26 = vector.broadcast %cst_12 : f32 to vector<2x16x2xf32>
    %c0_13 = arith.constant 0 : index
    %c0_14 = arith.constant 0 : index
    %c0_15 = arith.constant 0 : index
    %27 = vector.load %arg8[%c0_13, %c0_14, %c0_15] : memref<20x16x2xf32, #tpu.memory_space<vmem>>, vector<2x16x2xf32>
    tpu.vector_store %arg8[%c0_13, %c0_14, %c0_15], %26 {strides = array<i32>} : memref<20x16x2xf32, #tpu.memory_space<vmem>>, vector<2x16x2xf32>,
    %c18 = arith.constant 18 : index
    %c0_16 = arith.constant 0 : index
    %c0_17 = arith.constant 0 : index
    %28 = vector.load %arg8[%c18, %c0_16, %c0_17] : memref<20x16x2xf32, #tpu.memory_space<vmem>>, vector<2x16x2xf32>
    tpu.vector_store %arg8[%c18, %c0_16, %c0_17], %26 {strides = array<i32>} : memref<20x16x2xf32, #tpu.memory_space<vmem>>, vector<2x16x2xf32>,
    %29 = tpu.iota {dimensions = array<i32: 1>} : vector<1x16x2xi32>
    %c1_i32 = arith.constant 1 : i32
    %30 = tpu.dynamic_rotate %29 by %c1_i32 dim 1 : vector<1x16x2xi32>, i32 -> vector<1x16x2xi32>
    %31 = arith.subi %30, %29 : vector<1x16x2xi32>
    %32 = math.absi %31 : vector<1x16x2xi32>
    %c1_i32_18 = arith.constant 1 : i32
    %33 = vector.broadcast %c1_i32_18 : i32 to vector<1x16x2xi32>
    %34 = arith.cmpi eq, %32, %33 : vector<1x16x2xi32>
    %c15_i32 = arith.constant 15 : i32
    %35 = tpu.dynamic_rotate %29 by %c15_i32 dim 1 : vector<1x16x2xi32>, i32 -> vector<1x16x2xi32>
    %36 = arith.subi %35, %29 : vector<1x16x2xi32>
    %37 = math.absi %36 : vector<1x16x2xi32>
    %c1_i32_19 = arith.constant 1 : i32
    %38 = vector.broadcast %c1_i32_19 : i32 to vector<1x16x2xi32>
    %39 = arith.cmpi eq, %37, %38 : vector<1x16x2xi32>
    %c2_i32 = arith.constant 2 : i32
    %40 = tpu.dynamic_rotate %29 by %c2_i32 dim 1 : vector<1x16x2xi32>, i32 -> vector<1x16x2xi32>
    %41 = arith.subi %40, %29 : vector<1x16x2xi32>
    %42 = math.absi %41 : vector<1x16x2xi32>
    %c2_i32_20 = arith.constant 2 : i32
    %43 = vector.broadcast %c2_i32_20 : i32 to vector<1x16x2xi32>
    %44 = arith.cmpi eq, %42, %43 : vector<1x16x2xi32>
    %c14_i32 = arith.constant 14 : i32
    %45 = tpu.dynamic_rotate %29 by %c14_i32 dim 1 : vector<1x16x2xi32>, i32 -> vector<1x16x2xi32>
    %46 = arith.subi %45, %29 : vector<1x16x2xi32>
    %47 = math.absi %46 : vector<1x16x2xi32>
    %c2_i32_21 = arith.constant 2 : i32
    %48 = vector.broadcast %c2_i32_21 : i32 to vector<1x16x2xi32>
    %49 = arith.cmpi eq, %47, %48 : vector<1x16x2xi32>
    %c2 = arith.constant 2 : index
    %c0_22 = arith.constant 0 : index
    %c0_23 = arith.constant 0 : index
    %50 = vector.load %arg8[%c2, %c0_22, %c0_23] : memref<20x16x2xf32, #tpu.memory_space<vmem>>, vector<16x16x2xf32>
    tpu.vector_store %arg8[%c2, %c0_22, %c0_23], %25 {strides = array<i32>} : memref<20x16x2xf32, #tpu.memory_space<vmem>>, vector<16x16x2xf32>,
    %c2_i32_24 = arith.constant 2 : i32
    %51 = arith.addi %c2_i32_24, %5 : i32
    %52 = arith.index_cast %51 : i32 to index
    %c0_25 = arith.constant 0 : index
    %c0_26 = arith.constant 0 : index
    %53 = vector.load %arg8[%52, %c0_25, %c0_26] : memref<20x16x2xf32, #tpu.memory_space<vmem>>, vector<4x16x2xf32>
    %54 = arith.truncf %53 : vector<4x16x2xf32> to vector<4x16x2xbf16>
    %c1 = arith.constant 1 : index
    %c0_27 = arith.constant 0 : index
    %c0_28 = arith.constant 0 : index
    %55 = vector.load %arg8[%c1, %c0_27, %c0_28] : memref<20x16x2xf32, #tpu.memory_space<vmem>>, vector<16x16x2xf32>
    %56 = arith.maximumf %25, %55 : vector<16x16x2xf32>
    %c3 = arith.constant 3 : index
    %c0_29 = arith.constant 0 : index
    %c0_30 = arith.constant 0 : index
    %57 = vector.load %arg8[%c3, %c0_29, %c0_30] : memref<20x16x2xf32, #tpu.memory_space<vmem>>, vector<16x16x2xf32>
    %58 = arith.maximumf %56, %57 : vector<16x16x2xf32>
    %c0_31 = arith.constant 0 : index
    %c0_32 = arith.constant 0 : index
    %c0_33 = arith.constant 0 : index
    %59 = vector.load %arg8[%c0_31, %c0_32, %c0_33] : memref<20x16x2xf32, #tpu.memory_space<vmem>>, vector<16x16x2xf32>
    %60 = arith.maximumf %58, %59 : vector<16x16x2xf32>
    %c4 = arith.constant 4 : index
    %c0_34 = arith.constant 0 : index
    %c0_35 = arith.constant 0 : index
    %61 = vector.load %arg8[%c4, %c0_34, %c0_35] : memref<20x16x2xf32, #tpu.memory_space<vmem>>, vector<16x16x2xf32>
    %62 = arith.maximumf %60, %61 : vector<16x16x2xf32>
    %c1_i32_36 = arith.constant 1 : i32
    %63 = tpu.dynamic_rotate %62 by %c1_i32_36 dim 1 : vector<16x16x2xf32>, i32 -> vector<16x16x2xf32>
    %cst_37 = arith.constant -3.40282347E+38 : f32
    %64 = vector.shape_cast %34 : vector<1x16x2xi1> to vector<1x16x2xi1>
    %65 = vector.broadcast %64 : vector<1x16x2xi1> to vector<16x16x2xi1>
    %66 = vector.broadcast %cst_37 : f32 to vector<16x16x2xf32>
    %67 = arith.select %65, %63, %66 : vector<16x16x2xi1>, vector<16x16x2xf32>
    %68 = arith.maximumf %62, %67 : vector<16x16x2xf32>
    %c15_i32_38 = arith.constant 15 : i32
    %69 = tpu.dynamic_rotate %62 by %c15_i32_38 dim 1 : vector<16x16x2xf32>, i32 -> vector<16x16x2xf32>
    %cst_39 = arith.constant -3.40282347E+38 : f32
    %70 = vector.shape_cast %39 : vector<1x16x2xi1> to vector<1x16x2xi1>
    %71 = vector.broadcast %70 : vector<1x16x2xi1> to vector<16x16x2xi1>
    %72 = vector.broadcast %cst_39 : f32 to vector<16x16x2xf32>
    %73 = arith.select %71, %69, %72 : vector<16x16x2xi1>, vector<16x16x2xf32>
    %74 = arith.maximumf %68, %73 : vector<16x16x2xf32>
    %c2_i32_40 = arith.constant 2 : i32
    %75 = tpu.dynamic_rotate %62 by %c2_i32_40 dim 1 : vector<16x16x2xf32>, i32 -> vector<16x16x2xf32>
    %cst_41 = arith.constant -3.40282347E+38 : f32
    %76 = vector.shape_cast %44 : vector<1x16x2xi1> to vector<1x16x2xi1>
    %77 = vector.broadcast %76 : vector<1x16x2xi1> to vector<16x16x2xi1>
    %78 = vector.broadcast %cst_41 : f32 to vector<16x16x2xf32>
    %79 = arith.select %77, %75, %78 : vector<16x16x2xi1>, vector<16x16x2xf32>
    %80 = arith.maximumf %74, %79 : vector<16x16x2xf32>
    %c14_i32_42 = arith.constant 14 : i32
    %81 = tpu.dynamic_rotate %62 by %c14_i32_42 dim 1 : vector<16x16x2xf32>, i32 -> vector<16x16x2xf32>
    %cst_43 = arith.constant -3.40282347E+38 : f32
    %82 = vector.shape_cast %49 : vector<1x16x2xi1> to vector<1x16x2xi1>
    %83 = vector.broadcast %82 : vector<1x16x2xi1> to vector<16x16x2xi1>
    %84 = vector.broadcast %cst_43 : f32 to vector<16x16x2xf32>
    %85 = arith.select %83, %81, %84 : vector<16x16x2xi1>, vector<16x16x2xf32>
    %86 = arith.maximumf %80, %85 : vector<16x16x2xf32>
    %c2_44 = arith.constant 2 : index
    %c0_45 = arith.constant 0 : index
    %c0_46 = arith.constant 0 : index
    %87 = vector.load %arg8[%c2_44, %c0_45, %c0_46] : memref<20x16x2xf32, #tpu.memory_space<vmem>>, vector<16x16x2xf32>
    tpu.vector_store %arg8[%c2_44, %c0_45, %c0_46], %86 {strides = array<i32>} : memref<20x16x2xf32, #tpu.memory_space<vmem>>, vector<16x16x2xf32>,
    %c2_i32_47 = arith.constant 2 : i32
    %88 = arith.addi %c2_i32_47, %5 : i32
    %89 = arith.index_cast %88 : i32 to index
    %c0_48 = arith.constant 0 : index
    %c0_49 = arith.constant 0 : index
    %90 = vector.load %arg8[%89, %c0_48, %c0_49] : memref<20x16x2xf32, #tpu.memory_space<vmem>>, vector<4x16x2xf32>
    %91 = arith.truncf %90 : vector<4x16x2xf32> to vector<4x16x2xbf16>
    %c1_50 = arith.constant 1 : index
    %c0_51 = arith.constant 0 : index
    %c0_52 = arith.constant 0 : index
    %92 = vector.load %arg8[%c1_50, %c0_51, %c0_52] : memref<20x16x2xf32, #tpu.memory_space<vmem>>, vector<16x16x2xf32>
    %93 = arith.maximumf %86, %92 : vector<16x16x2xf32>
    %c3_53 = arith.constant 3 : index
    %c0_54 = arith.constant 0 : index
    %c0_55 = arith.constant 0 : index
    %94 = vector.load %arg8[%c3_53, %c0_54, %c0_55] : memref<20x16x2xf32, #tpu.memory_space<vmem>>, vector<16x16x2xf32>
    %95 = arith.maximumf %93, %94 : vector<16x16x2xf32>
    %c0_56 = arith.constant 0 : index
    %c0_57 = arith.constant 0 : index
    %c0_58 = arith.constant 0 : index
    %96 = vector.load %arg8[%c0_56, %c0_57, %c0_58] : memref<20x16x2xf32, #tpu.memory_space<vmem>>, vector<16x16x2xf32>
    %97 = arith.maximumf %95, %96 : vector<16x16x2xf32>
    %c4_59 = arith.constant 4 : index
    %c0_60 = arith.constant 0 : index
    %c0_61 = arith.constant 0 : index
    %98 = vector.load %arg8[%c4_59, %c0_60, %c0_61] : memref<20x16x2xf32, #tpu.memory_space<vmem>>, vector<16x16x2xf32>
    %99 = arith.maximumf %97, %98 : vector<16x16x2xf32>
    %c1_i32_62 = arith.constant 1 : i32
    %100 = tpu.dynamic_rotate %99 by %c1_i32_62 dim 1 : vector<16x16x2xf32>, i32 -> vector<16x16x2xf32>
    %cst_63 = arith.constant -3.40282347E+38 : f32
    %101 = vector.shape_cast %34 : vector<1x16x2xi1> to vector<1x16x2xi1>
    %102 = vector.broadcast %101 : vector<1x16x2xi1> to vector<16x16x2xi1>
    %103 = vector.broadcast %cst_63 : f32 to vector<16x16x2xf32>
    %104 = arith.select %102, %100, %103 : vector<16x16x2xi1>, vector<16x16x2xf32>
    %105 = arith.maximumf %99, %104 : vector<16x16x2xf32>
    %c15_i32_64 = arith.constant 15 : i32
    %106 = tpu.dynamic_rotate %99 by %c15_i32_64 dim 1 : vector<16x16x2xf32>, i32 -> vector<16x16x2xf32>
    %cst_65 = arith.constant -3.40282347E+38 : f32
    %107 = vector.shape_cast %39 : vector<1x16x2xi1> to vector<1x16x2xi1>
    %108 = vector.broadcast %107 : vector<1x16x2xi1> to vector<16x16x2xi1>
    %109 = vector.broadcast %cst_65 : f32 to vector<16x16x2xf32>
    %110 = arith.select %108, %106, %109 : vector<16x16x2xi1>, vector<16x16x2xf32>
    %111 = arith.maximumf %105, %110 : vector<16x16x2xf32>
    %c2_i32_66 = arith.constant 2 : i32
    %112 = tpu.dynamic_rotate %99 by %c2_i32_66 dim 1 : vector<16x16x2xf32>, i32 -> vector<16x16x2xf32>
    %cst_67 = arith.constant -3.40282347E+38 : f32
    %113 = vector.shape_cast %44 : vector<1x16x2xi1> to vector<1x16x2xi1>
    %114 = vector.broadcast %113 : vector<1x16x2xi1> to vector<16x16x2xi1>
    %115 = vector.broadcast %cst_67 : f32 to vector<16x16x2xf32>
    %116 = arith.select %114, %112, %115 : vector<16x16x2xi1>, vector<16x16x2xf32>
    %117 = arith.maximumf %111, %116 : vector<16x16x2xf32>
    %c14_i32_68 = arith.constant 14 : i32
    %118 = tpu.dynamic_rotate %99 by %c14_i32_68 dim 1 : vector<16x16x2xf32>, i32 -> vector<16x16x2xf32>
    %cst_69 = arith.constant -3.40282347E+38 : f32
    %119 = vector.shape_cast %49 : vector<1x16x2xi1> to vector<1x16x2xi1>
    %120 = vector.broadcast %119 : vector<1x16x2xi1> to vector<16x16x2xi1>
    %121 = vector.broadcast %cst_69 : f32 to vector<16x16x2xf32>
    %122 = arith.select %120, %118, %121 : vector<16x16x2xi1>, vector<16x16x2xf32>
    %123 = arith.maximumf %117, %122 : vector<16x16x2xf32>
    %c2_70 = arith.constant 2 : index
    %c0_71 = arith.constant 0 : index
    %c0_72 = arith.constant 0 : index
    %124 = vector.load %arg8[%c2_70, %c0_71, %c0_72] : memref<20x16x2xf32, #tpu.memory_space<vmem>>, vector<16x16x2xf32>
    tpu.vector_store %arg8[%c2_70, %c0_71, %c0_72], %123 {strides = array<i32>} : memref<20x16x2xf32, #tpu.memory_space<vmem>>, vector<16x16x2xf32>,
    %c2_i32_73 = arith.constant 2 : i32
    %125 = arith.addi %c2_i32_73, %5 : i32
    %126 = arith.index_cast %125 : i32 to index
    %c0_74 = arith.constant 0 : index
    %c0_75 = arith.constant 0 : index
    %127 = vector.load %arg8[%126, %c0_74, %c0_75] : memref<20x16x2xf32, #tpu.memory_space<vmem>>, vector<4x16x2xf32>
    %128 = arith.truncf %127 : vector<4x16x2xf32> to vector<4x16x2xbf16>
    %c1_76 = arith.constant 1 : index
    %c0_77 = arith.constant 0 : index
    %c0_78 = arith.constant 0 : index
    %129 = vector.load %arg8[%c1_76, %c0_77, %c0_78] : memref<20x16x2xf32, #tpu.memory_space<vmem>>, vector<16x16x2xf32>
    %130 = arith.maximumf %123, %129 : vector<16x16x2xf32>
    %c3_79 = arith.constant 3 : index
    %c0_80 = arith.constant 0 : index
    %c0_81 = arith.constant 0 : index
    %131 = vector.load %arg8[%c3_79, %c0_80, %c0_81] : memref<20x16x2xf32, #tpu.memory_space<vmem>>, vector<16x16x2xf32>
    %132 = arith.maximumf %130, %131 : vector<16x16x2xf32>
    %c0_82 = arith.constant 0 : index
    %c0_83 = arith.constant 0 : index
    %c0_84 = arith.constant 0 : index
    %133 = vector.load %arg8[%c0_82, %c0_83, %c0_84] : memref<20x16x2xf32, #tpu.memory_space<vmem>>, vector<16x16x2xf32>
    %134 = arith.maximumf %132, %133 : vector<16x16x2xf32>
    %c4_85 = arith.constant 4 : index
    %c0_86 = arith.constant 0 : index
    %c0_87 = arith.constant 0 : index
    %135 = vector.load %arg8[%c4_85, %c0_86, %c0_87] : memref<20x16x2xf32, #tpu.memory_space<vmem>>, vector<16x16x2xf32>
    %136 = arith.maximumf %134, %135 : vector<16x16x2xf32>
    %c1_i32_88 = arith.constant 1 : i32
    %137 = tpu.dynamic_rotate %136 by %c1_i32_88 dim 1 : vector<16x16x2xf32>, i32 -> vector<16x16x2xf32>
    %cst_89 = arith.constant -3.40282347E+38 : f32
    %138 = vector.shape_cast %34 : vector<1x16x2xi1> to vector<1x16x2xi1>
    %139 = vector.broadcast %138 : vector<1x16x2xi1> to vector<16x16x2xi1>
    %140 = vector.broadcast %cst_89 : f32 to vector<16x16x2xf32>
    %141 = arith.select %139, %137, %140 : vector<16x16x2xi1>, vector<16x16x2xf32>
    %142 = arith.maximumf %136, %141 : vector<16x16x2xf32>
    %c15_i32_90 = arith.constant 15 : i32
    %143 = tpu.dynamic_rotate %136 by %c15_i32_90 dim 1 : vector<16x16x2xf32>, i32 -> vector<16x16x2xf32>
    %cst_91 = arith.constant -3.40282347E+38 : f32
    %144 = vector.shape_cast %39 : vector<1x16x2xi1> to vector<1x16x2xi1>
    %145 = vector.broadcast %144 : vector<1x16x2xi1> to vector<16x16x2xi1>
    %146 = vector.broadcast %cst_91 : f32 to vector<16x16x2xf32>
    %147 = arith.select %145, %143, %146 : vector<16x16x2xi1>, vector<16x16x2xf32>
    %148 = arith.maximumf %142, %147 : vector<16x16x2xf32>
    %c2_i32_92 = arith.constant 2 : i32
    %149 = tpu.dynamic_rotate %136 by %c2_i32_92 dim 1 : vector<16x16x2xf32>, i32 -> vector<16x16x2xf32>
    %cst_93 = arith.constant -3.40282347E+38 : f32
    %150 = vector.shape_cast %44 : vector<1x16x2xi1> to vector<1x16x2xi1>
    %151 = vector.broadcast %150 : vector<1x16x2xi1> to vector<16x16x2xi1>
    %152 = vector.broadcast %cst_93 : f32 to vector<16x16x2xf32>
    %153 = arith.select %151, %149, %152 : vector<16x16x2xi1>, vector<16x16x2xf32>
    %154 = arith.maximumf %148, %153 : vector<16x16x2xf32>
    %c14_i32_94 = arith.constant 14 : i32
    %155 = tpu.dynamic_rotate %136 by %c14_i32_94 dim 1 : vector<16x16x2xf32>, i32 -> vector<16x16x2xf32>
    %cst_95 = arith.constant -3.40282347E+38 : f32
    %156 = vector.shape_cast %49 : vector<1x16x2xi1> to vector<1x16x2xi1>
    %157 = vector.broadcast %156 : vector<1x16x2xi1> to vector<16x16x2xi1>
    %158 = vector.broadcast %cst_95 : f32 to vector<16x16x2xf32>
    %159 = arith.select %157, %155, %158 : vector<16x16x2xi1>, vector<16x16x2xf32>
    %160 = arith.maximumf %154, %159 : vector<16x16x2xf32>
    %c2_96 = arith.constant 2 : index
    %c0_97 = arith.constant 0 : index
    %c0_98 = arith.constant 0 : index
    %161 = vector.load %arg8[%c2_96, %c0_97, %c0_98] : memref<20x16x2xf32, #tpu.memory_space<vmem>>, vector<16x16x2xf32>
    tpu.vector_store %arg8[%c2_96, %c0_97, %c0_98], %160 {strides = array<i32>} : memref<20x16x2xf32, #tpu.memory_space<vmem>>, vector<16x16x2xf32>,
    %c2_i32_99 = arith.constant 2 : i32
    %162 = arith.addi %c2_i32_99, %5 : i32
    %163 = arith.index_cast %162 : i32 to index
    %c0_100 = arith.constant 0 : index
    %c0_101 = arith.constant 0 : index
    %164 = vector.load %arg8[%163, %c0_100, %c0_101] : memref<20x16x2xf32, #tpu.memory_space<vmem>>, vector<4x16x2xf32>
    %165 = arith.truncf %164 : vector<4x16x2xf32> to vector<4x16x2xbf16>
    %166 = tpu.concatenate %54, %91, %128, %165 in 2 : vector<4x16x2xbf16>, vector<4x16x2xbf16>, vector<4x16x2xbf16>, vector<4x16x2xbf16> -> vector<4x16x8xbf16>
    %167 = vector.shape_cast %166 : vector<4x16x8xbf16> to vector<64x8xbf16>
    %c0_102 = arith.constant 0 : index
    %c0_103 = arith.constant 0 : index
    %168 = vector.load %arg5[%c0_102, %c0_103] : memref<8x4xbf16, #tpu.memory_space<vmem>>, vector<8x4xbf16>
    %cst_104 = arith.constant dense<0.000000e+00> : vector<64x4xf32>
    %169 = tpu.matmul %167, %168, %cst_104 {dimension_numbers = #tpu.dot_dimension_numbers<[1], [0], [0], [1], [0, 0, 1, 1], [], []>} : vector<64x8xbf16>, vector<8x4xbf16>, vector<64x4xf32> -> vector<64x4xf32>
    %c0_105 = arith.constant 0 : index
    %c0_106 = arith.constant 0 : index
    %170 = vector.load %arg6[%c0_105, %c0_106] : memref<1x4xf32, #tpu.memory_space<vmem>>, vector<1x4xf32>
    %171 = vector.broadcast %170 : vector<1x4xf32> to vector<64x4xf32>
    %172 = arith.addf %169, %171 : vector<64x4xf32>
    %cst_107 = arith.constant 3.000000e+00 : f32
    %173 = vector.broadcast %cst_107 : f32 to vector<64x4xf32>
    %174 = arith.addf %172, %173 : vector<64x4xf32>
    %cst_108 = arith.constant 0.000000e+00 : f32
    %cst_109 = arith.constant 6.000000e+00 : f32
    %175 = vector.broadcast %cst_108 : f32 to vector<64x4xf32>
    %176 = arith.maximumf %175, %174 : vector<64x4xf32>
    %177 = vector.broadcast %cst_109 : f32 to vector<64x4xf32>
    %178 = arith.minimumf %177, %176 : vector<64x4xf32>
    %179 = arith.mulf %172, %178 : vector<64x4xf32>
    %cst_110 = arith.constant 0.166666672 : f32
    %180 = vector.broadcast %cst_110 : f32 to vector<64x4xf32>
    %181 = arith.mulf %179, %180 : vector<64x4xf32>
    %182 = vector.shape_cast %181 : vector<64x4xf32> to vector<4x16x4xf32>
    %c0_111 = arith.constant 0 : index
    %c0_112 = arith.constant 0 : index
    %c0_113 = arith.constant 0 : index
    %c0_114 = arith.constant 0 : index
    %183 = vector.load %arg7[%c0_111, %c0_112, %c0_113, %c0_114] : memref<1x4x16x4xf32, #tpu.memory_space<vmem>>, vector<1x4x16x4xf32>
    %184 = vector.shape_cast %183 : vector<1x4x16x4xf32> to vector<4x16x4xf32>
    %185 = vector.shape_cast %182 : vector<4x16x4xf32> to vector<1x4x16x4xf32>
    tpu.vector_store %arg7[%c0_111, %c0_112, %c0_113, %c0_114], %185 {strides = array<i32>} : memref<1x4x16x4xf32, #tpu.memory_space<vmem>>, vector<1x4x16x4xf32>,
    return
  }
  func.func @transform_0(%arg0: i32, %arg1: i32) -> (i32, i32, i32, i32) {
    %c0_i32 = arith.constant 0 : i32
    %c0_i32_0 = arith.constant 0 : i32
    %c0_i32_1 = arith.constant 0 : i32
    %c0_i32_2 = arith.constant 0 : i32
    return %arg0, %c0_i32, %c0_i32_0, %c0_i32_1 : i32, i32, i32, i32
  }
  func.func @transform_1(%arg0: i32, %arg1: i32) -> (i32, i32) {
    %c0_i32 = arith.constant 0 : i32
    %c0_i32_0 = arith.constant 0 : i32
    %c0_i32_1 = arith.constant 0 : i32
    return %c0_i32, %c0_i32_0 : i32, i32
  }
  func.func @transform_2(%arg0: i32, %arg1: i32) -> (i32, i32) {
    %c0_i32 = arith.constant 0 : i32
    %c0_i32_0 = arith.constant 0 : i32
    %c0_i32_1 = arith.constant 0 : i32
    return %c0_i32, %c0_i32_0 : i32, i32
  }
  func.func @transform_3(%arg0: i32, %arg1: i32) -> (i32, i32) {
    %c0_i32 = arith.constant 0 : i32
    %c0_i32_0 = arith.constant 0 : i32
    %c0_i32_1 = arith.constant 0 : i32
    return %c0_i32, %c0_i32_0 : i32, i32
  }
  func.func @transform_4(%arg0: i32, %arg1: i32) -> (i32, i32) {
    %c0_i32 = arith.constant 0 : i32
    %c0_i32_0 = arith.constant 0 : i32
    %c0_i32_1 = arith.constant 0 : i32
    return %c0_i32, %c0_i32_0 : i32, i32
  }
  func.func @transform_5(%arg0: i32, %arg1: i32) -> (i32, i32, i32, i32) {
    %c0_i32 = arith.constant 0 : i32
    %c0_i32_0 = arith.constant 0 : i32
    %c0_i32_1 = arith.constant 0 : i32
    return %arg0, %arg1, %c0_i32, %c0_i32_0 : i32, i32, i32, i32
  }
}

</mosaic_0001>

<llo_original>
// kernel: spp_forward_nhwc.1
$region0: #{spp_forward_nhwc.1}
  #allocation0 [shape = 'u32[]', space=smem, size = 0x4, offset = 0x4, fixed_abs, tag = 'smem constant byte address 0x4 - core index']
  #allocation1 [shape = 'u32[144,128]{1,0:T(1,128)}', space=vmem, size = 0x12000, scoped, tag = 'internal scratch']
  #allocation2 [shape = 'f32[20,16,2]{2,1,0:T(8,128)}', space=vmem, size = 0x28000, scoped, tag = 'scratch operand']
  %s0 = inlined_call_operand.vmem [shape: f32[2,16,16,4], index: 0, kind: input, shape index: {}]
  %s1 = inlined_call_operand.vmem [shape: bf16[4,2], index: 1, kind: input, shape index: {}]
  %s2 = inlined_call_operand.vmem [shape: f32[1,2], index: 2, kind: input, shape index: {}]
  %s3 = inlined_call_operand.vmem [shape: bf16[8,4], index: 3, kind: input, shape index: {}]
  %s4 = inlined_call_operand.vmem [shape: f32[1,4], index: 4, kind: input, shape index: {}]
  %s5 = inlined_call_operand.vmem [shape: f32[2,16,16,4], index: 5, kind: output, shape index: {}]
  %s6 = sld [smem:[#allocation0]]
  $region53: #{spp_forward_nhwc.1} parent=0
    _
  %s8 = ssub.s32 1, %s6
  %s9 = scalar_select 0, %s8, %s6
  loop: start=0, step=1, limit=10
  $region2: #{spp_forward_nhwc.1} parent=0 // loop_pre_header
    _
  $region3: #{spp_forward_nhwc.1} parent=0 // loop_header
    %s11 = sphi 0, %s15
    %p12 = scmp.ge.s32.totalorder %s11, 10
    %s18 = sphi 0, %s30
    %s19 = sphi 0, %s26
    %s20 = sphi 0, %s18
    %s21 = sphi 0, %s19
    %s22 = sphi 0, %s20
    %s23 = sphi 0, %s21
    %s33 = sphi 0, %s35
    %s36 = sphi 0, %s33
    %s37 = sphi 0, %s36
    %s53 = sphi 0, %s37
    %s57 = sphi 0, %s57
    %s59 = sphi 0, %s57
    %s60 = sphi 0, %s59
    %s74 = sphi 0, %s60
    %s78 = sphi 0, %s78
    %s80 = sphi 0, %s78
    %s81 = sphi 0, %s80
    %s95 = sphi 0, %s81
    %s99 = sphi 0, %s99
    %s101 = sphi 0, %s99
    %s102 = sphi 0, %s101
    %s116 = sphi 0, %s102
    %s120 = sphi 0, %s120
    %s122 = sphi 0, %s120
    %s123 = sphi 0, %s122
    %s137 = sphi 0, %s123
    %s145 = sphi 0, %s147
    %s148 = sphi 0, %s145
    %s149 = sphi 0, %s148
    %s165 = sphi 0, %s149
  $region4: #{spp_forward_nhwc.1} parent=0 // loop_header_branch
    %14 = sbr.rel (%p12) target = $region8
  $region5: #{spp_forward_nhwc.1} parent=0 // loop_body
    %s16 = ssub.s32 %s11, 1
    %s17 = ssub.s32 %s11, 2
    %s24 = sadd.s32 1, %s19
    %p25 = scmp.ge.s32.totalorder %s24, 4
    %s26 = scalar_select %p25, 0, %s24
    %s27 = sadd.s32 1, %s18
    %s28 = scalar_select %p25, %s27, %s18
    %p29 = scmp.ge.s32.totalorder %s28, 2
    %s30 = scalar_select %p29, 0, %s28
    %s31 = ssub.s32 %s18, %s30
    %p32 = scmp.eq.s32.totalorder %s31, 0
    %s34 = sadd.s32 %s33, 1
    %s35 = scalar_select %p32, %s33, %s34
    %p38 = pneg %p32
    %p39 = scmp.eq.s32.totalorder %s11, 7
    %p40 = por %p38, %p39
    %p41 = scmp.ne.s32.totalorder %s33, %s36
    %p42 = scmp.eq.s32.totalorder %s11, 0
    %p43 = por %p41, %p42
    %p44 = scmp.ne.s32.totalorder %s33, %s36
    %p45 = scmp.eq.s32.totalorder %s16, 7
    %p46 = por %p44, %p45
    %p47 = scmp.ne.s32.totalorder %s36, %s37
    %p48 = scmp.eq.s32.totalorder %s16, 0
    %p49 = por %p47, %p48
    %p50 = scmp.ne.s32.totalorder %s36, %s37
    %p51 = scmp.eq.s32.totalorder %s17, 7
    %p52 = por %p50, %p51
    %p54 = scmp.ne.s32.totalorder %s37, %s53
    %p55 = scmp.eq.s32.totalorder %s17, 0
    %p56 = por %p54, %p55
    %s58 = sadd.s32 %s57, 1
    %p61 = scmp.eq.s32.totalorder %s11, 7
    %p62 = scmp.ne.s32.totalorder %s57, %s59
    %p63 = scmp.eq.s32.totalorder %s11, 0
    %p64 = por %p62, %p63
    %p65 = scmp.ne.s32.totalorder %s57, %s59
    %p66 = scmp.eq.s32.totalorder %s16, 7
    %p67 = por %p65, %p66
    %p68 = scmp.ne.s32.totalorder %s59, %s60
    %p69 = scmp.eq.s32.totalorder %s16, 0
    %p70 = por %p68, %p69
    %p71 = scmp.ne.s32.totalorder %s59, %s60
    %p72 = scmp.eq.s32.totalorder %s17, 7
    %p73 = por %p71, %p72
    %p75 = scmp.ne.s32.totalorder %s60, %s74
    %p76 = scmp.eq.s32.totalorder %s17, 0
    %p77 = por %p75, %p76
    %s79 = sadd.s32 %s78, 1
    %p82 = scmp.eq.s32.totalorder %s11, 7
    %p83 = scmp.ne.s32.totalorder %s78, %s80
    %p84 = scmp.eq.s32.totalorder %s11, 0
    %p85 = por %p83, %p84
    %p86 = scmp.ne.s32.totalorder %s78, %s80
    %p87 = scmp.eq.s32.totalorder %s16, 7
    %p88 = por %p86, %p87
    %p89 = scmp.ne.s32.totalorder %s80, %s81
    %p90 = scmp.eq.s32.totalorder %s16, 0
    %p91 = por %p89, %p90
    %p92 = scmp.ne.s32.totalorder %s80, %s81
    %p93 = scmp.eq.s32.totalorder %s17, 7
    %p94 = por %p92, %p93
    %p96 = scmp.ne.s32.totalorder %s81, %s95
    %p97 = scmp.eq.s32.totalorder %s17, 0
    %p98 = por %p96, %p97
    %s100 = sadd.s32 %s99, 1
    %p103 = scmp.eq.s32.totalorder %s11, 7
    %p104 = scmp.ne.s32.totalorder %s99, %s101
    %p105 = scmp.eq.s32.totalorder %s11, 0
    %p106 = por %p104, %p105
    %p107 = scmp.ne.s32.totalorder %s99, %s101
    %p108 = scmp.eq.s32.totalorder %s16, 7
    %p109 = por %p107, %p108
    %p110 = scmp.ne.s32.totalorder %s101, %s102
    %p111 = scmp.eq.s32.totalorder %s16, 0
    %p112 = por %p110, %p111
    %p113 = scmp.ne.s32.totalorder %s101, %s102
    %p114 = scmp.eq.s32.totalorder %s17, 7
    %p115 = por %p113, %p114
    %p117 = scmp.ne.s32.totalorder %s102, %s116
    %p118 = scmp.eq.s32.totalorder %s17, 0
    %p119 = por %p117, %p118
    %s121 = sadd.s32 %s120, 1
    %p124 = scmp.eq.s32.totalorder %s11, 7
    %p125 = scmp.ne.s32.totalorder %s120, %s122
    %p126 = scmp.eq.s32.totalorder %s11, 0
    %p127 = por %p125, %p126
    %p128 = scmp.ne.s32.totalorder %s120, %s122
    %p129 = scmp.eq.s32.totalorder %s16, 7
    %p130 = por %p128, %p129
    %p131 = scmp.ne.s32.totalorder %s122, %s123
    %p132 = scmp.eq.s32.totalorder %s16, 0
    %p133 = por %p131, %p132
    %p134 = scmp.ne.s32.totalorder %s122, %s123
    %p135 = scmp.eq.s32.totalorder %s17, 7
    %p136 = por %p134, %p135
    %p138 = scmp.ne.s32.totalorder %s123, %s137
    %p139 = scmp.eq.s32.totalorder %s17, 0
    %p140 = por %p138, %p139
    %s141 = ssub.s32 %s18, %s30
    %s142 = ssub.s32 %s19, %s26
    %s143 = sor.u32 %s141, %s142
    %p144 = scmp.eq.s32.totalorder %s143, 0
    %s146 = sadd.s32 %s145, 1
    %s147 = scalar_select %p144, %s145, %s146
    %p150 = pneg %p144
    %p151 = scmp.eq.s32.totalorder %s11, 7
    %p152 = por %p150, %p151
    %p153 = scmp.ne.s32.totalorder %s145, %s148
    %p154 = scmp.eq.s32.totalorder %s11, 0
    %p155 = por %p153, %p154
    %p156 = scmp.ne.s32.totalorder %s145, %s148
    %p157 = scmp.eq.s32.totalorder %s16, 7
    %p158 = por %p156, %p157
    %p159 = scmp.ne.s32.totalorder %s148, %s149
    %p160 = scmp.eq.s32.totalorder %s16, 0
    %p161 = por %p159, %p160
    %p162 = scmp.ne.s32.totalorder %s148, %s149
    %p163 = scmp.eq.s32.totalorder %s17, 7
    %p164 = por %p162, %p163
    %p166 = scmp.ne.s32.totalorder %s149, %s165
    %p167 = scmp.eq.s32.totalorder %s17, 0
    %p168 = por %p166, %p167
    %p169 = scmp.le.s32.totalorder 1, %s11
    %p170 = scmp.lt.s32.totalorder %s11, 9
    %p171 = pnand %p169, %p170
    %p172 = pneg %p171
    // Predicated region
    $region9: #{spp_forward_nhwc.1} parent=5 // pred_check
      _
    $region10: #{spp_forward_nhwc.1} parent=5 // pred_check_branch
      %174 = sbr.rel (%p171) target = $region12
    $region11: #{spp_forward_nhwc.1} parent=5 // pred_region
      %s175 = ssub.s32 %s11, 1
      // Predicated region
      $region13: #{spp_forward_nhwc.1} parent=11 // pred_check
        %p176 = pneg %p70
      $region14: #{spp_forward_nhwc.1} parent=11 // pred_check_branch
        %178 = sbr.rel (%p176) target = $region16
      $region15: #{spp_forward_nhwc.1} parent=11 // pred_region
        _
      $region16: #{spp_forward_nhwc.1} parent=11 // pred_fallthru
        _
      // Predicated region
      $region17: #{spp_forward_nhwc.1} parent=11 // pred_check
        %p179 = pneg %p91
      $region18: #{spp_forward_nhwc.1} parent=11 // pred_check_branch
        %181 = sbr.rel (%p179) target = $region20
      $region19: #{spp_forward_nhwc.1} parent=11 // pred_region
        _
      $region20: #{spp_forward_nhwc.1} parent=11 // pred_fallthru
        _
      // Predicated region
      $region21: #{spp_forward_nhwc.1} parent=11 // pred_check
        %p182 = pneg %p112
      $region22: #{spp_forward_nhwc.1} parent=11 // pred_check_branch
        %184 = sbr.rel (%p182) target = $region24
      $region23: #{spp_forward_nhwc.1} parent=11 // pred_region
        _
      $region24: #{spp_forward_nhwc.1} parent=11 // pred_fallthru
        _
      // Predicated region
      $region25: #{spp_forward_nhwc.1} parent=11 // pred_check
        %p185 = pneg %p133
      $region26: #{spp_forward_nhwc.1} parent=11 // pred_check_branch
        %187 = sbr.rel (%p185) target = $region28
      $region27: #{spp_forward_nhwc.1} parent=11 // pred_region
        _
      $region28: #{spp_forward_nhwc.1} parent=11 // pred_fallthru
        _
    $region12: #{spp_forward_nhwc.1} parent=5 // pred_fallthru
      _
    %p188 = scmp.lt.s32.totalorder %s11, 8
    // Predicated region
    $region29: #{spp_forward_nhwc.1} parent=5 // pred_check
      %p189 = pneg %p188
    $region30: #{spp_forward_nhwc.1} parent=5 // pred_check_branch
      %191 = sbr.rel (%p189) target = $region32
    $region31: #{spp_forward_nhwc.1} parent=5 // pred_region
      // Predicated region
      $region33: #{spp_forward_nhwc.1} parent=31 // pred_check
        %p192 = pneg %p43
      $region34: #{spp_forward_nhwc.1} parent=31 // pred_check_branch
        %194 = sbr.rel (%p192) target = $region36
      $region35: #{spp_forward_nhwc.1} parent=31 // pred_region
        %p195 = scmp.lt.s32.totalorder %s18, 1
        %s196 = scalar_select %p195, %s18, 1
        %s197 = smul.addr %s196, 32
        %s198 = smul.addr %s197, 8
        %s199 = scalar_lea.vmem %s0, %s198
      $region36: #{spp_forward_nhwc.1} parent=31 // pred_fallthru
        _
    $region32: #{spp_forward_nhwc.1} parent=5 // pred_fallthru
      _
    %p200 = scmp.le.s32.totalorder 1, %s11
    %p201 = scmp.lt.s32.totalorder %s11, 9
    %p202 = pnand %p200, %p201
    %p203 = pneg %p202
    // Predicated region
    $region37: #{spp_forward_nhwc.1} parent=5 // pred_check
      _
    $region38: #{spp_forward_nhwc.1} parent=5 // pred_check_branch
      %205 = sbr.rel (%p202) target = $region40
    $region39: #{spp_forward_nhwc.1} parent=5 // pred_region
      %s206 = ssub.s32 %s11, 1
      %p207 = scmp.lt.s32.totalorder %s20, 1
      %s208 = scalar_select %p207, %s20, 1
      %s209 = smul.addr %s208, 32
      %s210 = smul.addr %s209, 8
      %s211 = scalar_lea.vmem %s0, %s210
      %p212 = pneg %p49
      %p213 = pneg %p46
      %p214 = pneg %p70
      %p215 = pneg %p67
      %p216 = pneg %p91
      %p217 = pneg %p88
      %p218 = pneg %p112
      %p219 = pneg %p109
      %p220 = pneg %p133
      %p221 = pneg %p130
      %p222 = pneg %p161
      %p223 = pneg %p158
      %s224 = smul.u32 4, %s21
      %p225 = scmp.lt.s32.totalorder %s20, 1
      %s226 = scalar_select %p225, %s20, 1
      %p227 = scmp.lt.s32.totalorder %s224, 15
      %s228 = scalar_select %p227, %s224, 15
      %s229 = smul.addr %s228, 2
      %s230 = smul.addr %s226, 32
      %s231 = sadd.s32 %s229, %s230
      %s232 = smul.addr %s231, 8
      %s233 = scalar_lea.vmem %s5, %s232
      %p234 = scmp.lt.s32.totalorder %s20, 1
      %s235 = scalar_select %p234, %s20, 1
      %s236 = smul.addr %s235, 32
      %s237 = smul.addr %s236, 8
      %s238 = scalar_lea.vmem %s0, %s237
      %s239 = smul.u32 4, %s21
      %p240 = scmp.lt.s32.totalorder %s20, 1
      %s241 = scalar_select %p240, %s20, 1
      %p242 = scmp.lt.s32.totalorder %s239, 15
      %s243 = scalar_select %p242, %s239, 15
      %s244 = smul.addr %s243, 2
      %s245 = smul.addr %s241, 32
      %s246 = sadd.s32 %s244, %s245
      %s247 = smul.addr %s246, 8
      %s248 = scalar_lea.vmem %s5, %s247
      %s249 = smul.u32 4, %s21
      %s251 = smul.u32 %s21, 4
      %s252 = ssub.s32 %s251, 6
      %p253 = scmp.gt.s32.totalorder %s252, 0
      %s254 = scalar_select %p253, %s252, 0
      %p255 = scmp.lt.s32.totalorder %s254, 0
      %s256 = scalar_select %p255, %s254, 0
      %s257 = ssub.s32 %s251, %s256
      %s258 = smul.u32 %s256, 16
      %s259 = scalar_lea.vmem %s238, %s258
      %v260 = vld [vmem:[%s259] sm:$0xff]
      %v261 = vld [vmem:[%s259 + $0x8] sm:$0xff]
      %v262 = vld [vmem:[%s259 + $0x10] sm:$0xff]
      %v263 = vld [vmem:[%s259 + $0x18] sm:$0xff]
      %v264 = vld [vmem:[%s259 + $0x20] sm:$0xff]
      %v265 = vld [vmem:[%s259 + $0x28] sm:$0xff]
      %v266 = vld [vmem:[%s259 + $0x30] sm:$0xff]
      %v267 = vld [vmem:[%s259 + $0x38] sm:$0xff]
      %v268 = vld [vmem:[%s259 + $0x40] sm:$0xff]
      %v269 = vld [vmem:[%s259 + $0x48] sm:$0xff]
      %v270 = vld [vmem:[%s259 + $0x50] sm:$0xff]
      %v271 = vld [vmem:[%s259 + $0x58] sm:$0xff]
      %v272 = vld [vmem:[%s259 + $0x60] sm:$0xff]
      %v273 = vld [vmem:[%s259 + $0x68] sm:$0xff]
      %v274 = vld [vmem:[%s259 + $0x70] sm:$0xff]
      %v275 = vld [vmem:[%s259 + $0x78] sm:$0xff]
      %v276 = vld [vmem:[%s259 + $0x80] sm:$0xff]
      %v277 = vld [vmem:[%s259 + $0x88] sm:$0xff]
      %v278 = vld [vmem:[%s259 + $0x90] sm:$0xff]
      %v279 = vld [vmem:[%s259 + $0x98] sm:$0xff]
      %v280 = vld [vmem:[%s259 + $0xa0] sm:$0xff]
      %v281 = vld [vmem:[%s259 + $0xa8] sm:$0xff]
      %v282 = vld [vmem:[%s259 + $0xb0] sm:$0xff]
      %v283 = vld [vmem:[%s259 + $0xb8] sm:$0xff]
      %v284 = vld [vmem:[%s259 + $0xc0] sm:$0xff]
      %v285 = vld [vmem:[%s259 + $0xc8] sm:$0xff]
      %v286 = vld [vmem:[%s259 + $0xd0] sm:$0xff]
      %v287 = vld [vmem:[%s259 + $0xd8] sm:$0xff]
      %v288 = vld [vmem:[%s259 + $0xe0] sm:$0xff]
      %v289 = vld [vmem:[%s259 + $0xe8] sm:$0xff]
      %v290 = vld [vmem:[%s259 + $0xf0] sm:$0xff]
      %v291 = vld [vmem:[%s259 + $0xf8] sm:$0xff]
      %v292 = vpack.c.bf16 %v261, %v260
      %v293 = vpack.c.bf16 %v263, %v262
      %v294 = vpack.c.bf16 %v265, %v264
      %v295 = vpack.c.bf16 %v267, %v266
      %v296 = vpack.c.bf16 %v269, %v268
      %v297 = vpack.c.bf16 %v271, %v270
      %v298 = vpack.c.bf16 %v273, %v272
      %v299 = vpack.c.bf16 %v275, %v274
      %v300 = vpack.c.bf16 %v277, %v276
      %v301 = vpack.c.bf16 %v279, %v278
      %v302 = vpack.c.bf16 %v281, %v280
      %v303 = vpack.c.bf16 %v283, %v282
      %v304 = vpack.c.bf16 %v285, %v284
      %v305 = vpack.c.bf16 %v287, %v286
      %v306 = vpack.c.bf16 %v289, %v288
      %v307 = vpack.c.bf16 %v291, %v290
      %v308 = vld [vmem:[%s1] sm:$0x3]
      %v309 = vld [vmem:[%s2] sm:$0x1]
      %v311 = vlaneseq
      %v312 = vshrl.u32 %v311, 7
      %v313 = vsub.s32 0, %v312
      %v314 = vrot.slane %v309, %v313
      %vm316 = vcmask 31744
      %v318 = vsel %vm316, %v292, 0
      %v321 = vsel %vm316, %v293, 0
      %v324 = vsel %vm316, %v294, 0
      %v327 = vsel %vm316, %v295, 0
      %v330 = vsel %vm316, %v296, 0
      %v333 = vsel %vm316, %v297, 0
      %v336 = vsel %vm316, %v298, 0
      %v339 = vsel %vm316, %v299, 0
      %v342 = vsel %vm316, %v300, 0
      %v345 = vsel %vm316, %v301, 0
      %v348 = vsel %vm316, %v302, 0
      %v351 = vsel %vm316, %v303, 0
      %v354 = vsel %vm316, %v304, 0
      %v357 = vsel %vm316, %v305, 0
      %v360 = vsel %vm316, %v306, 0
      %v363 = vsel %vm316, %v307, 0
      %vm365 = vcmask 1041408
      %v367 = vsel %vm365, %v308, 0
      %369 = vmatprep.subr.bf16.mxu0 0
      %370 = vmatpush1.bf16.msra.mxu0 %v367
      %371 = vmatprep.subr.bf16.mxu0 0
      %372 = vmatpush1.bf16.msra.mxu0 0
      %373 = vmatprep.subr.bf16.mxu0 0
      %374 = vmatpush1.bf16.msra.mxu0 0
      %375 = vmatprep.subr.bf16.mxu0 0
      %376 = vmatpush1.bf16.msra.mxu0 0
      %377 = vmatprep.subr.bf16.mxu0 0
      %378 = vmatpush1.bf16.msra.mxu0 0
      %379 = vmatprep.subr.bf16.mxu0 0
      %380 = vmatpush1.bf16.msra.mxu0 0
      %381 = vmatprep.subr.bf16.mxu0 0
      %382 = vmatpush1.bf16.msra.mxu0 0
      %383 = vmatprep.subr.bf16.mxu0 0
      %384 = vmatpush1.bf16.msra.mxu0 0
      %385 = vmatprep.subr.bf16.mxu0 0
      %386 = vmatpush1.bf16.msra.mxu0 0
      %387 = vmatprep.subr.bf16.mxu0 0
      %388 = vmatpush1.bf16.msra.mxu0 0
      %389 = vmatprep.subr.bf16.mxu0 0
      %390 = vmatpush1.bf16.msra.mxu0 0
      %391 = vmatprep.subr.bf16.mxu0 0
      %392 = vmatpush1.bf16.msra.mxu0 0
      %393 = vmatprep.subr.bf16.mxu0 0
      %394 = vmatpush1.bf16.msra.mxu0 0
      %395 = vmatprep.subr.bf16.mxu0 0
      %396 = vmatpush1.bf16.msra.mxu0 0
      %397 = vmatprep.subr.bf16.mxu0 0
      %398 = vmatpush1.bf16.msra.mxu0 0
      %399 = vmatprep.subr.bf16.mxu0 0
      %400 = vmatpush1.bf16.msra.mxu0 0
      %401 = vmatprep.mubr.bf16.mxu0 0
      %402 = vmatmul.mubr.bf16.gmra.mrb[0].mxu0 %v318
      %v403 = vpop.f32.mrb[0].mxu0
      %v404 = vadd.f32 %v314, %v403
      %v405 = vpop.f32.mrb[0].mxu0
      %v406 = vpop.f32.mrb[0].mxu0
      %v407 = vadd.f32 %v314, %v406
      %v408 = vpop.f32.mrb[0].mxu0
      %409 = vmatprep.mubr.bf16.mxu0 0
      %410 = vmatmul.mubr.bf16.gmra.mrb[0].mxu0 %v321
      %v411 = vpop.f32.mrb[0].mxu0
      %v412 = vadd.f32 %v314, %v411
      %v413 = vpop.f32.mrb[0].mxu0
      %v414 = vpop.f32.mrb[0].mxu0
      %v415 = vadd.f32 %v314, %v414
      %v416 = vpop.f32.mrb[0].mxu0
      %417 = vmatprep.mubr.bf16.mxu0 0
      %418 = vmatmul.mubr.bf16.gmra.mrb[0].mxu0 %v324
      %v419 = vpop.f32.mrb[0].mxu0
      %v420 = vadd.f32 %v314, %v419
      %v421 = vpop.f32.mrb[0].mxu0
      %v422 = vpop.f32.mrb[0].mxu0
      %v423 = vadd.f32 %v314, %v422
      %v424 = vpop.f32.mrb[0].mxu0
      %425 = vmatprep.mubr.bf16.mxu0 0
      %426 = vmatmul.mubr.bf16.gmra.mrb[0].mxu0 %v327
      %v427 = vpop.f32.mrb[0].mxu0
      %v428 = vadd.f32 %v314, %v427
      %v429 = vpop.f32.mrb[0].mxu0
      %v430 = vpop.f32.mrb[0].mxu0
      %v431 = vadd.f32 %v314, %v430
      %v432 = vpop.f32.mrb[0].mxu0
      %433 = vmatprep.mubr.bf16.mxu0 0
      %434 = vmatmul.mubr.bf16.gmra.mrb[0].mxu0 %v330
      %v435 = vpop.f32.mrb[0].mxu0
      %v436 = vadd.f32 %v314, %v435
      %v437 = vpop.f32.mrb[0].mxu0
      %v438 = vpop.f32.mrb[0].mxu0
      %v439 = vadd.f32 %v314, %v438
      %v440 = vpop.f32.mrb[0].mxu0
      %441 = vmatprep.mubr.bf16.mxu0 0
      %442 = vmatmul.mubr.bf16.gmra.mrb[0].mxu0 %v333
      %v443 = vpop.f32.mrb[0].mxu0
      %v444 = vadd.f32 %v314, %v443
      %v445 = vpop.f32.mrb[0].mxu0
      %v446 = vpop.f32.mrb[0].mxu0
      %v447 = vadd.f32 %v314, %v446
      %v448 = vpop.f32.mrb[0].mxu0
      %449 = vmatprep.mubr.bf16.mxu0 0
      %450 = vmatmul.mubr.bf16.gmra.mrb[0].mxu0 %v336
      %v451 = vpop.f32.mrb[0].mxu0
      %v452 = vadd.f32 %v314, %v451
      %v453 = vpop.f32.mrb[0].mxu0
      %v454 = vpop.f32.mrb[0].mxu0
      %v455 = vadd.f32 %v314, %v454
      %v456 = vpop.f32.mrb[0].mxu0
      %457 = vmatprep.mubr.bf16.mxu0 0
      %458 = vmatmul.mubr.bf16.gmra.mrb[0].mxu0 %v339
      %v459 = vpop.f32.mrb[0].mxu0
      %v460 = vadd.f32 %v314, %v459
      %v461 = vpop.f32.mrb[0].mxu0
      %v462 = vpop.f32.mrb[0].mxu0
      %v463 = vadd.f32 %v314, %v462
      %v464 = vpop.f32.mrb[0].mxu0
      %465 = vmatprep.mubr.bf16.mxu0 0
      %466 = vmatmul.mubr.bf16.gmra.mrb[0].mxu0 %v342
      %v467 = vpop.f32.mrb[0].mxu0
      %v468 = vadd.f32 %v314, %v467
      %v469 = vpop.f32.mrb[0].mxu0
      %v470 = vpop.f32.mrb[0].mxu0
      %v471 = vadd.f32 %v314, %v470
      %v472 = vpop.f32.mrb[0].mxu0
      %473 = vmatprep.mubr.bf16.mxu0 0
      %474 = vmatmul.mubr.bf16.gmra.mrb[0].mxu0 %v345
      %v475 = vpop.f32.mrb[0].mxu0
      %v476 = vadd.f32 %v314, %v475
      %v477 = vpop.f32.mrb[0].mxu0
      %v478 = vpop.f32.mrb[0].mxu0
      %v479 = vadd.f32 %v314, %v478
      %v480 = vpop.f32.mrb[0].mxu0
      %481 = vmatprep.mubr.bf16.mxu0 0
      %482 = vmatmul.mubr.bf16.gmra.mrb[0].mxu0 %v348
      %v483 = vpop.f32.mrb[0].mxu0
      %v484 = vadd.f32 %v314, %v483
      %v485 = vpop.f32.mrb[0].mxu0
      %v486 = vpop.f32.mrb[0].mxu0
      %v487 = vadd.f32 %v314, %v486
      %v488 = vpop.f32.mrb[0].mxu0
      %489 = vmatprep.mubr.bf16.mxu0 0
      %490 = vmatmul.mubr.bf16.gmra.mrb[0].mxu0 %v351
      %v491 = vpop.f32.mrb[0].mxu0
      %v492 = vadd.f32 %v314, %v491
      %v493 = vpop.f32.mrb[0].mxu0
      %v494 = vpop.f32.mrb[0].mxu0
      %v495 = vadd.f32 %v314, %v494
      %v496 = vpop.f32.mrb[0].mxu0
      %497 = vmatprep.mubr.bf16.mxu0 0
      %498 = vmatmul.mubr.bf16.gmra.mrb[0].mxu0 %v354
      %v499 = vpop.f32.mrb[0].mxu0
      %v500 = vadd.f32 %v314, %v499
      %v501 = vpop.f32.mrb[0].mxu0
      %v502 = vpop.f32.mrb[0].mxu0
      %v503 = vadd.f32 %v314, %v502
      %v504 = vpop.f32.mrb[0].mxu0
      %505 = vmatprep.mubr.bf16.mxu0 0
      %506 = vmatmul.mubr.bf16.gmra.mrb[0].mxu0 %v357
      %v507 = vpop.f32.mrb[0].mxu0
      %v508 = vadd.f32 %v314, %v507
      %v509 = vpop.f32.mrb[0].mxu0
      %v510 = vpop.f32.mrb[0].mxu0
      %v511 = vadd.f32 %v314, %v510
      %v512 = vpop.f32.mrb[0].mxu0
      %513 = vmatprep.mubr.bf16.mxu0 0
      %514 = vmatmul.mubr.bf16.gmra.mrb[0].mxu0 %v360
      %v515 = vpop.f32.mrb[0].mxu0
      %v516 = vadd.f32 %v314, %v515
      %v517 = vpop.f32.mrb[0].mxu0
      %v518 = vpop.f32.mrb[0].mxu0
      %v519 = vadd.f32 %v314, %v518
      %v520 = vpop.f32.mrb[0].mxu0
      %521 = vmatprep.mubr.bf16.mxu0 0
      %522 = vmatmul.mubr.bf16.gmra.mrb[0].mxu0 %v363
      %v523 = vpop.f32.mrb[0].mxu0
      %v524 = vadd.f32 %v314, %v523
      %v525 = vpop.f32.mrb[0].mxu0
      %v526 = vpop.f32.mrb[0].mxu0
      %v527 = vadd.f32 %v314, %v526
      %v528 = vpop.f32.mrb[0].mxu0
      %529 = vdwg.mxu0
      %v530 = vadd.f32 %v404, 3.0
      %v531 = vadd.f32 %v407, 3.0
      %v532 = vadd.f32 %v412, 3.0
      %v533 = vadd.f32 %v415, 3.0
      %v534 = vadd.f32 %v420, 3.0
      %v535 = vadd.f32 %v423, 3.0
      %v536 = vadd.f32 %v428, 3.0
      %v537 = vadd.f32 %v431, 3.0
      %v538 = vadd.f32 %v436, 3.0
      %v539 = vadd.f32 %v439, 3.0
      %v540 = vadd.f32 %v444, 3.0
      %v541 = vadd.f32 %v447, 3.0
      %v542 = vadd.f32 %v452, 3.0
      %v543 = vadd.f32 %v455, 3.0
      %v544 = vadd.f32 %v460, 3.0
      %v545 = vadd.f32 %v463, 3.0
      %v546 = vadd.f32 %v468, 3.0
      %v547 = vadd.f32 %v471, 3.0
      %v548 = vadd.f32 %v476, 3.0
      %v549 = vadd.f32 %v479, 3.0
      %v550 = vadd.f32 %v484, 3.0
      %v551 = vadd.f32 %v487, 3.0
      %v552 = vadd.f32 %v492, 3.0
      %v553 = vadd.f32 %v495, 3.0
      %v554 = vadd.f32 %v500, 3.0
      %v555 = vadd.f32 %v503, 3.0
      %v556 = vadd.f32 %v508, 3.0
      %v557 = vadd.f32 %v511, 3.0
      %v558 = vadd.f32 %v516, 3.0
      %v559 = vadd.f32 %v519, 3.0
      %v560 = vadd.f32 %v524, 3.0
      %v561 = vadd.f32 %v527, 3.0
      %v562 = vmax.f32 %v530, 0.0
      %v563 = vmax.f32 %v531, 0.0
      %v564 = vmax.f32 %v532, 0.0
      %v565 = vmax.f32 %v533, 0.0
      %v566 = vmax.f32 %v534, 0.0
      %v567 = vmax.f32 %v535, 0.0
      %v568 = vmax.f32 %v536, 0.0
      %v569 = vmax.f32 %v537, 0.0
      %v570 = vmax.f32 %v538, 0.0
      %v571 = vmax.f32 %v539, 0.0
      %v572 = vmax.f32 %v540, 0.0
      %v573 = vmax.f32 %v541, 0.0
      %v574 = vmax.f32 %v542, 0.0
      %v575 = vmax.f32 %v543, 0.0
      %v576 = vmax.f32 %v544, 0.0
      %v577 = vmax.f32 %v545, 0.0
      %v578 = vmax.f32 %v546, 0.0
      %v579 = vmax.f32 %v547, 0.0
      %v580 = vmax.f32 %v548, 0.0
      %v581 = vmax.f32 %v549, 0.0
      %v582 = vmax.f32 %v550, 0.0
      %v583 = vmax.f32 %v551, 0.0
      %v584 = vmax.f32 %v552, 0.0
      %v585 = vmax.f32 %v553, 0.0
      %v586 = vmax.f32 %v554, 0.0
      %v587 = vmax.f32 %v555, 0.0
      %v588 = vmax.f32 %v556, 0.0
      %v589 = vmax.f32 %v557, 0.0
      %v590 = vmax.f32 %v558, 0.0
      %v591 = vmax.f32 %v559, 0.0
      %v592 = vmax.f32 %v560, 0.0
      %v593 = vmax.f32 %v561, 0.0
      %v594 = vmin.f32 %v562, 6.0
      %v595 = vmin.f32 %v563, 6.0
      %v596 = vmin.f32 %v564, 6.0
      %v597 = vmin.f32 %v565, 6.0
      %v598 = vmin.f32 %v566, 6.0
      %v599 = vmin.f32 %v567, 6.0
      %v600 = vmin.f32 %v568, 6.0
      %v601 = vmin.f32 %v569, 6.0
      %v602 = vmin.f32 %v570, 6.0
      %v603 = vmin.f32 %v571, 6.0
      %v604 = vmin.f32 %v572, 6.0
      %v605 = vmin.f32 %v573, 6.0
      %v606 = vmin.f32 %v574, 6.0
      %v607 = vmin.f32 %v575, 6.0
      %v608 = vmin.f32 %v576, 6.0
      %v609 = vmin.f32 %v577, 6.0
      %v610 = vmin.f32 %v578, 6.0
      %v611 = vmin.f32 %v579, 6.0
      %v612 = vmin.f32 %v580, 6.0
      %v613 = vmin.f32 %v581, 6.0
      %v614 = vmin.f32 %v582, 6.0
      %v615 = vmin.f32 %v583, 6.0
      %v616 = vmin.f32 %v584, 6.0
      %v617 = vmin.f32 %v585, 6.0
      %v618 = vmin.f32 %v586, 6.0
      %v619 = vmin.f32 %v587, 6.0
      %v620 = vmin.f32 %v588, 6.0
      %v621 = vmin.f32 %v589, 6.0
      %v622 = vmin.f32 %v590, 6.0
      %v623 = vmin.f32 %v591, 6.0
      %v624 = vmin.f32 %v592, 6.0
      %v625 = vmin.f32 %v593, 6.0
      %v626 = vmul.f32 %v404, %v594
      %v627 = vmul.f32 %v407, %v595
      %v628 = vmul.f32 %v412, %v596
      %v629 = vmul.f32 %v415, %v597
      %v630 = vmul.f32 %v420, %v598
      %v631 = vmul.f32 %v423, %v599
      %v632 = vmul.f32 %v428, %v600
      %v633 = vmul.f32 %v431, %v601
      %v634 = vmul.f32 %v436, %v602
      %v635 = vmul.f32 %v439, %v603
      %v636 = vmul.f32 %v444, %v604
      %v637 = vmul.f32 %v447, %v605
      %v638 = vmul.f32 %v452, %v606
      %v639 = vmul.f32 %v455, %v607
      %v640 = vmul.f32 %v460, %v608
      %v641 = vmul.f32 %v463, %v609
      %v642 = vmul.f32 %v468, %v610
      %v643 = vmul.f32 %v471, %v611
      %v644 = vmul.f32 %v476, %v612
      %v645 = vmul.f32 %v479, %v613
      %v646 = vmul.f32 %v484, %v614
      %v647 = vmul.f32 %v487, %v615
      %v648 = vmul.f32 %v492, %v616
      %v649 = vmul.f32 %v495, %v617
      %v650 = vmul.f32 %v500, %v618
      %v651 = vmul.f32 %v503, %v619
      %v652 = vmul.f32 %v508, %v620
      %v653 = vmul.f32 %v511, %v621
      %v654 = vmul.f32 %v516, %v622
      %v655 = vmul.f32 %v519, %v623
      %v656 = vmul.f32 %v524, %v624
      %v657 = vmul.f32 %v527, %v625
      %v658 = vmul.f32 %v626, 0.16666667
      %v659 = vmul.f32 %v627, 0.16666667
      %v660 = vmul.f32 %v628, 0.16666667
      %v661 = vmul.f32 %v629, 0.16666667
      %v662 = vmul.f32 %v630, 0.16666667
      %v663 = vmul.f32 %v631, 0.16666667
      %v664 = vmul.f32 %v632, 0.16666667
      %v665 = vmul.f32 %v633, 0.16666667
      %v666 = vmul.f32 %v634, 0.16666667
      %v667 = vmul.f32 %v635, 0.16666667
      %v668 = vmul.f32 %v636, 0.16666667
      %v669 = vmul.f32 %v637, 0.16666667
      %v670 = vmul.f32 %v638, 0.16666667
      %v671 = vmul.f32 %v639, 0.16666667
      %v672 = vmul.f32 %v640, 0.16666667
      %v673 = vmul.f32 %v641, 0.16666667
      %v674 = vmul.f32 %v642, 0.16666667
      %v675 = vmul.f32 %v643, 0.16666667
      %v676 = vmul.f32 %v644, 0.16666667
      %v677 = vmul.f32 %v645, 0.16666667
      %v678 = vmul.f32 %v646, 0.16666667
      %v679 = vmul.f32 %v647, 0.16666667
      %v680 = vmul.f32 %v648, 0.16666667
      %v681 = vmul.f32 %v649, 0.16666667
      %v682 = vmul.f32 %v650, 0.16666667
      %v683 = vmul.f32 %v651, 0.16666667
      %v684 = vmul.f32 %v652, 0.16666667
      %v685 = vmul.f32 %v653, 0.16666667
      %v686 = vmul.f32 %v654, 0.16666667
      %v687 = vmul.f32 %v655, 0.16666667
      %v688 = vmul.f32 %v656, 0.16666667
      %v689 = vmul.f32 %v657, 0.16666667
      %vm690 = vcmask 15360
      %691 = vst.msk [vmem:[#allocation2] sm:$0xff] %vm690, -3.4028235e+38
      %692 = vst.msk [vmem:[#allocation2 + $0x8] sm:$0xff] %vm690, -3.4028235e+38
      %693 = vst.msk [vmem:[#allocation2 + $0x10] sm:$0xff] %vm690, -3.4028235e+38
      %694 = vst.msk [vmem:[#allocation2 + $0x18] sm:$0xff] %vm690, -3.4028235e+38
      %s695 = scalar_lea.vmem [#allocation2], 288
      %696 = vst.msk [vmem:[%s695] sm:$0xff] %vm690, -3.4028235e+38
      %697 = vst.msk [vmem:[%s695 + $0x8] sm:$0xff] %vm690, -3.4028235e+38
      %698 = vst.msk [vmem:[%s695 + $0x10] sm:$0xff] %vm690, -3.4028235e+38
      %699 = vst.msk [vmem:[%s695 + $0x18] sm:$0xff] %vm690, -3.4028235e+38
      %v700 = vlaneseq
      %v701 = vshrl.u32 %v700, 7
      %v702 = vadd.s32 %v701, 8
      %v703 = vrot.slane %v701, 7
      %v704 = vrot.slane %v702, 7
      %vm705 = vcmp.lt.s32.totalorder %v701, 1
      %v706 = vsel %vm705, %v703, %v704
      %v707 = vsel %vm705, %v704, %v703
      %v708 = vsub.s32 %v707, %v701
      %v709 = vsub.s32 %v706, %v702
      %vm710 = vcmp.lt.s32.totalorder %v708, 0
      %v711 = vsub.s32 0, %v708
      %v712 = vsel %vm710, %v711, %v708
      %vm713 = vcmp.lt.s32.totalorder %v709, 0
      %v714 = vsub.s32 0, %v709
      %v715 = vsel %vm713, %v714, %v709
      %vm716 = vcmp.eq.s32.totalorder %v712, 1
      %vm717 = vcmp.eq.s32.totalorder %v715, 1
      %v718 = vrot.slane %v701, 1
      %v719 = vrot.slane %v702, 1
      %vm720 = vcmp.lt.s32.totalorder %v701, 7
      %v721 = vsel %vm720, %v718, %v719
      %v722 = vsel %vm720, %v719, %v718
      %v723 = vsub.s32 %v721, %v701
      %v724 = vsub.s32 %v722, %v702
      %vm725 = vcmp.lt.s32.totalorder %v723, 0
      %v726 = vsub.s32 0, %v723
      %v727 = vsel %vm725, %v726, %v723
      %vm728 = vcmp.lt.s32.totalorder %v724, 0
      %v729 = vsub.s32 0, %v724
      %v730 = vsel %vm728, %v729, %v724
      %vm731 = vcmp.eq.s32.totalorder %v727, 1
      %vm732 = vcmp.eq.s32.totalorder %v730, 1
      %v733 = vrot.slane %v701, 6
      %v734 = vrot.slane %v702, 6
      %vm735 = vcmp.lt.s32.totalorder %v701, 2
      %v736 = vsel %vm735, %v733, %v734
      %v737 = vsel %vm735, %v734, %v733
      %v738 = vsub.s32 %v737, %v701
      %v739 = vsub.s32 %v736, %v702
      %vm740 = vcmp.lt.s32.totalorder %v738, 0
      %v741 = vsub.s32 0, %v738
      %v742 = vsel %vm740, %v741, %v738
      %vm743 = vcmp.lt.s32.totalorder %v739, 0
      %v744 = vsub.s32 0, %v739
      %v745 = vsel %vm743, %v744, %v739
      %vm746 = vcmp.eq.s32.totalorder %v742, 2
      %vm747 = vcmp.eq.s32.totalorder %v745, 2
      %v748 = vrot.slane %v701, 2
      %v749 = vrot.slane %v702, 2
      %vm750 = vcmp.lt.s32.totalorder %v701, 6
      %v751 = vsel %vm750, %v748, %v749
      %v752 = vsel %vm750, %v749, %v748
      %v753 = vsub.s32 %v751, %v701
      %v754 = vsub.s32 %v752, %v702
      %vm755 = vcmp.lt.s32.totalorder %v753, 0
      %v756 = vsub.s32 0, %v753
      %v757 = vsel %vm755, %v756, %v753
      %vm758 = vcmp.lt.s32.totalorder %v754, 0
      %v759 = vsub.s32 0, %v754
      %v760 = vsel %vm758, %v759, %v754
      %vm761 = vcmp.eq.s32.totalorder %v757, 2
      %vm762 = vcmp.eq.s32.totalorder %v760, 2
      %s763 = scalar_lea.vmem [#allocation2], 32
      %764 = vst.msk [vmem:[%s763] sm:$0xff] %vm690, %v658
      %765 = vst.msk [vmem:[%s763 + $0x8] sm:$0xff] %vm690, %v659
      %766 = vst.msk [vmem:[%s763 + $0x10] sm:$0xff] %vm690, %v660
      %767 = vst.msk [vmem:[%s763 + $0x18] sm:$0xff] %vm690, %v661
      %768 = vst.msk [vmem:[%s763 + $0x20] sm:$0xff] %vm690, %v662
      %769 = vst.msk [vmem:[%s763 + $0x28] sm:$0xff] %vm690, %v663
      %770 = vst.msk [vmem:[%s763 + $0x30] sm:$0xff] %vm690, %v664
      %771 = vst.msk [vmem:[%s763 + $0x38] sm:$0xff] %vm690, %v665
      %772 = vst.msk [vmem:[%s763 + $0x40] sm:$0xff] %vm690, %v666
      %773 = vst.msk [vmem:[%s763 + $0x48] sm:$0xff] %vm690, %v667
      %774 = vst.msk [vmem:[%s763 + $0x50] sm:$0xff] %vm690, %v668
      %775 = vst.msk [vmem:[%s763 + $0x58] sm:$0xff] %vm690, %v669
      %776 = vst.msk [vmem:[%s763 + $0x60] sm:$0xff] %vm690, %v670
      %777 = vst.msk [vmem:[%s763 + $0x68] sm:$0xff] %vm690, %v671
      %778 = vst.msk [vmem:[%s763 + $0x70] sm:$0xff] %vm690, %v672
      %779 = vst.msk [vmem:[%s763 + $0x78] sm:$0xff] %vm690, %v673
      %780 = vst.msk [vmem:[%s763 + $0x80] sm:$0xff] %vm690, %v674
      %781 = vst.msk [vmem:[%s763 + $0x88] sm:$0xff] %vm690, %v675
      %782 = vst.msk [vmem:[%s763 + $0x90] sm:$0xff] %vm690, %v676
      %783 = vst.msk [vmem:[%s763 + $0x98] sm:$0xff] %vm690, %v677
      %784 = vst.msk [vmem:[%s763 + $0xa0] sm:$0xff] %vm690, %v678
      %785 = vst.msk [vmem:[%s763 + $0xa8] sm:$0xff] %vm690, %v679
      %786 = vst.msk [vmem:[%s763 + $0xb0] sm:$0xff] %vm690, %v680
      %787 = vst.msk [vmem:[%s763 + $0xb8] sm:$0xff] %vm690, %v681
      %788 = vst.msk [vmem:[%s763 + $0xc0] sm:$0xff] %vm690, %v682
      %789 = vst.msk [vmem:[%s763 + $0xc8] sm:$0xff] %vm690, %v683
      %790 = vst.msk [vmem:[%s763 + $0xd0] sm:$0xff] %vm690, %v684
      %791 = vst.msk [vmem:[%s763 + $0xd8] sm:$0xff] %vm690, %v685
      %792 = vst.msk [vmem:[%s763 + $0xe0] sm:$0xff] %vm690, %v686
      %793 = vst.msk [vmem:[%s763 + $0xe8] sm:$0xff] %vm690, %v687
      %794 = vst.msk [vmem:[%s763 + $0xf0] sm:$0xff] %vm690, %v688
      %795 = vst.msk [vmem:[%s763 + $0xf8] sm:$0xff] %vm690, %v689
      %s796 = sadd.s32 %s257, 2
      %s797 = smul.u32 %s796, 16
      %s798 = scalar_lea.vmem [#allocation2], %s797
      %v799 = vld [vmem:[%s798] sm:$0xff]
      %v800 = vld [vmem:[%s798 + $0x8] sm:$0xff]
      %v801 = vld [vmem:[%s798 + $0x10] sm:$0xff]
      %v802 = vld [vmem:[%s798 + $0x18] sm:$0xff]
      %v803 = vld [vmem:[%s798 + $0x20] sm:$0xff]
      %v804 = vld [vmem:[%s798 + $0x28] sm:$0xff]
      %v805 = vld [vmem:[%s798 + $0x30] sm:$0xff]
      %v806 = vld [vmem:[%s798 + $0x38] sm:$0xff]
      %v807 = vpack.c.bf16 %v800, %v799
      %v808 = vpack.c.bf16 %v802, %v801
      %v809 = vpack.c.bf16 %v804, %v803
      %v810 = vpack.c.bf16 %v806, %v805
      %s811 = scalar_lea.vmem [#allocation2], 16
      %v812 = vld [vmem:[%s811] sm:$0xff]
      %v813 = vld [vmem:[%s811 + $0x8] sm:$0xff]
      %v814 = vld [vmem:[%s811 + $0x10] sm:$0xff]
      %v815 = vld [vmem:[%s811 + $0x18] sm:$0xff]
      %v816 = vld [vmem:[%s811 + $0x20] sm:$0xff]
      %v817 = vld [vmem:[%s811 + $0x28] sm:$0xff]
      %v818 = vld [vmem:[%s811 + $0x30] sm:$0xff]
      %v819 = vld [vmem:[%s811 + $0x38] sm:$0xff]
      %v820 = vld [vmem:[%s811 + $0x40] sm:$0xff]
      %v821 = vld [vmem:[%s811 + $0x48] sm:$0xff]
      %v822 = vld [vmem:[%s811 + $0x50] sm:$0xff]
      %v823 = vld [vmem:[%s811 + $0x58] sm:$0xff]
      %v824 = vld [vmem:[%s811 + $0x60] sm:$0xff]
      %v825 = vld [vmem:[%s811 + $0x68] sm:$0xff]
      %v826 = vld [vmem:[%s811 + $0x70] sm:$0xff]
      %v827 = vld [vmem:[%s811 + $0x78] sm:$0xff]
      %v828 = vld [vmem:[%s811 + $0x80] sm:$0xff]
      %v829 = vld [vmem:[%s811 + $0x88] sm:$0xff]
      %v830 = vld [vmem:[%s811 + $0x90] sm:$0xff]
      %v831 = vld [vmem:[%s811 + $0x98] sm:$0xff]
      %v832 = vld [vmem:[%s811 + $0xa0] sm:$0xff]
      %v833 = vld [vmem:[%s811 + $0xa8] sm:$0xff]
      %v834 = vld [vmem:[%s811 + $0xb0] sm:$0xff]
      %v835 = vld [vmem:[%s811 + $0xb8] sm:$0xff]
      %v836 = vld [vmem:[%s811 + $0xc0] sm:$0xff]
      %v837 = vld [vmem:[%s811 + $0xc8] sm:$0xff]
      %v838 = vld [vmem:[%s811 + $0xd0] sm:$0xff]
      %v839 = vld [vmem:[%s811 + $0xd8] sm:$0xff]
      %v840 = vld [vmem:[%s811 + $0xe0] sm:$0xff]
      %v841 = vld [vmem:[%s811 + $0xe8] sm:$0xff]
      %v842 = vld [vmem:[%s811 + $0xf0] sm:$0xff]
      %v843 = vld [vmem:[%s811 + $0xf8] sm:$0xff]
      %v844 = vmax.f32 %v658, %v812
      %v845 = vmax.f32 %v659, %v813
      %v846 = vmax.f32 %v660, %v814
      %v847 = vmax.f32 %v661, %v815
      %v848 = vmax.f32 %v662, %v816
      %v849 = vmax.f32 %v663, %v817
      %v850 = vmax.f32 %v664, %v818
      %v851 = vmax.f32 %v665, %v819
      %v852 = vmax.f32 %v666, %v820
      %v853 = vmax.f32 %v667, %v821
      %v854 = vmax.f32 %v668, %v822
      %v855 = vmax.f32 %v669, %v823
      %v856 = vmax.f32 %v670, %v824
      %v857 = vmax.f32 %v671, %v825
      %v858 = vmax.f32 %v672, %v826
      %v859 = vmax.f32 %v673, %v827
      %v860 = vmax.f32 %v674, %v828
      %v861 = vmax.f32 %v675, %v829
      %v862 = vmax.f32 %v676, %v830
      %v863 = vmax.f32 %v677, %v831
      %v864 = vmax.f32 %v678, %v832
      %v865 = vmax.f32 %v679, %v833
      %v866 = vmax.f32 %v680, %v834
      %v867 = vmax.f32 %v681, %v835
      %v868 = vmax.f32 %v682, %v836
      %v869 = vmax.f32 %v683, %v837
      %v870 = vmax.f32 %v684, %v838
      %v871 = vmax.f32 %v685, %v839
      %v872 = vmax.f32 %v686, %v840
      %v873 = vmax.f32 %v687, %v841
      %v874 = vmax.f32 %v688, %v842
      %v875 = vmax.f32 %v689, %v843
      %s876 = scalar_lea.vmem [#allocation2], 48
      %v877 = vld [vmem:[%s876] sm:$0xff]
      %v878 = vld [vmem:[%s876 + $0x8] sm:$0xff]
      %v879 = vld [vmem:[%s876 + $0x10] sm:$0xff]
      %v880 = vld [vmem:[%s876 + $0x18] sm:$0xff]
      %v881 = vld [vmem:[%s876 + $0x20] sm:$0xff]
      %v882 = vld [vmem:[%s876 + $0x28] sm:$0xff]
      %v883 = vld [vmem:[%s876 + $0x30] sm:$0xff]
      %v884 = vld [vmem:[%s876 + $0x38] sm:$0xff]
      %v885 = vld [vmem:[%s876 + $0x40] sm:$0xff]
      %v886 = vld [vmem:[%s876 + $0x48] sm:$0xff]
      %v887 = vld [vmem:[%s876 + $0x50] sm:$0xff]
      %v888 = vld [vmem:[%s876 + $0x58] sm:$0xff]
      %v889 = vld [vmem:[%s876 + $0x60] sm:$0xff]
      %v890 = vld [vmem:[%s876 + $0x68] sm:$0xff]
      %v891 = vld [vmem:[%s876 + $0x70] sm:$0xff]
      %v892 = vld [vmem:[%s876 + $0x78] sm:$0xff]
      %v893 = vld [vmem:[%s876 + $0x80] sm:$0xff]
      %v894 = vld [vmem:[%s876 + $0x88] sm:$0xff]
      %v895 = vld [vmem:[%s876 + $0x90] sm:$0xff]
      %v896 = vld [vmem:[%s876 + $0x98] sm:$0xff]
      %v897 = vld [vmem:[%s876 + $0xa0] sm:$0xff]
      %v898 = vld [vmem:[%s876 + $0xa8] sm:$0xff]
      %v899 = vld [vmem:[%s876 + $0xb0] sm:$0xff]
      %v900 = vld [vmem:[%s876 + $0xb8] sm:$0xff]
      %v901 = vld [vmem:[%s876 + $0xc0] sm:$0xff]
      %v902 = vld [vmem:[%s876 + $0xc8] sm:$0xff]
      %v903 = vld [vmem:[%s876 + $0xd0] sm:$0xff]
      %v904 = vld [vmem:[%s876 + $0xd8] sm:$0xff]
      %v905 = vld [vmem:[%s876 + $0xe0] sm:$0xff]
      %v906 = vld [vmem:[%s876 + $0xe8] sm:$0xff]
      %v907 = vld [vmem:[%s876 + $0xf0] sm:$0xff]
      %v908 = vld [vmem:[%s876 + $0xf8] sm:$0xff]
      %v909 = vmax.f32 %v844, %v877
      %v910 = vmax.f32 %v845, %v878
      %v911 = vmax.f32 %v846, %v879
      %v912 = vmax.f32 %v847, %v880
      %v913 = vmax.f32 %v848, %v881
      %v914 = vmax.f32 %v849, %v882
      %v915 = vmax.f32 %v850, %v883
      %v916 = vmax.f32 %v851, %v884
      %v917 = vmax.f32 %v852, %v885
      %v918 = vmax.f32 %v853, %v886
      %v919 = vmax.f32 %v854, %v887
      %v920 = vmax.f32 %v855, %v888
      %v921 = vmax.f32 %v856, %v889
      %v922 = vmax.f32 %v857, %v890
      %v923 = vmax.f32 %v858, %v891
      %v924 = vmax.f32 %v859, %v892
      %v925 = vmax.f32 %v860, %v893
      %v926 = vmax.f32 %v861, %v894
      %v927 = vmax.f32 %v862, %v895
      %v928 = vmax.f32 %v863, %v896
      %v929 = vmax.f32 %v864, %v897
      %v930 = vmax.f32 %v865, %v898
      %v931 = vmax.f32 %v866, %v899
      %v932 = vmax.f32 %v867, %v900
      %v933 = vmax.f32 %v868, %v901
      %v934 = vmax.f32 %v869, %v902
      %v935 = vmax.f32 %v870, %v903
      %v936 = vmax.f32 %v871, %v904
      %v937 = vmax.f32 %v872, %v905
      %v938 = vmax.f32 %v873, %v906
      %v939 = vmax.f32 %v874, %v907
      %v940 = vmax.f32 %v875, %v908
      %v941 = vld [vmem:[#allocation2] sm:$0xff]
      %v942 = vld [vmem:[#allocation2 + $0x8] sm:$0xff]
      %v943 = vld [vmem:[#allocation2 + $0x10] sm:$0xff]
      %v944 = vld [vmem:[#allocation2 + $0x18] sm:$0xff]
      %v945 = vld [vmem:[#allocation2 + $0x20] sm:$0xff]
      %v946 = vld [vmem:[#allocation2 + $0x28] sm:$0xff]
      %v947 = vld [vmem:[#allocation2 + $0x30] sm:$0xff]
      %v948 = vld [vmem:[#allocation2 + $0x38] sm:$0xff]
      %v949 = vld [vmem:[#allocation2 + $0x40] sm:$0xff]
      %v950 = vld [vmem:[#allocation2 + $0x48] sm:$0xff]
      %v951 = vld [vmem:[#allocation2 + $0x50] sm:$0xff]
      %v952 = vld [vmem:[#allocation2 + $0x58] sm:$0xff]
      %v953 = vld [vmem:[#allocation2 + $0x60] sm:$0xff]
      %v954 = vld [vmem:[#allocation2 + $0x68] sm:$0xff]
      %v955 = vld [vmem:[#allocation2 + $0x70] sm:$0xff]
      %v956 = vld [vmem:[#allocation2 + $0x78] sm:$0xff]
      %v957 = vld [vmem:[#allocation2 + $0x80] sm:$0xff]
      %v958 = vld [vmem:[#allocation2 + $0x88] sm:$0xff]
      %v959 = vld [vmem:[#allocation2 + $0x90] sm:$0xff]
      %v960 = vld [vmem:[#allocation2 + $0x98] sm:$0xff]
      %v961 = vld [vmem:[#allocation2 + $0xa0] sm:$0xff]
      %v962 = vld [vmem:[#allocation2 + $0xa8] sm:$0xff]
      %v963 = vld [vmem:[#allocation2 + $0xb0] sm:$0xff]
      %v964 = vld [vmem:[#allocation2 + $0xb8] sm:$0xff]
      %v965 = vld [vmem:[#allocation2 + $0xc0] sm:$0xff]
      %v966 = vld [vmem:[#allocation2 + $0xc8] sm:$0xff]
      %v967 = vld [vmem:[#allocation2 + $0xd0] sm:$0xff]
      %v968 = vld [vmem:[#allocation2 + $0xd8] sm:$0xff]
      %v969 = vld [vmem:[#allocation2 + $0xe0] sm:$0xff]
      %v970 = vld [vmem:[#allocation2 + $0xe8] sm:$0xff]
      %v971 = vld [vmem:[#allocation2 + $0xf0] sm:$0xff]
      %v972 = vld [vmem:[#allocation2 + $0xf8] sm:$0xff]
      %v973 = vmax.f32 %v909, %v941
      %v974 = vmax.f32 %v910, %v942
      %v975 = vmax.f32 %v911, %v943
      %v976 = vmax.f32 %v912, %v944
      %v977 = vmax.f32 %v913, %v945
      %v978 = vmax.f32 %v914, %v946
      %v979 = vmax.f32 %v915, %v947
      %v980 = vmax.f32 %v916, %v948
      %v981 = vmax.f32 %v917, %v949
      %v982 = vmax.f32 %v918, %v950
      %v983 = vmax.f32 %v919, %v951
      %v984 = vmax.f32 %v920, %v952
      %v985 = vmax.f32 %v921, %v953
      %v986 = vmax.f32 %v922, %v954
      %v987 = vmax.f32 %v923, %v955
      %v988 = vmax.f32 %v924, %v956
      %v989 = vmax.f32 %v925, %v957
      %v990 = vmax.f32 %v926, %v958
      %v991 = vmax.f32 %v927, %v959
      %v992 = vmax.f32 %v928, %v960
      %v993 = vmax.f32 %v929, %v961
      %v994 = vmax.f32 %v930, %v962
      %v995 = vmax.f32 %v931, %v963
      %v996 = vmax.f32 %v932, %v964
      %v997 = vmax.f32 %v933, %v965
      %v998 = vmax.f32 %v934, %v966
      %v999 = vmax.f32 %v935, %v967
      %v1000 = vmax.f32 %v936, %v968
      %v1001 = vmax.f32 %v937, %v969
      %v1002 = vmax.f32 %v938, %v970
      %v1003 = vmax.f32 %v939, %v971
      %v1004 = vmax.f32 %v940, %v972
      %s1005 = scalar_lea.vmem [#allocation2], 64
      %v1006 = vld [vmem:[%s1005] sm:$0xff]
      %v1007 = vld [vmem:[%s1005 + $0x8] sm:$0xff]
      %v1008 = vld [vmem:[%s1005 + $0x10] sm:$0xff]
      %v1009 = vld [vmem:[%s1005 + $0x18] sm:$0xff]
      %v1010 = vld [vmem:[%s1005 + $0x20] sm:$0xff]
      %v1011 = vld [vmem:[%s1005 + $0x28] sm:$0xff]
      %v1012 = vld [vmem:[%s1005 + $0x30] sm:$0xff]
      %v1013 = vld [vmem:[%s1005 + $0x38] sm:$0xff]
      %v1014 = vld [vmem:[%s1005 + $0x40] sm:$0xff]
      %v1015 = vld [vmem:[%s1005 + $0x48] sm:$0xff]
      %v1016 = vld [vmem:[%s1005 + $0x50] sm:$0xff]
      %v1017 = vld [vmem:[%s1005 + $0x58] sm:$0xff]
      %v1018 = vld [vmem:[%s1005 + $0x60] sm:$0xff]
      %v1019 = vld [vmem:[%s1005 + $0x68] sm:$0xff]
      %v1020 = vld [vmem:[%s1005 + $0x70] sm:$0xff]
      %v1021 = vld [vmem:[%s1005 + $0x78] sm:$0xff]
      %v1022 = vld [vmem:[%s1005 + $0x80] sm:$0xff]
      %v1023 = vld [vmem:[%s1005 + $0x88] sm:$0xff]
      %v1024 = vld [vmem:[%s1005 + $0x90] sm:$0xff]
      %v1025 = vld [vmem:[%s1005 + $0x98] sm:$0xff]
      %v1026 = vld [vmem:[%s1005 + $0xa0] sm:$0xff]
      %v1027 = vld [vmem:[%s1005 + $0xa8] sm:$0xff]
      %v1028 = vld [vmem:[%s1005 + $0xb0] sm:$0xff]
      %v1029 = vld [vmem:[%s1005 + $0xb8] sm:$0xff]
      %v1030 = vld [vmem:[%s1005 + $0xc0] sm:$0xff]
      %v1031 = vld [vmem:[%s1005 + $0xc8] sm:$0xff]
      %v1032 = vld [vmem:[%s1005 + $0xd0] sm:$0xff]
      %v1033 = vld [vmem:[%s1005 + $0xd8] sm:$0xff]
      %v1034 = vld [vmem:[%s1005 + $0xe0] sm:$0xff]
      %v1035 = vld [vmem:[%s1005 + $0xe8] sm:$0xff]
      %v1036 = vld [vmem:[%s1005 + $0xf0] sm:$0xff]
      %v1037 = vld [vmem:[%s1005 + $0xf8] sm:$0xff]
      %v1038 = vmax.f32 %v973, %v1006
      %v1039 = vmax.f32 %v974, %v1007
      %v1040 = vmax.f32 %v975, %v1008
      %v1041 = vmax.f32 %v976, %v1009
      %v1042 = vmax.f32 %v977, %v1010
      %v1043 = vmax.f32 %v978, %v1011
      %v1044 = vmax.f32 %v979, %v1012
      %v1045 = vmax.f32 %v980, %v1013
      %v1046 = vmax.f32 %v981, %v1014
      %v1047 = vmax.f32 %v982, %v1015
      %v1048 = vmax.f32 %v983, %v1016
      %v1049 = vmax.f32 %v984, %v1017
      %v1050 = vmax.f32 %v985, %v1018
      %v1051 = vmax.f32 %v986, %v1019
      %v1052 = vmax.f32 %v987, %v1020
      %v1053 = vmax.f32 %v988, %v1021
      %v1054 = vmax.f32 %v989, %v1022
      %v1055 = vmax.f32 %v990, %v1023
      %v1056 = vmax.f32 %v991, %v1024
      %v1057 = vmax.f32 %v992, %v1025
      %v1058 = vmax.f32 %v993, %v1026
      %v1059 = vmax.f32 %v994, %v1027
      %v1060 = vmax.f32 %v995, %v1028
      %v1061 = vmax.f32 %v996, %v1029
      %v1062 = vmax.f32 %v997, %v1030
      %v1063 = vmax.f32 %v998, %v1031
      %v1064 = vmax.f32 %v999, %v1032
      %v1065 = vmax.f32 %v1000, %v1033
      %v1066 = vmax.f32 %v1001, %v1034
      %v1067 = vmax.f32 %v1002, %v1035
      %v1068 = vmax.f32 %v1003, %v1036
      %v1069 = vmax.f32 %v1004, %v1037
      %v1070 = vrot.slane %v1038, 7
      %v1071 = vrot.slane %v1040, 7
      %v1072 = vrot.slane %v1042, 7
      %v1073 = vrot.slane %v1044, 7
      %v1074 = vrot.slane %v1046, 7
      %v1075 = vrot.slane %v1048, 7
      %v1076 = vrot.slane %v1050, 7
      %v1077 = vrot.slane %v1052, 7
      %v1078 = vrot.slane %v1054, 7
      %v1079 = vrot.slane %v1056, 7
      %v1080 = vrot.slane %v1058, 7
      %v1081 = vrot.slane %v1060, 7
      %v1082 = vrot.slane %v1062, 7
      %v1083 = vrot.slane %v1064, 7
      %v1084 = vrot.slane %v1066, 7
      %v1085 = vrot.slane %v1068, 7
      %v1086 = vrot.slane %v1039, 7
      %v1087 = vrot.slane %v1041, 7
      %v1088 = vrot.slane %v1043, 7
      %v1089 = vrot.slane %v1045, 7
      %v1090 = vrot.slane %v1047, 7
      %v1091 = vrot.slane %v1049, 7
      %v1092 = vrot.slane %v1051, 7
      %v1093 = vrot.slane %v1053, 7
      %v1094 = vrot.slane %v1055, 7
      %v1095 = vrot.slane %v1057, 7
      %v1096 = vrot.slane %v1059, 7
      %v1097 = vrot.slane %v1061, 7
      %v1098 = vrot.slane %v1063, 7
      %v1099 = vrot.slane %v1065, 7
      %v1100 = vrot.slane %v1067, 7
      %v1101 = vrot.slane %v1069, 7
      %v1102 = vsel %vm705, %v1070, %v1086
      %v1103 = vsel %vm705, %v1071, %v1087
      %v1104 = vsel %vm705, %v1072, %v1088
      %v1105 = vsel %vm705, %v1073, %v1089
      %v1106 = vsel %vm705, %v1074, %v1090
      %v1107 = vsel %vm705, %v1075, %v1091
      %v1108 = vsel %vm705, %v1076, %v1092
      %v1109 = vsel %vm705, %v1077, %v1093
      %v1110 = vsel %vm705, %v1078, %v1094
      %v1111 = vsel %vm705, %v1079, %v1095
      %v1112 = vsel %vm705, %v1080, %v1096
      %v1113 = vsel %vm705, %v1081, %v1097
      %v1114 = vsel %vm705, %v1082, %v1098
      %v1115 = vsel %vm705, %v1083, %v1099
      %v1116 = vsel %vm705, %v1084, %v1100
      %v1117 = vsel %vm705, %v1085, %v1101
      %v1118 = vsel %vm705, %v1086, %v1070
      %v1119 = vsel %vm705, %v1087, %v1071
      %v1120 = vsel %vm705, %v1088, %v1072
      %v1121 = vsel %vm705, %v1089, %v1073
      %v1122 = vsel %vm705, %v1090, %v1074
      %v1123 = vsel %vm705, %v1091, %v1075
      %v1124 = vsel %vm705, %v1092, %v1076
      %v1125 = vsel %vm705, %v1093, %v1077
      %v1126 = vsel %vm705, %v1094, %v1078
      %v1127 = vsel %vm705, %v1095, %v1079
      %v1128 = vsel %vm705, %v1096, %v1080
      %v1129 = vsel %vm705, %v1097, %v1081
      %v1130 = vsel %vm705, %v1098, %v1082
      %v1131 = vsel %vm705, %v1099, %v1083
      %v1132 = vsel %vm705, %v1100, %v1084
      %v1133 = vsel %vm705, %v1101, %v1085
      %v1134 = vsel %vm716, 1, 0
      %v1135 = vsel %vm717, 1, 0
      %vm1136 = vcmp.eq.s32.totalorder %v1134, 1
      %vm1137 = vcmp.eq.s32.totalorder %v1135, 1
      %v1138 = vsel %vm1136, %v1118, -3.4028235e+38
      %v1139 = vsel %vm1137, %v1102, -3.4028235e+38
      %v1140 = vsel %vm1136, %v1119, -3.4028235e+38
      %v1141 = vsel %vm1137, %v1103, -3.4028235e+38
      %v1142 = vsel %vm1136, %v1120, -3.4028235e+38
      %v1143 = vsel %vm1137, %v1104, -3.4028235e+38
      %v1144 = vsel %vm1136, %v1121, -3.4028235e+38
      %v1145 = vsel %vm1137, %v1105, -3.4028235e+38
      %v1146 = vsel %vm1136, %v1122, -3.4028235e+38
      %v1147 = vsel %vm1137, %v1106, -3.4028235e+38
      %v1148 = vsel %vm1136, %v1123, -3.4028235e+38
      %v1149 = vsel %vm1137, %v1107, -3.4028235e+38
      %v1150 = vsel %vm1136, %v1124, -3.4028235e+38
      %v1151 = vsel %vm1137, %v1108, -3.4028235e+38
      %v1152 = vsel %vm1136, %v1125, -3.4028235e+38
      %v1153 = vsel %vm1137, %v1109, -3.4028235e+38
      %v1154 = vsel %vm1136, %v1126, -3.4028235e+38
      %v1155 = vsel %vm1137, %v1110, -3.4028235e+38
      %v1156 = vsel %vm1136, %v1127, -3.4028235e+38
      %v1157 = vsel %vm1137, %v1111, -3.4028235e+38
      %v1158 = vsel %vm1136, %v1128, -3.4028235e+38
      %v1159 = vsel %vm1137, %v1112, -3.4028235e+38
      %v1160 = vsel %vm1136, %v1129, -3.4028235e+38
      %v1161 = vsel %vm1137, %v1113, -3.4028235e+38
      %v1162 = vsel %vm1136, %v1130, -3.4028235e+38
      %v1163 = vsel %vm1137, %v1114, -3.4028235e+38
      %v1164 = vsel %vm1136, %v1131, -3.4028235e+38
      %v1165 = vsel %vm1137, %v1115, -3.4028235e+38
      %v1166 = vsel %vm1136, %v1132, -3.4028235e+38
      %v1167 = vsel %vm1137, %v1116, -3.4028235e+38
      %v1168 = vsel %vm1136, %v1133, -3.4028235e+38
      %v1169 = vsel %vm1137, %v1117, -3.4028235e+38
      %v1170 = vmax.f32 %v1038, %v1138
      %v1171 = vmax.f32 %v1039, %v1139
      %v1172 = vmax.f32 %v1040, %v1140
      %v1173 = vmax.f32 %v1041, %v1141
      %v1174 = vmax.f32 %v1042, %v1142
      %v1175 = vmax.f32 %v1043, %v1143
      %v1176 = vmax.f32 %v1044, %v1144
      %v1177 = vmax.f32 %v1045, %v1145
      %v1178 = vmax.f32 %v1046, %v1146
      %v1179 = vmax.f32 %v1047, %v1147
      %v1180 = vmax.f32 %v1048, %v1148
      %v1181 = vmax.f32 %v1049, %v1149
      %v1182 = vmax.f32 %v1050, %v1150
      %v1183 = vmax.f32 %v1051, %v1151
      %v1184 = vmax.f32 %v1052, %v1152
      %v1185 = vmax.f32 %v1053, %v1153
      %v1186 = vmax.f32 %v1054, %v1154
      %v1187 = vmax.f32 %v1055, %v1155
      %v1188 = vmax.f32 %v1056, %v1156
      %v1189 = vmax.f32 %v1057, %v1157
      %v1190 = vmax.f32 %v1058, %v1158
      %v1191 = vmax.f32 %v1059, %v1159
      %v1192 = vmax.f32 %v1060, %v1160
      %v1193 = vmax.f32 %v1061, %v1161
      %v1194 = vmax.f32 %v1062, %v1162
      %v1195 = vmax.f32 %v1063, %v1163
      %v1196 = vmax.f32 %v1064, %v1164
      %v1197 = vmax.f32 %v1065, %v1165
      %v1198 = vmax.f32 %v1066, %v1166
      %v1199 = vmax.f32 %v1067, %v1167
      %v1200 = vmax.f32 %v1068, %v1168
      %v1201 = vmax.f32 %v1069, %v1169
      %v1202 = vrot.slane %v1038, 1
      %v1203 = vrot.slane %v1040, 1
      %v1204 = vrot.slane %v1042, 1
      %v1205 = vrot.slane %v1044, 1
      %v1206 = vrot.slane %v1046, 1
      %v1207 = vrot.slane %v1048, 1
      %v1208 = vrot.slane %v1050, 1
      %v1209 = vrot.slane %v1052, 1
      %v1210 = vrot.slane %v1054, 1
      %v1211 = vrot.slane %v1056, 1
      %v1212 = vrot.slane %v1058, 1
      %v1213 = vrot.slane %v1060, 1
      %v1214 = vrot.slane %v1062, 1
      %v1215 = vrot.slane %v1064, 1
      %v1216 = vrot.slane %v1066, 1
      %v1217 = vrot.slane %v1068, 1
      %v1218 = vrot.slane %v1039, 1
      %v1219 = vrot.slane %v1041, 1
      %v1220 = vrot.slane %v1043, 1
      %v1221 = vrot.slane %v1045, 1
      %v1222 = vrot.slane %v1047, 1
      %v1223 = vrot.slane %v1049, 1
      %v1224 = vrot.slane %v1051, 1
      %v1225 = vrot.slane %v1053, 1
      %v1226 = vrot.slane %v1055, 1
      %v1227 = vrot.slane %v1057, 1
      %v1228 = vrot.slane %v1059, 1
      %v1229 = vrot.slane %v1061, 1
      %v1230 = vrot.slane %v1063, 1
      %v1231 = vrot.slane %v1065, 1
      %v1232 = vrot.slane %v1067, 1
      %v1233 = vrot.slane %v1069, 1
      %v1234 = vsel %vm720, %v1202, %v1218
      %v1235 = vsel %vm720, %v1203, %v1219
      %v1236 = vsel %vm720, %v1204, %v1220
      %v1237 = vsel %vm720, %v1205, %v1221
      %v1238 = vsel %vm720, %v1206, %v1222
      %v1239 = vsel %vm720, %v1207, %v1223
      %v1240 = vsel %vm720, %v1208, %v1224
      %v1241 = vsel %vm720, %v1209, %v1225
      %v1242 = vsel %vm720, %v1210, %v1226
      %v1243 = vsel %vm720, %v1211, %v1227
      %v1244 = vsel %vm720, %v1212, %v1228
      %v1245 = vsel %vm720, %v1213, %v1229
      %v1246 = vsel %vm720, %v1214, %v1230
      %v1247 = vsel %vm720, %v1215, %v1231
      %v1248 = vsel %vm720, %v1216, %v1232
      %v1249 = vsel %vm720, %v1217, %v1233
      %v1250 = vsel %vm720, %v1218, %v1202
      %v1251 = vsel %vm720, %v1219, %v1203
      %v1252 = vsel %vm720, %v1220, %v1204
      %v1253 = vsel %vm720, %v1221, %v1205
      %v1254 = vsel %vm720, %v1222, %v1206
      %v1255 = vsel %vm720, %v1223, %v1207
      %v1256 = vsel %vm720, %v1224, %v1208
      %v1257 = vsel %vm720, %v1225, %v1209
      %v1258 = vsel %vm720, %v1226, %v1210
      %v1259 = vsel %vm720, %v1227, %v1211
      %v1260 = vsel %vm720, %v1228, %v1212
      %v1261 = vsel %vm720, %v1229, %v1213
      %v1262 = vsel %vm720, %v1230, %v1214
      %v1263 = vsel %vm720, %v1231, %v1215
      %v1264 = vsel %vm720, %v1232, %v1216
      %v1265 = vsel %vm720, %v1233, %v1217
      %v1266 = vsel %vm731, 1, 0
      %v1267 = vsel %vm732, 1, 0
      %vm1268 = vcmp.eq.s32.totalorder %v1266, 1
      %vm1269 = vcmp.eq.s32.totalorder %v1267, 1
      %v1270 = vsel %vm1268, %v1234, -3.4028235e+38
      %v1271 = vsel %vm1269, %v1250, -3.4028235e+38
      %v1272 = vsel %vm1268, %v1235, -3.4028235e+38
      %v1273 = vsel %vm1269, %v1251, -3.4028235e+38
      %v1274 = vsel %vm1268, %v1236, -3.4028235e+38
      %v1275 = vsel %vm1269, %v1252, -3.4028235e+38
      %v1276 = vsel %vm1268, %v1237, -3.4028235e+38
      %v1277 = vsel %vm1269, %v1253, -3.4028235e+38
      %v1278 = vsel %vm1268, %v1238, -3.4028235e+38
      %v1279 = vsel %vm1269, %v1254, -3.4028235e+38
      %v1280 = vsel %vm1268, %v1239, -3.4028235e+38
      %v1281 = vsel %vm1269, %v1255, -3.4028235e+38
      %v1282 = vsel %vm1268, %v1240, -3.4028235e+38
      %v1283 = vsel %vm1269, %v1256, -3.4028235e+38
      %v1284 = vsel %vm1268, %v1241, -3.4028235e+38
      %v1285 = vsel %vm1269, %v1257, -3.4028235e+38
      %v1286 = vsel %vm1268, %v1242, -3.4028235e+38
      %v1287 = vsel %vm1269, %v1258, -3.4028235e+38
      %v1288 = vsel %vm1268, %v1243, -3.4028235e+38
      %v1289 = vsel %vm1269, %v1259, -3.4028235e+38
      %v1290 = vsel %vm1268, %v1244, -3.4028235e+38
      %v1291 = vsel %vm1269, %v1260, -3.4028235e+38
      %v1292 = vsel %vm1268, %v1245, -3.4028235e+38
      %v1293 = vsel %vm1269, %v1261, -3.4028235e+38
      %v1294 = vsel %vm1268, %v1246, -3.4028235e+38
      %v1295 = vsel %vm1269, %v1262, -3.4028235e+38
      %v1296 = vsel %vm1268, %v1247, -3.4028235e+38
      %v1297 = vsel %vm1269, %v1263, -3.4028235e+38
      %v1298 = vsel %vm1268, %v1248, -3.4028235e+38
      %v1299 = vsel %vm1269, %v1264, -3.4028235e+38
      %v1300 = vsel %vm1268, %v1249, -3.4028235e+38
      %v1301 = vsel %vm1269, %v1265, -3.4028235e+38
      %v1302 = vmax.f32 %v1170, %v1270
      %v1303 = vmax.f32 %v1171, %v1271
      %v1304 = vmax.f32 %v1172, %v1272
      %v1305 = vmax.f32 %v1173, %v1273
      %v1306 = vmax.f32 %v1174, %v1274
      %v1307 = vmax.f32 %v1175, %v1275
      %v1308 = vmax.f32 %v1176, %v1276
      %v1309 = vmax.f32 %v1177, %v1277
      %v1310 = vmax.f32 %v1178, %v1278
      %v1311 = vmax.f32 %v1179, %v1279
      %v1312 = vmax.f32 %v1180, %v1280
      %v1313 = vmax.f32 %v1181, %v1281
      %v1314 = vmax.f32 %v1182, %v1282
      %v1315 = vmax.f32 %v1183, %v1283
      %v1316 = vmax.f32 %v1184, %v1284
      %v1317 = vmax.f32 %v1185, %v1285
      %v1318 = vmax.f32 %v1186, %v1286
      %v1319 = vmax.f32 %v1187, %v1287
      %v1320 = vmax.f32 %v1188, %v1288
      %v1321 = vmax.f32 %v1189, %v1289
      %v1322 = vmax.f32 %v1190, %v1290
      %v1323 = vmax.f32 %v1191, %v1291
      %v1324 = vmax.f32 %v1192, %v1292
      %v1325 = vmax.f32 %v1193, %v1293
      %v1326 = vmax.f32 %v1194, %v1294
      %v1327 = vmax.f32 %v1195, %v1295
      %v1328 = vmax.f32 %v1196, %v1296
      %v1329 = vmax.f32 %v1197, %v1297
      %v1330 = vmax.f32 %v1198, %v1298
      %v1331 = vmax.f32 %v1199, %v1299
      %v1332 = vmax.f32 %v1200, %v1300
      %v1333 = vmax.f32 %v1201, %v1301
      %v1334 = vrot.slane %v1038, 6
      %v1335 = vrot.slane %v1040, 6
      %v1336 = vrot.slane %v1042, 6
      %v1337 = vrot.slane %v1044, 6
      %v1338 = vrot.slane %v1046, 6
      %v1339 = vrot.slane %v1048, 6
      %v1340 = vrot.slane %v1050, 6
      %v1341 = vrot.slane %v1052, 6
      %v1342 = vrot.slane %v1054, 6
      %v1343 = vrot.slane %v1056, 6
      %v1344 = vrot.slane %v1058, 6
      %v1345 = vrot.slane %v1060, 6
      %v1346 = vrot.slane %v1062, 6
      %v1347 = vrot.slane %v1064, 6
      %v1348 = vrot.slane %v1066, 6
      %v1349 = vrot.slane %v1068, 6
      %v1350 = vrot.slane %v1039, 6
      %v1351 = vrot.slane %v1041, 6
      %v1352 = vrot.slane %v1043, 6
      %v1353 = vrot.slane %v1045, 6
      %v1354 = vrot.slane %v1047, 6
      %v1355 = vrot.slane %v1049, 6
      %v1356 = vrot.slane %v1051, 6
      %v1357 = vrot.slane %v1053, 6
      %v1358 = vrot.slane %v1055, 6
      %v1359 = vrot.slane %v1057, 6
      %v1360 = vrot.slane %v1059, 6
      %v1361 = vrot.slane %v1061, 6
      %v1362 = vrot.slane %v1063, 6
      %v1363 = vrot.slane %v1065, 6
      %v1364 = vrot.slane %v1067, 6
      %v1365 = vrot.slane %v1069, 6
      %v1366 = vsel %vm735, %v1334, %v1350
      %v1367 = vsel %vm735, %v1335, %v1351
      %v1368 = vsel %vm735, %v1336, %v1352
      %v1369 = vsel %vm735, %v1337, %v1353
      %v1370 = vsel %vm735, %v1338, %v1354
      %v1371 = vsel %vm735, %v1339, %v1355
      %v1372 = vsel %vm735, %v1340, %v1356
      %v1373 = vsel %vm735, %v1341, %v1357
      %v1374 = vsel %vm735, %v1342, %v1358
      %v1375 = vsel %vm735, %v1343, %v1359
      %v1376 = vsel %vm735, %v1344, %v1360
      %v1377 = vsel %vm735, %v1345, %v1361
      %v1378 = vsel %vm735, %v1346, %v1362
      %v1379 = vsel %vm735, %v1347, %v1363
      %v1380 = vsel %vm735, %v1348, %v1364
      %v1381 = vsel %vm735, %v1349, %v1365
      %v1382 = vsel %vm735, %v1350, %v1334
      %v1383 = vsel %vm735, %v1351, %v1335
      %v1384 = vsel %vm735, %v1352, %v1336
      %v1385 = vsel %vm735, %v1353, %v1337
      %v1386 = vsel %vm735, %v1354, %v1338
      %v1387 = vsel %vm735, %v1355, %v1339
      %v1388 = vsel %vm735, %v1356, %v1340
      %v1389 = vsel %vm735, %v1357, %v1341
      %v1390 = vsel %vm735, %v1358, %v1342
      %v1391 = vsel %vm735, %v1359, %v1343
      %v1392 = vsel %vm735, %v1360, %v1344
      %v1393 = vsel %vm735, %v1361, %v1345
      %v1394 = vsel %vm735, %v1362, %v1346
      %v1395 = vsel %vm735, %v1363, %v1347
      %v1396 = vsel %vm735, %v1364, %v1348
      %v1397 = vsel %vm735, %v1365, %v1349
      %v1398 = vsel %vm746, 1, 0
      %v1399 = vsel %vm747, 1, 0
      %vm1400 = vcmp.eq.s32.totalorder %v1398, 1
      %vm1401 = vcmp.eq.s32.totalorder %v1399, 1
      %v1402 = vsel %vm1400, %v1382, -3.4028235e+38
      %v1403 = vsel %vm1401, %v1366, -3.4028235e+38
      %v1404 = vsel %vm1400, %v1383, -3.4028235e+38
      %v1405 = vsel %vm1401, %v1367, -3.4028235e+38
      %v1406 = vsel %vm1400, %v1384, -3.4028235e+38
      %v1407 = vsel %vm1401, %v1368, -3.4028235e+38
      %v1408 = vsel %vm1400, %v1385, -3.4028235e+38
      %v1409 = vsel %vm1401, %v1369, -3.4028235e+38
      %v1410 = vsel %vm1400, %v1386, -3.4028235e+38
      %v1411 = vsel %vm1401, %v1370, -3.4028235e+38
      %v1412 = vsel %vm1400, %v1387, -3.4028235e+38
      %v1413 = vsel %vm1401, %v1371, -3.4028235e+38
      %v1414 = vsel %vm1400, %v1388, -3.4028235e+38
      %v1415 = vsel %vm1401, %v1372, -3.4028235e+38
      %v1416 = vsel %vm1400, %v1389, -3.4028235e+38
      %v1417 = vsel %vm1401, %v1373, -3.4028235e+38
      %v1418 = vsel %vm1400, %v1390, -3.4028235e+38
      %v1419 = vsel %vm1401, %v1374, -3.4028235e+38
      %v1420 = vsel %vm1400, %v1391, -3.4028235e+38
      %v1421 = vsel %vm1401, %v1375, -3.4028235e+38
      %v1422 = vsel %vm1400, %v1392, -3.4028235e+38
      %v1423 = vsel %vm1401, %v1376, -3.4028235e+38
      %v1424 = vsel %vm1400, %v1393, -3.4028235e+38
      %v1425 = vsel %vm1401, %v1377, -3.4028235e+38
      %v1426 = vsel %vm1400, %v1394, -3.4028235e+38
      %v1427 = vsel %vm1401, %v1378, -3.4028235e+38
      %v1428 = vsel %vm1400, %v1395, -3.4028235e+38
      %v1429 = vsel %vm1401, %v1379, -3.4028235e+38
      %v1430 = vsel %vm1400, %v1396, -3.4028235e+38
      %v1431 = vsel %vm1401, %v1380, -3.4028235e+38
      %v1432 = vsel %vm1400, %v1397, -3.4028235e+38
      %v1433 = vsel %vm1401, %v1381, -3.4028235e+38
      %v1434 = vmax.f32 %v1302, %v1402
      %v1435 = vmax.f32 %v1303, %v1403
      %v1436 = vmax.f32 %v1304, %v1404
      %v1437 = vmax.f32 %v1305, %v1405
      %v1438 = vmax.f32 %v1306, %v1406
      %v1439 = vmax.f32 %v1307, %v1407
      %v1440 = vmax.f32 %v1308, %v1408
      %v1441 = vmax.f32 %v1309, %v1409
      %v1442 = vmax.f32 %v1310, %v1410
      %v1443 = vmax.f32 %v1311, %v1411
      %v1444 = vmax.f32 %v1312, %v1412
      %v1445 = vmax.f32 %v1313, %v1413
      %v1446 = vmax.f32 %v1314, %v1414
      %v1447 = vmax.f32 %v1315, %v1415
      %v1448 = vmax.f32 %v1316, %v1416
      %v1449 = vmax.f32 %v1317, %v1417
      %v1450 = vmax.f32 %v1318, %v1418
      %v1451 = vmax.f32 %v1319, %v1419
      %v1452 = vmax.f32 %v1320, %v1420
      %v1453 = vmax.f32 %v1321, %v1421
      %v1454 = vmax.f32 %v1322, %v1422
      %v1455 = vmax.f32 %v1323, %v1423
      %v1456 = vmax.f32 %v1324, %v1424
      %v1457 = vmax.f32 %v1325, %v1425
      %v1458 = vmax.f32 %v1326, %v1426
      %v1459 = vmax.f32 %v1327, %v1427
      %v1460 = vmax.f32 %v1328, %v1428
      %v1461 = vmax.f32 %v1329, %v1429
      %v1462 = vmax.f32 %v1330, %v1430
      %v1463 = vmax.f32 %v1331, %v1431
      %v1464 = vmax.f32 %v1332, %v1432
      %v1465 = vmax.f32 %v1333, %v1433
      %v1466 = vrot.slane %v1038, 2
      %v1467 = vrot.slane %v1040, 2
      %v1468 = vrot.slane %v1042, 2
      %v1469 = vrot.slane %v1044, 2
      %v1470 = vrot.slane %v1046, 2
      %v1471 = vrot.slane %v1048, 2
      %v1472 = vrot.slane %v1050, 2
      %v1473 = vrot.slane %v1052, 2
      %v1474 = vrot.slane %v1054, 2
      %v1475 = vrot.slane %v1056, 2
      %v1476 = vrot.slane %v1058, 2
      %v1477 = vrot.slane %v1060, 2
      %v1478 = vrot.slane %v1062, 2
      %v1479 = vrot.slane %v1064, 2
      %v1480 = vrot.slane %v1066, 2
      %v1481 = vrot.slane %v1068, 2
      %v1482 = vrot.slane %v1039, 2
      %v1483 = vrot.slane %v1041, 2
      %v1484 = vrot.slane %v1043, 2
      %v1485 = vrot.slane %v1045, 2
      %v1486 = vrot.slane %v1047, 2
      %v1487 = vrot.slane %v1049, 2
      %v1488 = vrot.slane %v1051, 2
      %v1489 = vrot.slane %v1053, 2
      %v1490 = vrot.slane %v1055, 2
      %v1491 = vrot.slane %v1057, 2
      %v1492 = vrot.slane %v1059, 2
      %v1493 = vrot.slane %v1061, 2
      %v1494 = vrot.slane %v1063, 2
      %v1495 = vrot.slane %v1065, 2
      %v1496 = vrot.slane %v1067, 2
      %v1497 = vrot.slane %v1069, 2
      %v1498 = vsel %vm750, %v1466, %v1482
      %v1499 = vsel %vm750, %v1467, %v1483
      %v1500 = vsel %vm750, %v1468, %v1484
      %v1501 = vsel %vm750, %v1469, %v1485
      %v1502 = vsel %vm750, %v1470, %v1486
      %v1503 = vsel %vm750, %v1471, %v1487
      %v1504 = vsel %vm750, %v1472, %v1488
      %v1505 = vsel %vm750, %v1473, %v1489
      %v1506 = vsel %vm750, %v1474, %v1490
      %v1507 = vsel %vm750, %v1475, %v1491
      %v1508 = vsel %vm750, %v1476, %v1492
      %v1509 = vsel %vm750, %v1477, %v1493
      %v1510 = vsel %vm750, %v1478, %v1494
      %v1511 = vsel %vm750, %v1479, %v1495
      %v1512 = vsel %vm750, %v1480, %v1496
      %v1513 = vsel %vm750, %v1481, %v1497
      %v1514 = vsel %vm750, %v1482, %v1466
      %v1515 = vsel %vm750, %v1483, %v1467
      %v1516 = vsel %vm750, %v1484, %v1468
      %v1517 = vsel %vm750, %v1485, %v1469
      %v1518 = vsel %vm750, %v1486, %v1470
      %v1519 = vsel %vm750, %v1487, %v1471
      %v1520 = vsel %vm750, %v1488, %v1472
      %v1521 = vsel %vm750, %v1489, %v1473
      %v1522 = vsel %vm750, %v1490, %v1474
      %v1523 = vsel %vm750, %v1491, %v1475
      %v1524 = vsel %vm750, %v1492, %v1476
      %v1525 = vsel %vm750, %v1493, %v1477
      %v1526 = vsel %vm750, %v1494, %v1478
      %v1527 = vsel %vm750, %v1495, %v1479
      %v1528 = vsel %vm750, %v1496, %v1480
      %v1529 = vsel %vm750, %v1497, %v1481
      %v1530 = vsel %vm761, 1, 0
      %v1531 = vsel %vm762, 1, 0
      %vm1532 = vcmp.eq.s32.totalorder %v1530, 1
      %vm1533 = vcmp.eq.s32.totalorder %v1531, 1
      %v1534 = vsel %vm1532, %v1498, -3.4028235e+38
      %v1535 = vsel %vm1533, %v1514, -3.4028235e+38
      %v1536 = vsel %vm1532, %v1499, -3.4028235e+38
      %v1537 = vsel %vm1533, %v1515, -3.4028235e+38
      %v1538 = vsel %vm1532, %v1500, -3.4028235e+38
      %v1539 = vsel %vm1533, %v1516, -3.4028235e+38
      %v1540 = vsel %vm1532, %v1501, -3.4028235e+38
      %v1541 = vsel %vm1533, %v1517, -3.4028235e+38
      %v1542 = vsel %vm1532, %v1502, -3.4028235e+38
      %v1543 = vsel %vm1533, %v1518, -3.4028235e+38
      %v1544 = vsel %vm1532, %v1503, -3.4028235e+38
      %v1545 = vsel %vm1533, %v1519, -3.4028235e+38
      %v1546 = vsel %vm1532, %v1504, -3.4028235e+38
      %v1547 = vsel %vm1533, %v1520, -3.4028235e+38
      %v1548 = vsel %vm1532, %v1505, -3.4028235e+38
      %v1549 = vsel %vm1533, %v1521, -3.4028235e+38
      %v1550 = vsel %vm1532, %v1506, -3.4028235e+38
      %v1551 = vsel %vm1533, %v1522, -3.4028235e+38
      %v1552 = vsel %vm1532, %v1507, -3.4028235e+38
      %v1553 = vsel %vm1533, %v1523, -3.4028235e+38
      %v1554 = vsel %vm1532, %v1508, -3.4028235e+38
      %v1555 = vsel %vm1533, %v1524, -3.4028235e+38
      %v1556 = vsel %vm1532, %v1509, -3.4028235e+38
      %v1557 = vsel %vm1533, %v1525, -3.4028235e+38
      %v1558 = vsel %vm1532, %v1510, -3.4028235e+38
      %v1559 = vsel %vm1533, %v1526, -3.4028235e+38
      %v1560 = vsel %vm1532, %v1511, -3.4028235e+38
      %v1561 = vsel %vm1533, %v1527, -3.4028235e+38
      %v1562 = vsel %vm1532, %v1512, -3.4028235e+38
      %v1563 = vsel %vm1533, %v1528, -3.4028235e+38
      %v1564 = vsel %vm1532, %v1513, -3.4028235e+38
      %v1565 = vsel %vm1533, %v1529, -3.4028235e+38
      %v1566 = vmax.f32 %v1434, %v1534
      %v1567 = vmax.f32 %v1435, %v1535
      %v1568 = vmax.f32 %v1436, %v1536
      %v1569 = vmax.f32 %v1437, %v1537
      %v1570 = vmax.f32 %v1438, %v1538
      %v1571 = vmax.f32 %v1439, %v1539
      %v1572 = vmax.f32 %v1440, %v1540
      %v1573 = vmax.f32 %v1441, %v1541
      %v1574 = vmax.f32 %v1442, %v1542
      %v1575 = vmax.f32 %v1443, %v1543
      %v1576 = vmax.f32 %v1444, %v1544
      %v1577 = vmax.f32 %v1445, %v1545
      %v1578 = vmax.f32 %v1446, %v1546
      %v1579 = vmax.f32 %v1447, %v1547
      %v1580 = vmax.f32 %v1448, %v1548
      %v1581 = vmax.f32 %v1449, %v1549
      %v1582 = vmax.f32 %v1450, %v1550
      %v1583 = vmax.f32 %v1451, %v1551
      %v1584 = vmax.f32 %v1452, %v1552
      %v1585 = vmax.f32 %v1453, %v1553
      %v1586 = vmax.f32 %v1454, %v1554
      %v1587 = vmax.f32 %v1455, %v1555
      %v1588 = vmax.f32 %v1456, %v1556
      %v1589 = vmax.f32 %v1457, %v1557
      %v1590 = vmax.f32 %v1458, %v1558
      %v1591 = vmax.f32 %v1459, %v1559
      %v1592 = vmax.f32 %v1460, %v1560
      %v1593 = vmax.f32 %v1461, %v1561
      %v1594 = vmax.f32 %v1462, %v1562
      %v1595 = vmax.f32 %v1463, %v1563
      %v1596 = vmax.f32 %v1464, %v1564
      %v1597 = vmax.f32 %v1465, %v1565
      %1598 = vst.msk [vmem:[%s763] sm:$0xff] %vm690, %v1566
      %1599 = vst.msk [vmem:[%s763 + $0x8] sm:$0xff] %vm690, %v1567
      %1600 = vst.msk [vmem:[%s763 + $0x10] sm:$0xff] %vm690, %v1568
      %1601 = vst.msk [vmem:[%s763 + $0x18] sm:$0xff] %vm690, %v1569
      %1602 = vst.msk [vmem:[%s763 + $0x20] sm:$0xff] %vm690, %v1570
      %1603 = vst.msk [vmem:[%s763 + $0x28] sm:$0xff] %vm690, %v1571
      %1604 = vst.msk [vmem:[%s763 + $0x30] sm:$0xff] %vm690, %v1572
      %1605 = vst.msk [vmem:[%s763 + $0x38] sm:$0xff] %vm690, %v1573
      %1606 = vst.msk [vmem:[%s763 + $0x40] sm:$0xff] %vm690, %v1574
      %1607 = vst.msk [vmem:[%s763 + $0x48] sm:$0xff] %vm690, %v1575
      %1608 = vst.msk [vmem:[%s763 + $0x50] sm:$0xff] %vm690, %v1576
      %1609 = vst.msk [vmem:[%s763 + $0x58] sm:$0xff] %vm690, %v1577
      %1610 = vst.msk [vmem:[%s763 + $0x60] sm:$0xff] %vm690, %v1578
      %1611 = vst.msk [vmem:[%s763 + $0x68] sm:$0xff] %vm690, %v1579
      %1612 = vst.msk [vmem:[%s763 + $0x70] sm:$0xff] %vm690, %v1580
      %1613 = vst.msk [vmem:[%s763 + $0x78] sm:$0xff] %vm690, %v1581
      %1614 = vst.msk [vmem:[%s763 + $0x80] sm:$0xff] %vm690, %v1582
      %1615 = vst.msk [vmem:[%s763 + $0x88] sm:$0xff] %vm690, %v1583
      %1616 = vst.msk [vmem:[%s763 + $0x90] sm:$0xff] %vm690, %v1584
      %1617 = vst.msk [vmem:[%s763 + $0x98] sm:$0xff] %vm690, %v1585
      %1618 = vst.msk [vmem:[%s763 + $0xa0] sm:$0xff] %vm690, %v1586
      %1619 = vst.msk [vmem:[%s763 + $0xa8] sm:$0xff] %vm690, %v1587
      %1620 = vst.msk [vmem:[%s763 + $0xb0] sm:$0xff] %vm690, %v1588
      %1621 = vst.msk [vmem:[%s763 + $0xb8] sm:$0xff] %vm690, %v1589
      %1622 = vst.msk [vmem:[%s763 + $0xc0] sm:$0xff] %vm690, %v1590
      %1623 = vst.msk [vmem:[%s763 + $0xc8] sm:$0xff] %vm690, %v1591
      %1624 = vst.msk [vmem:[%s763 + $0xd0] sm:$0xff] %vm690, %v1592
      %1625 = vst.msk [vmem:[%s763 + $0xd8] sm:$0xff] %vm690, %v1593
      %1626 = vst.msk [vmem:[%s763 + $0xe0] sm:$0xff] %vm690, %v1594
      %1627 = vst.msk [vmem:[%s763 + $0xe8] sm:$0xff] %vm690, %v1595
      %1628 = vst.msk [vmem:[%s763 + $0xf0] sm:$0xff] %vm690, %v1596
      %1629 = vst.msk [vmem:[%s763 + $0xf8] sm:$0xff] %vm690, %v1597
      %v1630 = vld [vmem:[%s798] sm:$0xff]
      %v1631 = vld [vmem:[%s798 + $0x8] sm:$0xff]
      %v1632 = vld [vmem:[%s798 + $0x10] sm:$0xff]
      %v1633 = vld [vmem:[%s798 + $0x18] sm:$0xff]
      %v1634 = vld [vmem:[%s798 + $0x20] sm:$0xff]
      %v1635 = vld [vmem:[%s798 + $0x28] sm:$0xff]
      %v1636 = vld [vmem:[%s798 + $0x30] sm:$0xff]
      %v1637 = vld [vmem:[%s798 + $0x38] sm:$0xff]
      %v1638 = vpack.c.bf16 %v1631, %v1630
      %v1639 = vpack.c.bf16 %v1633, %v1632
      %v1640 = vpack.c.bf16 %v1635, %v1634
      %v1641 = vpack.c.bf16 %v1637, %v1636
      %v1642 = vld [vmem:[%s811] sm:$0xff]
      %v1643 = vld [vmem:[%s811 + $0x8] sm:$0xff]
      %v1644 = vld [vmem:[%s811 + $0x10] sm:$0xff]
      %v1645 = vld [vmem:[%s811 + $0x18] sm:$0xff]
      %v1646 = vld [vmem:[%s811 + $0x20] sm:$0xff]
      %v1647 = vld [vmem:[%s811 + $0x28] sm:$0xff]
      %v1648 = vld [vmem:[%s811 + $0x30] sm:$0xff]
      %v1649 = vld [vmem:[%s811 + $0x38] sm:$0xff]
      %v1650 = vld [vmem:[%s811 + $0x40] sm:$0xff]
      %v1651 = vld [vmem:[%s811 + $0x48] sm:$0xff]
      %v1652 = vld [vmem:[%s811 + $0x50] sm:$0xff]
      %v1653 = vld [vmem:[%s811 + $0x58] sm:$0xff]
      %v1654 = vld [vmem:[%s811 + $0x60] sm:$0xff]
      %v1655 = vld [vmem:[%s811 + $0x68] sm:$0xff]
      %v1656 = vld [vmem:[%s811 + $0x70] sm:$0xff]
      %v1657 = vld [vmem:[%s811 + $0x78] sm:$0xff]
      %v1658 = vld [vmem:[%s811 + $0x80] sm:$0xff]
      %v1659 = vld [vmem:[%s811 + $0x88] sm:$0xff]
      %v1660 = vld [vmem:[%s811 + $0x90] sm:$0xff]
      %v1661 = vld [vmem:[%s811 + $0x98] sm:$0xff]
      %v1662 = vld [vmem:[%s811 + $0xa0] sm:$0xff]
      %v1663 = vld [vmem:[%s811 + $0xa8] sm:$0xff]
      %v1664 = vld [vmem:[%s811 + $0xb0] sm:$0xff]
      %v1665 = vld [vmem:[%s811 + $0xb8] sm:$0xff]
      %v1666 = vld [vmem:[%s811 + $0xc0] sm:$0xff]
      %v1667 = vld [vmem:[%s811 + $0xc8] sm:$0xff]
      %v1668 = vld [vmem:[%s811 + $0xd0] sm:$0xff]
      %v1669 = vld [vmem:[%s811 + $0xd8] sm:$0xff]
      %v1670 = vld [vmem:[%s811 + $0xe0] sm:$0xff]
      %v1671 = vld [vmem:[%s811 + $0xe8] sm:$0xff]
      %v1672 = vld [vmem:[%s811 + $0xf0] sm:$0xff]
      %v1673 = vld [vmem:[%s811 + $0xf8] sm:$0xff]
      %v1674 = vmax.f32 %v1566, %v1642
      %v1675 = vmax.f32 %v1567, %v1643
      %v1676 = vmax.f32 %v1568, %v1644
      %v1677 = vmax.f32 %v1569, %v1645
      %v1678 = vmax.f32 %v1570, %v1646
      %v1679 = vmax.f32 %v1571, %v1647
      %v1680 = vmax.f32 %v1572, %v1648
      %v1681 = vmax.f32 %v1573, %v1649
      %v1682 = vmax.f32 %v1574, %v1650
      %v1683 = vmax.f32 %v1575, %v1651
      %v1684 = vmax.f32 %v1576, %v1652
      %v1685 = vmax.f32 %v1577, %v1653
      %v1686 = vmax.f32 %v1578, %v1654
      %v1687 = vmax.f32 %v1579, %v1655
      %v1688 = vmax.f32 %v1580, %v1656
      %v1689 = vmax.f32 %v1581, %v1657
      %v1690 = vmax.f32 %v1582, %v1658
      %v1691 = vmax.f32 %v1583, %v1659
      %v1692 = vmax.f32 %v1584, %v1660
      %v1693 = vmax.f32 %v1585, %v1661
      %v1694 = vmax.f32 %v1586, %v1662
      %v1695 = vmax.f32 %v1587, %v1663
      %v1696 = vmax.f32 %v1588, %v1664
      %v1697 = vmax.f32 %v1589, %v1665
      %v1698 = vmax.f32 %v1590, %v1666
      %v1699 = vmax.f32 %v1591, %v1667
      %v1700 = vmax.f32 %v1592, %v1668
      %v1701 = vmax.f32 %v1593, %v1669
      %v1702 = vmax.f32 %v1594, %v1670
      %v1703 = vmax.f32 %v1595, %v1671
      %v1704 = vmax.f32 %v1596, %v1672
      %v1705 = vmax.f32 %v1597, %v1673
      %v1706 = vld [vmem:[%s876] sm:$0xff]
      %v1707 = vld [vmem:[%s876 + $0x8] sm:$0xff]
      %v1708 = vld [vmem:[%s876 + $0x10] sm:$0xff]
      %v1709 = vld [vmem:[%s876 + $0x18] sm:$0xff]
      %v1710 = vld [vmem:[%s876 + $0x20] sm:$0xff]
      %v1711 = vld [vmem:[%s876 + $0x28] sm:$0xff]
      %v1712 = vld [vmem:[%s876 + $0x30] sm:$0xff]
      %v1713 = vld [vmem:[%s876 + $0x38] sm:$0xff]
      %v1714 = vld [vmem:[%s876 + $0x40] sm:$0xff]
      %v1715 = vld [vmem:[%s876 + $0x48] sm:$0xff]
      %v1716 = vld [vmem:[%s876 + $0x50] sm:$0xff]
      %v1717 = vld [vmem:[%s876 + $0x58] sm:$0xff]
      %v1718 = vld [vmem:[%s876 + $0x60] sm:$0xff]
      %v1719 = vld [vmem:[%s876 + $0x68] sm:$0xff]
      %v1720 = vld [vmem:[%s876 + $0x70] sm:$0xff]
      %v1721 = vld [vmem:[%s876 + $0x78] sm:$0xff]
      %v1722 = vld [vmem:[%s876 + $0x80] sm:$0xff]
      %v1723 = vld [vmem:[%s876 + $0x88] sm:$0xff]
      %v1724 = vld [vmem:[%s876 + $0x90] sm:$0xff]
      %v1725 = vld [vmem:[%s876 + $0x98] sm:$0xff]
      %v1726 = vld [vmem:[%s876 + $0xa0] sm:$0xff]
      %v1727 = vld [vmem:[%s876 + $0xa8] sm:$0xff]
      %v1728 = vld [vmem:[%s876 + $0xb0] sm:$0xff]
      %v1729 = vld [vmem:[%s876 + $0xb8] sm:$0xff]
      %v1730 = vld [vmem:[%s876 + $0xc0] sm:$0xff]
      %v1731 = vld [vmem:[%s876 + $0xc8] sm:$0xff]
      %v1732 = vld [vmem:[%s876 + $0xd0] sm:$0xff]
      %v1733 = vld [vmem:[%s876 + $0xd8] sm:$0xff]
      %v1734 = vld [vmem:[%s876 + $0xe0] sm:$0xff]
      %v1735 = vld [vmem:[%s876 + $0xe8] sm:$0xff]
      %v1736 = vld [vmem:[%s876 + $0xf0] sm:$0xff]
      %v1737 = vld [vmem:[%s876 + $0xf8] sm:$0xff]
      %v1738 = vmax.f32 %v1674, %v1706
      %v1739 = vmax.f32 %v1675, %v1707
      %v1740 = vmax.f32 %v1676, %v1708
      %v1741 = vmax.f32 %v1677, %v1709
      %v1742 = vmax.f32 %v1678, %v1710
      %v1743 = vmax.f32 %v1679, %v1711
      %v1744 = vmax.f32 %v1680, %v1712
      %v1745 = vmax.f32 %v1681, %v1713
      %v1746 = vmax.f32 %v1682, %v1714
      %v1747 = vmax.f32 %v1683, %v1715
      %v1748 = vmax.f32 %v1684, %v1716
      %v1749 = vmax.f32 %v1685, %v1717
      %v1750 = vmax.f32 %v1686, %v1718
      %v1751 = vmax.f32 %v1687, %v1719
      %v1752 = vmax.f32 %v1688, %v1720
      %v1753 = vmax.f32 %v1689, %v1721
      %v1754 = vmax.f32 %v1690, %v1722
      %v1755 = vmax.f32 %v1691, %v1723
      %v1756 = vmax.f32 %v1692, %v1724
      %v1757 = vmax.f32 %v1693, %v1725
      %v1758 = vmax.f32 %v1694, %v1726
      %v1759 = vmax.f32 %v1695, %v1727
      %v1760 = vmax.f32 %v1696, %v1728
      %v1761 = vmax.f32 %v1697, %v1729
      %v1762 = vmax.f32 %v1698, %v1730
      %v1763 = vmax.f32 %v1699, %v1731
      %v1764 = vmax.f32 %v1700, %v1732
      %v1765 = vmax.f32 %v1701, %v1733
      %v1766 = vmax.f32 %v1702, %v1734
      %v1767 = vmax.f32 %v1703, %v1735
      %v1768 = vmax.f32 %v1704, %v1736
      %v1769 = vmax.f32 %v1705, %v1737
      %v1770 = vld [vmem:[#allocation2] sm:$0xff]
      %v1771 = vld [vmem:[#allocation2 + $0x8] sm:$0xff]
      %v1772 = vld [vmem:[#allocation2 + $0x10] sm:$0xff]
      %v1773 = vld [vmem:[#allocation2 + $0x18] sm:$0xff]
      %v1774 = vld [vmem:[#allocation2 + $0x20] sm:$0xff]
      %v1775 = vld [vmem:[#allocation2 + $0x28] sm:$0xff]
      %v1776 = vld [vmem:[#allocation2 + $0x30] sm:$0xff]
      %v1777 = vld [vmem:[#allocation2 + $0x38] sm:$0xff]
      %v1778 = vld [vmem:[#allocation2 + $0x40] sm:$0xff]
      %v1779 = vld [vmem:[#allocation2 + $0x48] sm:$0xff]
      %v1780 = vld [vmem:[#allocation2 + $0x50] sm:$0xff]
      %v1781 = vld [vmem:[#allocation2 + $0x58] sm:$0xff]
      %v1782 = vld [vmem:[#allocation2 + $0x60] sm:$0xff]
      %v1783 = vld [vmem:[#allocation2 + $0x68] sm:$0xff]
      %v1784 = vld [vmem:[#allocation2 + $0x70] sm:$0xff]
      %v1785 = vld [vmem:[#allocation2 + $0x78] sm:$0xff]
      %v1786 = vld [vmem:[#allocation2 + $0x80] sm:$0xff]
      %v1787 = vld [vmem:[#allocation2 + $0x88] sm:$0xff]
      %v1788 = vld [vmem:[#allocation2 + $0x90] sm:$0xff]
      %v1789 = vld [vmem:[#allocation2 + $0x98] sm:$0xff]
      %v1790 = vld [vmem:[#allocation2 + $0xa0] sm:$0xff]
      %v1791 = vld [vmem:[#allocation2 + $0xa8] sm:$0xff]
      %v1792 = vld [vmem:[#allocation2 + $0xb0] sm:$0xff]
      %v1793 = vld [vmem:[#allocation2 + $0xb8] sm:$0xff]
      %v1794 = vld [vmem:[#allocation2 + $0xc0] sm:$0xff]
      %v1795 = vld [vmem:[#allocation2 + $0xc8] sm:$0xff]
      %v1796 = vld [vmem:[#allocation2 + $0xd0] sm:$0xff]
      %v1797 = vld [vmem:[#allocation2 + $0xd8] sm:$0xff]
      %v1798 = vld [vmem:[#allocation2 + $0xe0] sm:$0xff]
      %v1799 = vld [vmem:[#allocation2 + $0xe8] sm:$0xff]
      %v1800 = vld [vmem:[#allocation2 + $0xf0] sm:$0xff]
      %v1801 = vld [vmem:[#allocation2 + $0xf8] sm:$0xff]
      %v1802 = vmax.f32 %v1738, %v1770
      %v1803 = vmax.f32 %v1739, %v1771
      %v1804 = vmax.f32 %v1740, %v1772
      %v1805 = vmax.f32 %v1741, %v1773
      %v1806 = vmax.f32 %v1742, %v1774
      %v1807 = vmax.f32 %v1743, %v1775
      %v1808 = vmax.f32 %v1744, %v1776
      %v1809 = vmax.f32 %v1745, %v1777
      %v1810 = vmax.f32 %v1746, %v1778
      %v1811 = vmax.f32 %v1747, %v1779
      %v1812 = vmax.f32 %v1748, %v1780
      %v1813 = vmax.f32 %v1749, %v1781
      %v1814 = vmax.f32 %v1750, %v1782
      %v1815 = vmax.f32 %v1751, %v1783
      %v1816 = vmax.f32 %v1752, %v1784
      %v1817 = vmax.f32 %v1753, %v1785
      %v1818 = vmax.f32 %v1754, %v1786
      %v1819 = vmax.f32 %v1755, %v1787
      %v1820 = vmax.f32 %v1756, %v1788
      %v1821 = vmax.f32 %v1757, %v1789
      %v1822 = vmax.f32 %v1758, %v1790
      %v1823 = vmax.f32 %v1759, %v1791
      %v1824 = vmax.f32 %v1760, %v1792
      %v1825 = vmax.f32 %v1761, %v1793
      %v1826 = vmax.f32 %v1762, %v1794
      %v1827 = vmax.f32 %v1763, %v1795
      %v1828 = vmax.f32 %v1764, %v1796
      %v1829 = vmax.f32 %v1765, %v1797
      %v1830 = vmax.f32 %v1766, %v1798
      %v1831 = vmax.f32 %v1767, %v1799
      %v1832 = vmax.f32 %v1768, %v1800
      %v1833 = vmax.f32 %v1769, %v1801
      %v1834 = vld [vmem:[%s1005] sm:$0xff]
      %v1835 = vld [vmem:[%s1005 + $0x8] sm:$0xff]
      %v1836 = vld [vmem:[%s1005 + $0x10] sm:$0xff]
      %v1837 = vld [vmem:[%s1005 + $0x18] sm:$0xff]
      %v1838 = vld [vmem:[%s1005 + $0x20] sm:$0xff]
      %v1839 = vld [vmem:[%s1005 + $0x28] sm:$0xff]
      %v1840 = vld [vmem:[%s1005 + $0x30] sm:$0xff]
      %v1841 = vld [vmem:[%s1005 + $0x38] sm:$0xff]
      %v1842 = vld [vmem:[%s1005 + $0x40] sm:$0xff]
      %v1843 = vld [vmem:[%s1005 + $0x48] sm:$0xff]
      %v1844 = vld [vmem:[%s1005 + $0x50] sm:$0xff]
      %v1845 = vld [vmem:[%s1005 + $0x58] sm:$0xff]
      %v1846 = vld [vmem:[%s1005 + $0x60] sm:$0xff]
      %v1847 = vld [vmem:[%s1005 + $0x68] sm:$0xff]
      %v1848 = vld [vmem:[%s1005 + $0x70] sm:$0xff]
      %v1849 = vld [vmem:[%s1005 + $0x78] sm:$0xff]
      %v1850 = vld [vmem:[%s1005 + $0x80] sm:$0xff]
      %v1851 = vld [vmem:[%s1005 + $0x88] sm:$0xff]
      %v1852 = vld [vmem:[%s1005 + $0x90] sm:$0xff]
      %v1853 = vld [vmem:[%s1005 + $0x98] sm:$0xff]
      %v1854 = vld [vmem:[%s1005 + $0xa0] sm:$0xff]
      %v1855 = vld [vmem:[%s1005 + $0xa8] sm:$0xff]
      %v1856 = vld [vmem:[%s1005 + $0xb0] sm:$0xff]
      %v1857 = vld [vmem:[%s1005 + $0xb8] sm:$0xff]
      %v1858 = vld [vmem:[%s1005 + $0xc0] sm:$0xff]
      %v1859 = vld [vmem:[%s1005 + $0xc8] sm:$0xff]
      %v1860 = vld [vmem:[%s1005 + $0xd0] sm:$0xff]
      %v1861 = vld [vmem:[%s1005 + $0xd8] sm:$0xff]
      %v1862 = vld [vmem:[%s1005 + $0xe0] sm:$0xff]
      %v1863 = vld [vmem:[%s1005 + $0xe8] sm:$0xff]
      %v1864 = vld [vmem:[%s1005 + $0xf0] sm:$0xff]
      %v1865 = vld [vmem:[%s1005 + $0xf8] sm:$0xff]
      %v1866 = vmax.f32 %v1802, %v1834
      %v1867 = vmax.f32 %v1803, %v1835
      %v1868 = vmax.f32 %v1804, %v1836
      %v1869 = vmax.f32 %v1805, %v1837
      %v1870 = vmax.f32 %v1806, %v1838
      %v1871 = vmax.f32 %v1807, %v1839
      %v1872 = vmax.f32 %v1808, %v1840
      %v1873 = vmax.f32 %v1809, %v1841
      %v1874 = vmax.f32 %v1810, %v1842
      %v1875 = vmax.f32 %v1811, %v1843
      %v1876 = vmax.f32 %v1812, %v1844
      %v1877 = vmax.f32 %v1813, %v1845
      %v1878 = vmax.f32 %v1814, %v1846
      %v1879 = vmax.f32 %v1815, %v1847
      %v1880 = vmax.f32 %v1816, %v1848
      %v1881 = vmax.f32 %v1817, %v1849
      %v1882 = vmax.f32 %v1818, %v1850
      %v1883 = vmax.f32 %v1819, %v1851
      %v1884 = vmax.f32 %v1820, %v1852
      %v1885 = vmax.f32 %v1821, %v1853
      %v1886 = vmax.f32 %v1822, %v1854
      %v1887 = vmax.f32 %v1823, %v1855
      %v1888 = vmax.f32 %v1824, %v1856
      %v1889 = vmax.f32 %v1825, %v1857
      %v1890 = vmax.f32 %v1826, %v1858
      %v1891 = vmax.f32 %v1827, %v1859
      %v1892 = vmax.f32 %v1828, %v1860
      %v1893 = vmax.f32 %v1829, %v1861
      %v1894 = vmax.f32 %v1830, %v1862
      %v1895 = vmax.f32 %v1831, %v1863
      %v1896 = vmax.f32 %v1832, %v1864
      %v1897 = vmax.f32 %v1833, %v1865
      %v1898 = vrot.slane %v1866, 7
      %v1899 = vrot.slane %v1868, 7
      %v1900 = vrot.slane %v1870, 7
      %v1901 = vrot.slane %v1872, 7
      %v1902 = vrot.slane %v1874, 7
      %v1903 = vrot.slane %v1876, 7
      %v1904 = vrot.slane %v1878, 7
      %v1905 = vrot.slane %v1880, 7
      %v1906 = vrot.slane %v1882, 7
      %v1907 = vrot.slane %v1884, 7
      %v1908 = vrot.slane %v1886, 7
      %v1909 = vrot.slane %v1888, 7
      %v1910 = vrot.slane %v1890, 7
      %v1911 = vrot.slane %v1892, 7
      %v1912 = vrot.slane %v1894, 7
      %v1913 = vrot.slane %v1896, 7
      %v1914 = vrot.slane %v1867, 7
      %v1915 = vrot.slane %v1869, 7
      %v1916 = vrot.slane %v1871, 7
      %v1917 = vrot.slane %v1873, 7
      %v1918 = vrot.slane %v1875, 7
      %v1919 = vrot.slane %v1877, 7
      %v1920 = vrot.slane %v1879, 7
      %v1921 = vrot.slane %v1881, 7
      %v1922 = vrot.slane %v1883, 7
      %v1923 = vrot.slane %v1885, 7
      %v1924 = vrot.slane %v1887, 7
      %v1925 = vrot.slane %v1889, 7
      %v1926 = vrot.slane %v1891, 7
      %v1927 = vrot.slane %v1893, 7
      %v1928 = vrot.slane %v1895, 7
      %v1929 = vrot.slane %v1897, 7
      %v1930 = vsel %vm705, %v1898, %v1914
      %v1931 = vsel %vm705, %v1899, %v1915
      %v1932 = vsel %vm705, %v1900, %v1916
      %v1933 = vsel %vm705, %v1901, %v1917
      %v1934 = vsel %vm705, %v1902, %v1918
      %v1935 = vsel %vm705, %v1903, %v1919
      %v1936 = vsel %vm705, %v1904, %v1920
      %v1937 = vsel %vm705, %v1905, %v1921
      %v1938 = vsel %vm705, %v1906, %v1922
      %v1939 = vsel %vm705, %v1907, %v1923
      %v1940 = vsel %vm705, %v1908, %v1924
      %v1941 = vsel %vm705, %v1909, %v1925
      %v1942 = vsel %vm705, %v1910, %v1926
      %v1943 = vsel %vm705, %v1911, %v1927
      %v1944 = vsel %vm705, %v1912, %v1928
      %v1945 = vsel %vm705, %v1913, %v1929
      %v1946 = vsel %vm705, %v1914, %v1898
      %v1947 = vsel %vm705, %v1915, %v1899
      %v1948 = vsel %vm705, %v1916, %v1900
      %v1949 = vsel %vm705, %v1917, %v1901
      %v1950 = vsel %vm705, %v1918, %v1902
      %v1951 = vsel %vm705, %v1919, %v1903
      %v1952 = vsel %vm705, %v1920, %v1904
      %v1953 = vsel %vm705, %v1921, %v1905
      %v1954 = vsel %vm705, %v1922, %v1906
      %v1955 = vsel %vm705, %v1923, %v1907
      %v1956 = vsel %vm705, %v1924, %v1908
      %v1957 = vsel %vm705, %v1925, %v1909
      %v1958 = vsel %vm705, %v1926, %v1910
      %v1959 = vsel %vm705, %v1927, %v1911
      %v1960 = vsel %vm705, %v1928, %v1912
      %v1961 = vsel %vm705, %v1929, %v1913
      %v1962 = vsel %vm1136, %v1946, -3.4028235e+38
      %v1963 = vsel %vm1137, %v1930, -3.4028235e+38
      %v1964 = vsel %vm1136, %v1947, -3.4028235e+38
      %v1965 = vsel %vm1137, %v1931, -3.4028235e+38
      %v1966 = vsel %vm1136, %v1948, -3.4028235e+38
      %v1967 = vsel %vm1137, %v1932, -3.4028235e+38
      %v1968 = vsel %vm1136, %v1949, -3.4028235e+38
      %v1969 = vsel %vm1137, %v1933, -3.4028235e+38
      %v1970 = vsel %vm1136, %v1950, -3.4028235e+38
      %v1971 = vsel %vm1137, %v1934, -3.4028235e+38
      %v1972 = vsel %vm1136, %v1951, -3.4028235e+38
      %v1973 = vsel %vm1137, %v1935, -3.4028235e+38
      %v1974 = vsel %vm1136, %v1952, -3.4028235e+38
      %v1975 = vsel %vm1137, %v1936, -3.4028235e+38
      %v1976 = vsel %vm1136, %v1953, -3.4028235e+38
      %v1977 = vsel %vm1137, %v1937, -3.4028235e+38
      %v1978 = vsel %vm1136, %v1954, -3.4028235e+38
      %v1979 = vsel %vm1137, %v1938, -3.4028235e+38
      %v1980 = vsel %vm1136, %v1955, -3.4028235e+38
      %v1981 = vsel %vm1137, %v1939, -3.4028235e+38
      %v1982 = vsel %vm1136, %v1956, -3.4028235e+38
      %v1983 = vsel %vm1137, %v1940, -3.4028235e+38
      %v1984 = vsel %vm1136, %v1957, -3.4028235e+38
      %v1985 = vsel %vm1137, %v1941, -3.4028235e+38
      %v1986 = vsel %vm1136, %v1958, -3.4028235e+38
      %v1987 = vsel %vm1137, %v1942, -3.4028235e+38
      %v1988 = vsel %vm1136, %v1959, -3.4028235e+38
      %v1989 = vsel %vm1137, %v1943, -3.4028235e+38
      %v1990 = vsel %vm1136, %v1960, -3.4028235e+38
      %v1991 = vsel %vm1137, %v1944, -3.4028235e+38
      %v1992 = vsel %vm1136, %v1961, -3.4028235e+38
      %v1993 = vsel %vm1137, %v1945, -3.4028235e+38
      %v1994 = vmax.f32 %v1866, %v1962
      %v1995 = vmax.f32 %v1867, %v1963
      %v1996 = vmax.f32 %v1868, %v1964
      %v1997 = vmax.f32 %v1869, %v1965
      %v1998 = vmax.f32 %v1870, %v1966
      %v1999 = vmax.f32 %v1871, %v1967
      %v2000 = vmax.f32 %v1872, %v1968
      %v2001 = vmax.f32 %v1873, %v1969
      %v2002 = vmax.f32 %v1874, %v1970
      %v2003 = vmax.f32 %v1875, %v1971
      %v2004 = vmax.f32 %v1876, %v1972
      %v2005 = vmax.f32 %v1877, %v1973
      %v2006 = vmax.f32 %v1878, %v1974
      %v2007 = vmax.f32 %v1879, %v1975
      %v2008 = vmax.f32 %v1880, %v1976
      %v2009 = vmax.f32 %v1881, %v1977
      %v2010 = vmax.f32 %v1882, %v1978
      %v2011 = vmax.f32 %v1883, %v1979
      %v2012 = vmax.f32 %v1884, %v1980
      %v2013 = vmax.f32 %v1885, %v1981
      %v2014 = vmax.f32 %v1886, %v1982
      %v2015 = vmax.f32 %v1887, %v1983
      %v2016 = vmax.f32 %v1888, %v1984
      %v2017 = vmax.f32 %v1889, %v1985
      %v2018 = vmax.f32 %v1890, %v1986
      %v2019 = vmax.f32 %v1891, %v1987
      %v2020 = vmax.f32 %v1892, %v1988
      %v2021 = vmax.f32 %v1893, %v1989
      %v2022 = vmax.f32 %v1894, %v1990
      %v2023 = vmax.f32 %v1895, %v1991
      %v2024 = vmax.f32 %v1896, %v1992
      %v2025 = vmax.f32 %v1897, %v1993
      %v2026 = vrot.slane %v1866, 1
      %v2027 = vrot.slane %v1868, 1
      %v2028 = vrot.slane %v1870, 1
      %v2029 = vrot.slane %v1872, 1
      %v2030 = vrot.slane %v1874, 1
      %v2031 = vrot.slane %v1876, 1
      %v2032 = vrot.slane %v1878, 1
      %v2033 = vrot.slane %v1880, 1
      %v2034 = vrot.slane %v1882, 1
      %v2035 = vrot.slane %v1884, 1
      %v2036 = vrot.slane %v1886, 1
      %v2037 = vrot.slane %v1888, 1
      %v2038 = vrot.slane %v1890, 1
      %v2039 = vrot.slane %v1892, 1
      %v2040 = vrot.slane %v1894, 1
      %v2041 = vrot.slane %v1896, 1
      %v2042 = vrot.slane %v1867, 1
      %v2043 = vrot.slane %v1869, 1
      %v2044 = vrot.slane %v1871, 1
      %v2045 = vrot.slane %v1873, 1
      %v2046 = vrot.slane %v1875, 1
      %v2047 = vrot.slane %v1877, 1
      %v2048 = vrot.slane %v1879, 1
      %v2049 = vrot.slane %v1881, 1
      %v2050 = vrot.slane %v1883, 1
      %v2051 = vrot.slane %v1885, 1
      %v2052 = vrot.slane %v1887, 1
      %v2053 = vrot.slane %v1889, 1
      %v2054 = vrot.slane %v1891, 1
      %v2055 = vrot.slane %v1893, 1
      %v2056 = vrot.slane %v1895, 1
      %v2057 = vrot.slane %v1897, 1
      %v2058 = vsel %vm720, %v2026, %v2042
      %v2059 = vsel %vm720, %v2027, %v2043
      %v2060 = vsel %vm720, %v2028, %v2044
      %v2061 = vsel %vm720, %v2029, %v2045
      %v2062 = vsel %vm720, %v2030, %v2046
      %v2063 = vsel %vm720, %v2031, %v2047
      %v2064 = vsel %vm720, %v2032, %v2048
      %v2065 = vsel %vm720, %v2033, %v2049
      %v2066 = vsel %vm720, %v2034, %v2050
      %v2067 = vsel %vm720, %v2035, %v2051
      %v2068 = vsel %vm720, %v2036, %v2052
      %v2069 = vsel %vm720, %v2037, %v2053
      %v2070 = vsel %vm720, %v2038, %v2054
      %v2071 = vsel %vm720, %v2039, %v2055
      %v2072 = vsel %vm720, %v2040, %v2056
      %v2073 = vsel %vm720, %v2041, %v2057
      %v2074 = vsel %vm720, %v2042, %v2026
      %v2075 = vsel %vm720, %v2043, %v2027
      %v2076 = vsel %vm720, %v2044, %v2028
      %v2077 = vsel %vm720, %v2045, %v2029
      %v2078 = vsel %vm720, %v2046, %v2030
      %v2079 = vsel %vm720, %v2047, %v2031
      %v2080 = vsel %vm720, %v2048, %v2032
      %v2081 = vsel %vm720, %v2049, %v2033
      %v2082 = vsel %vm720, %v2050, %v2034
      %v2083 = vsel %vm720, %v2051, %v2035
      %v2084 = vsel %vm720, %v2052, %v2036
      %v2085 = vsel %vm720, %v2053, %v2037
      %v2086 = vsel %vm720, %v2054, %v2038
      %v2087 = vsel %vm720, %v2055, %v2039
      %v2088 = vsel %vm720, %v2056, %v2040
      %v2089 = vsel %vm720, %v2057, %v2041
      %v2090 = vsel %vm1268, %v2058, -3.4028235e+38
      %v2091 = vsel %vm1269, %v2074, -3.4028235e+38
      %v2092 = vsel %vm1268, %v2059, -3.4028235e+38
      %v2093 = vsel %vm1269, %v2075, -3.4028235e+38
      %v2094 = vsel %vm1268, %v2060, -3.4028235e+38
      %v2095 = vsel %vm1269, %v2076, -3.4028235e+38
      %v2096 = vsel %vm1268, %v2061, -3.4028235e+38
      %v2097 = vsel %vm1269, %v2077, -3.4028235e+38
      %v2098 = vsel %vm1268, %v2062, -3.4028235e+38
      %v2099 = vsel %vm1269, %v2078, -3.4028235e+38
      %v2100 = vsel %vm1268, %v2063, -3.4028235e+38
      %v2101 = vsel %vm1269, %v2079, -3.4028235e+38
      %v2102 = vsel %vm1268, %v2064, -3.4028235e+38
      %v2103 = vsel %vm1269, %v2080, -3.4028235e+38
      %v2104 = vsel %vm1268, %v2065, -3.4028235e+38
      %v2105 = vsel %vm1269, %v2081, -3.4028235e+38
      %v2106 = vsel %vm1268, %v2066, -3.4028235e+38
      %v2107 = vsel %vm1269, %v2082, -3.4028235e+38
      %v2108 = vsel %vm1268, %v2067, -3.4028235e+38
      %v2109 = vsel %vm1269, %v2083, -3.4028235e+38
      %v2110 = vsel %vm1268, %v2068, -3.4028235e+38
      %v2111 = vsel %vm1269, %v2084, -3.4028235e+38
      %v2112 = vsel %vm1268, %v2069, -3.4028235e+38
      %v2113 = vsel %vm1269, %v2085, -3.4028235e+38
      %v2114 = vsel %vm1268, %v2070, -3.4028235e+38
      %v2115 = vsel %vm1269, %v2086, -3.4028235e+38
      %v2116 = vsel %vm1268, %v2071, -3.4028235e+38
      %v2117 = vsel %vm1269, %v2087, -3.4028235e+38
      %v2118 = vsel %vm1268, %v2072, -3.4028235e+38
      %v2119 = vsel %vm1269, %v2088, -3.4028235e+38
      %v2120 = vsel %vm1268, %v2073, -3.4028235e+38
      %v2121 = vsel %vm1269, %v2089, -3.4028235e+38
      %v2122 = vmax.f32 %v1994, %v2090
      %v2123 = vmax.f32 %v1995, %v2091
      %v2124 = vmax.f32 %v1996, %v2092
      %v2125 = vmax.f32 %v1997, %v2093
      %v2126 = vmax.f32 %v1998, %v2094
      %v2127 = vmax.f32 %v1999, %v2095
      %v2128 = vmax.f32 %v2000, %v2096
      %v2129 = vmax.f32 %v2001, %v2097
      %v2130 = vmax.f32 %v2002, %v2098
      %v2131 = vmax.f32 %v2003, %v2099
      %v2132 = vmax.f32 %v2004, %v2100
      %v2133 = vmax.f32 %v2005, %v2101
      %v2134 = vmax.f32 %v2006, %v2102
      %v2135 = vmax.f32 %v2007, %v2103
      %v2136 = vmax.f32 %v2008, %v2104
      %v2137 = vmax.f32 %v2009, %v2105
      %v2138 = vmax.f32 %v2010, %v2106
      %v2139 = vmax.f32 %v2011, %v2107
      %v2140 = vmax.f32 %v2012, %v2108
      %v2141 = vmax.f32 %v2013, %v2109
      %v2142 = vmax.f32 %v2014, %v2110
      %v2143 = vmax.f32 %v2015, %v2111
      %v2144 = vmax.f32 %v2016, %v2112
      %v2145 = vmax.f32 %v2017, %v2113
      %v2146 = vmax.f32 %v2018, %v2114
      %v2147 = vmax.f32 %v2019, %v2115
      %v2148 = vmax.f32 %v2020, %v2116
      %v2149 = vmax.f32 %v2021, %v2117
      %v2150 = vmax.f32 %v2022, %v2118
      %v2151 = vmax.f32 %v2023, %v2119
      %v2152 = vmax.f32 %v2024, %v2120
      %v2153 = vmax.f32 %v2025, %v2121
      %v2154 = vrot.slane %v1866, 6
      %v2155 = vrot.slane %v1868, 6
      %v2156 = vrot.slane %v1870, 6
      %v2157 = vrot.slane %v1872, 6
      %v2158 = vrot.slane %v1874, 6
      %v2159 = vrot.slane %v1876, 6
      %v2160 = vrot.slane %v1878, 6
      %v2161 = vrot.slane %v1880, 6
      %v2162 = vrot.slane %v1882, 6
      %v2163 = vrot.slane %v1884, 6
      %v2164 = vrot.slane %v1886, 6
      %v2165 = vrot.slane %v1888, 6
      %v2166 = vrot.slane %v1890, 6
      %v2167 = vrot.slane %v1892, 6
      %v2168 = vrot.slane %v1894, 6
      %v2169 = vrot.slane %v1896, 6
      %v2170 = vrot.slane %v1867, 6
      %v2171 = vrot.slane %v1869, 6
      %v2172 = vrot.slane %v1871, 6
      %v2173 = vrot.slane %v1873, 6
      %v2174 = vrot.slane %v1875, 6
      %v2175 = vrot.slane %v1877, 6
      %v2176 = vrot.slane %v1879, 6
      %v2177 = vrot.slane %v1881, 6
      %v2178 = vrot.slane %v1883, 6
      %v2179 = vrot.slane %v1885, 6
      %v2180 = vrot.slane %v1887, 6
      %v2181 = vrot.slane %v1889, 6
      %v2182 = vrot.slane %v1891, 6
      %v2183 = vrot.slane %v1893, 6
      %v2184 = vrot.slane %v1895, 6
      %v2185 = vrot.slane %v1897, 6
      %v2186 = vsel %vm735, %v2154, %v2170
      %v2187 = vsel %vm735, %v2155, %v2171
      %v2188 = vsel %vm735, %v2156, %v2172
      %v2189 = vsel %vm735, %v2157, %v2173
      %v2190 = vsel %vm735, %v2158, %v2174
      %v2191 = vsel %vm735, %v2159, %v2175
      %v2192 = vsel %vm735, %v2160, %v2176
      %v2193 = vsel %vm735, %v2161, %v2177
      %v2194 = vsel %vm735, %v2162, %v2178
      %v2195 = vsel %vm735, %v2163, %v2179
      %v2196 = vsel %vm735, %v2164, %v2180
      %v2197 = vsel %vm735, %v2165, %v2181
      %v2198 = vsel %vm735, %v2166, %v2182
      %v2199 = vsel %vm735, %v2167, %v2183
      %v2200 = vsel %vm735, %v2168, %v2184
      %v2201 = vsel %vm735, %v2169, %v2185
      %v2202 = vsel %vm735, %v2170, %v2154
      %v2203 = vsel %vm735, %v2171, %v2155
      %v2204 = vsel %vm735, %v2172, %v2156
      %v2205 = vsel %vm735, %v2173, %v2157
      %v2206 = vsel %vm735, %v2174, %v2158
      %v2207 = vsel %vm735, %v2175, %v2159
      %v2208 = vsel %vm735, %v2176, %v2160
      %v2209 = vsel %vm735, %v2177, %v2161
      %v2210 = vsel %vm735, %v2178, %v2162
      %v2211 = vsel %vm735, %v2179, %v2163
      %v2212 = vsel %vm735, %v2180, %v2164
      %v2213 = vsel %vm735, %v2181, %v2165
      %v2214 = vsel %vm735, %v2182, %v2166
      %v2215 = vsel %vm735, %v2183, %v2167
      %v2216 = vsel %vm735, %v2184, %v2168
      %v2217 = vsel %vm735, %v2185, %v2169
      %v2218 = vsel %vm1400, %v2202, -3.4028235e+38
      %v2219 = vsel %vm1401, %v2186, -3.4028235e+38
      %v2220 = vsel %vm1400, %v2203, -3.4028235e+38
      %v2221 = vsel %vm1401, %v2187, -3.4028235e+38
      %v2222 = vsel %vm1400, %v2204, -3.4028235e+38
      %v2223 = vsel %vm1401, %v2188, -3.4028235e+38
      %v2224 = vsel %vm1400, %v2205, -3.4028235e+38
      %v2225 = vsel %vm1401, %v2189, -3.4028235e+38
      %v2226 = vsel %vm1400, %v2206, -3.4028235e+38
      %v2227 = vsel %vm1401, %v2190, -3.4028235e+38
      %v2228 = vsel %vm1400, %v2207, -3.4028235e+38
      %v2229 = vsel %vm1401, %v2191, -3.4028235e+38
      %v2230 = vsel %vm1400, %v2208, -3.4028235e+38
      %v2231 = vsel %vm1401, %v2192, -3.4028235e+38
      %v2232 = vsel %vm1400, %v2209, -3.4028235e+38
      %v2233 = vsel %vm1401, %v2193, -3.4028235e+38
      %v2234 = vsel %vm1400, %v2210, -3.4028235e+38
      %v2235 = vsel %vm1401, %v2194, -3.4028235e+38
      %v2236 = vsel %vm1400, %v2211, -3.4028235e+38
      %v2237 = vsel %vm1401, %v2195, -3.4028235e+38
      %v2238 = vsel %vm1400, %v2212, -3.4028235e+38
      %v2239 = vsel %vm1401, %v2196, -3.4028235e+38
      %v2240 = vsel %vm1400, %v2213, -3.4028235e+38
      %v2241 = vsel %vm1401, %v2197, -3.4028235e+38
      %v2242 = vsel %vm1400, %v2214, -3.4028235e+38
      %v2243 = vsel %vm1401, %v2198, -3.4028235e+38
      %v2244 = vsel %vm1400, %v2215, -3.4028235e+38
      %v2245 = vsel %vm1401, %v2199, -3.4028235e+38
      %v2246 = vsel %vm1400, %v2216, -3.4028235e+38
      %v2247 = vsel %vm1401, %v2200, -3.4028235e+38
      %v2248 = vsel %vm1400, %v2217, -3.4028235e+38
      %v2249 = vsel %vm1401, %v2201, -3.4028235e+38
      %v2250 = vmax.f32 %v2122, %v2218
      %v2251 = vmax.f32 %v2123, %v2219
      %v2252 = vmax.f32 %v2124, %v2220
      %v2253 = vmax.f32 %v2125, %v2221
      %v2254 = vmax.f32 %v2126, %v2222
      %v2255 = vmax.f32 %v2127, %v2223
      %v2256 = vmax.f32 %v2128, %v2224
      %v2257 = vmax.f32 %v2129, %v2225
      %v2258 = vmax.f32 %v2130, %v2226
      %v2259 = vmax.f32 %v2131, %v2227
      %v2260 = vmax.f32 %v2132, %v2228
      %v2261 = vmax.f32 %v2133, %v2229
      %v2262 = vmax.f32 %v2134, %v2230
      %v2263 = vmax.f32 %v2135, %v2231
      %v2264 = vmax.f32 %v2136, %v2232
      %v2265 = vmax.f32 %v2137, %v2233
      %v2266 = vmax.f32 %v2138, %v2234
      %v2267 = vmax.f32 %v2139, %v2235
      %v2268 = vmax.f32 %v2140, %v2236
      %v2269 = vmax.f32 %v2141, %v2237
      %v2270 = vmax.f32 %v2142, %v2238
      %v2271 = vmax.f32 %v2143, %v2239
      %v2272 = vmax.f32 %v2144, %v2240
      %v2273 = vmax.f32 %v2145, %v2241
      %v2274 = vmax.f32 %v2146, %v2242
      %v2275 = vmax.f32 %v2147, %v2243
      %v2276 = vmax.f32 %v2148, %v2244
      %v2277 = vmax.f32 %v2149, %v2245
      %v2278 = vmax.f32 %v2150, %v2246
      %v2279 = vmax.f32 %v2151, %v2247
      %v2280 = vmax.f32 %v2152, %v2248
      %v2281 = vmax.f32 %v2153, %v2249
      %v2282 = vrot.slane %v1866, 2
      %v2283 = vrot.slane %v1868, 2
      %v2284 = vrot.slane %v1870, 2
      %v2285 = vrot.slane %v1872, 2
      %v2286 = vrot.slane %v1874, 2
      %v2287 = vrot.slane %v1876, 2
      %v2288 = vrot.slane %v1878, 2
      %v2289 = vrot.slane %v1880, 2
      %v2290 = vrot.slane %v1882, 2
      %v2291 = vrot.slane %v1884, 2
      %v2292 = vrot.slane %v1886, 2
      %v2293 = vrot.slane %v1888, 2
      %v2294 = vrot.slane %v1890, 2
      %v2295 = vrot.slane %v1892, 2
      %v2296 = vrot.slane %v1894, 2
      %v2297 = vrot.slane %v1896, 2
      %v2298 = vrot.slane %v1867, 2
      %v2299 = vrot.slane %v1869, 2
      %v2300 = vrot.slane %v1871, 2
      %v2301 = vrot.slane %v1873, 2
      %v2302 = vrot.slane %v1875, 2
      %v2303 = vrot.slane %v1877, 2
      %v2304 = vrot.slane %v1879, 2
      %v2305 = vrot.slane %v1881, 2
      %v2306 = vrot.slane %v1883, 2
      %v2307 = vrot.slane %v1885, 2
      %v2308 = vrot.slane %v1887, 2
      %v2309 = vrot.slane %v1889, 2
      %v2310 = vrot.slane %v1891, 2
      %v2311 = vrot.slane %v1893, 2
      %v2312 = vrot.slane %v1895, 2
      %v2313 = vrot.slane %v1897, 2
      %v2314 = vsel %vm750, %v2282, %v2298
      %v2315 = vsel %vm750, %v2283, %v2299
      %v2316 = vsel %vm750, %v2284, %v2300
      %v2317 = vsel %vm750, %v2285, %v2301
      %v2318 = vsel %vm750, %v2286, %v2302
      %v2319 = vsel %vm750, %v2287, %v2303
      %v2320 = vsel %vm750, %v2288, %v2304
      %v2321 = vsel %vm750, %v2289, %v2305
      %v2322 = vsel %vm750, %v2290, %v2306
      %v2323 = vsel %vm750, %v2291, %v2307
      %v2324 = vsel %vm750, %v2292, %v2308
      %v2325 = vsel %vm750, %v2293, %v2309
      %v2326 = vsel %vm750, %v2294, %v2310
      %v2327 = vsel %vm750, %v2295, %v2311
      %v2328 = vsel %vm750, %v2296, %v2312
      %v2329 = vsel %vm750, %v2297, %v2313
      %v2330 = vsel %vm750, %v2298, %v2282
      %v2331 = vsel %vm750, %v2299, %v2283
      %v2332 = vsel %vm750, %v2300, %v2284
      %v2333 = vsel %vm750, %v2301, %v2285
      %v2334 = vsel %vm750, %v2302, %v2286
      %v2335 = vsel %vm750, %v2303, %v2287
      %v2336 = vsel %vm750, %v2304, %v2288
      %v2337 = vsel %vm750, %v2305, %v2289
      %v2338 = vsel %vm750, %v2306, %v2290
      %v2339 = vsel %vm750, %v2307, %v2291
      %v2340 = vsel %vm750, %v2308, %v2292
      %v2341 = vsel %vm750, %v2309, %v2293
      %v2342 = vsel %vm750, %v2310, %v2294
      %v2343 = vsel %vm750, %v2311, %v2295
      %v2344 = vsel %vm750, %v2312, %v2296
      %v2345 = vsel %vm750, %v2313, %v2297
      %v2346 = vsel %vm1532, %v2314, -3.4028235e+38
      %v2347 = vsel %vm1533, %v2330, -3.4028235e+38
      %v2348 = vsel %vm1532, %v2315, -3.4028235e+38
      %v2349 = vsel %vm1533, %v2331, -3.4028235e+38
      %v2350 = vsel %vm1532, %v2316, -3.4028235e+38
      %v2351 = vsel %vm1533, %v2332, -3.4028235e+38
      %v2352 = vsel %vm1532, %v2317, -3.4028235e+38
      %v2353 = vsel %vm1533, %v2333, -3.4028235e+38
      %v2354 = vsel %vm1532, %v2318, -3.4028235e+38
      %v2355 = vsel %vm1533, %v2334, -3.4028235e+38
      %v2356 = vsel %vm1532, %v2319, -3.4028235e+38
      %v2357 = vsel %vm1533, %v2335, -3.4028235e+38
      %v2358 = vsel %vm1532, %v2320, -3.4028235e+38
      %v2359 = vsel %vm1533, %v2336, -3.4028235e+38
      %v2360 = vsel %vm1532, %v2321, -3.4028235e+38
      %v2361 = vsel %vm1533, %v2337, -3.4028235e+38
      %v2362 = vsel %vm1532, %v2322, -3.4028235e+38
      %v2363 = vsel %vm1533, %v2338, -3.4028235e+38
      %v2364 = vsel %vm1532, %v2323, -3.4028235e+38
      %v2365 = vsel %vm1533, %v2339, -3.4028235e+38
      %v2366 = vsel %vm1532, %v2324, -3.4028235e+38
      %v2367 = vsel %vm1533, %v2340, -3.4028235e+38
      %v2368 = vsel %vm1532, %v2325, -3.4028235e+38
      %v2369 = vsel %vm1533, %v2341, -3.4028235e+38
      %v2370 = vsel %vm1532, %v2326, -3.4028235e+38
      %v2371 = vsel %vm1533, %v2342, -3.4028235e+38
      %v2372 = vsel %vm1532, %v2327, -3.4028235e+38
      %v2373 = vsel %vm1533, %v2343, -3.4028235e+38
      %v2374 = vsel %vm1532, %v2328, -3.4028235e+38
      %v2375 = vsel %vm1533, %v2344, -3.4028235e+38
      %v2376 = vsel %vm1532, %v2329, -3.4028235e+38
      %v2377 = vsel %vm1533, %v2345, -3.4028235e+38
      %v2378 = vmax.f32 %v2250, %v2346
      %v2379 = vmax.f32 %v2251, %v2347
      %v2380 = vmax.f32 %v2252, %v2348
      %v2381 = vmax.f32 %v2253, %v2349
      %v2382 = vmax.f32 %v2254, %v2350
      %v2383 = vmax.f32 %v2255, %v2351
      %v2384 = vmax.f32 %v2256, %v2352
      %v2385 = vmax.f32 %v2257, %v2353
      %v2386 = vmax.f32 %v2258, %v2354
      %v2387 = vmax.f32 %v2259, %v2355
      %v2388 = vmax.f32 %v2260, %v2356
      %v2389 = vmax.f32 %v2261, %v2357
      %v2390 = vmax.f32 %v2262, %v2358
      %v2391 = vmax.f32 %v2263, %v2359
      %v2392 = vmax.f32 %v2264, %v2360
      %v2393 = vmax.f32 %v2265, %v2361
      %v2394 = vmax.f32 %v2266, %v2362
      %v2395 = vmax.f32 %v2267, %v2363
      %v2396 = vmax.f32 %v2268, %v2364
      %v2397 = vmax.f32 %v2269, %v2365
      %v2398 = vmax.f32 %v2270, %v2366
      %v2399 = vmax.f32 %v2271, %v2367
      %v2400 = vmax.f32 %v2272, %v2368
      %v2401 = vmax.f32 %v2273, %v2369
      %v2402 = vmax.f32 %v2274, %v2370
      %v2403 = vmax.f32 %v2275, %v2371
      %v2404 = vmax.f32 %v2276, %v2372
      %v2405 = vmax.f32 %v2277, %v2373
      %v2406 = vmax.f32 %v2278, %v2374
      %v2407 = vmax.f32 %v2279, %v2375
      %v2408 = vmax.f32 %v2280, %v2376
      %v2409 = vmax.f32 %v2281, %v2377
      %2410 = vst.msk [vmem:[%s763] sm:$0xff] %vm690, %v2378
      %2411 = vst.msk [vmem:[%s763 + $0x8] sm:$0xff] %vm690, %v2379
      %2412 = vst.msk [vmem:[%s763 + $0x10] sm:$0xff] %vm690, %v2380
      %2413 = vst.msk [vmem:[%s763 + $0x18] sm:$0xff] %vm690, %v2381
      %2414 = vst.msk [vmem:[%s763 + $0x20] sm:$0xff] %vm690, %v2382
      %2415 = vst.msk [vmem:[%s763 + $0x28] sm:$0xff] %vm690, %v2383
      %2416 = vst.msk [vmem:[%s763 + $0x30] sm:$0xff] %vm690, %v2384
      %2417 = vst.msk [vmem:[%s763 + $0x38] sm:$0xff] %vm690, %v2385
      %2418 = vst.msk [vmem:[%s763 + $0x40] sm:$0xff] %vm690, %v2386
      %2419 = vst.msk [vmem:[%s763 + $0x48] sm:$0xff] %vm690, %v2387
      %2420 = vst.msk [vmem:[%s763 + $0x50] sm:$0xff] %vm690, %v2388
      %2421 = vst.msk [vmem:[%s763 + $0x58] sm:$0xff] %vm690, %v2389
      %2422 = vst.msk [vmem:[%s763 + $0x60] sm:$0xff] %vm690, %v2390
      %2423 = vst.msk [vmem:[%s763 + $0x68] sm:$0xff] %vm690, %v2391
      %2424 = vst.msk [vmem:[%s763 + $0x70] sm:$0xff] %vm690, %v2392
      %2425 = vst.msk [vmem:[%s763 + $0x78] sm:$0xff] %vm690, %v2393
      %2426 = vst.msk [vmem:[%s763 + $0x80] sm:$0xff] %vm690, %v2394
      %2427 = vst.msk [vmem:[%s763 + $0x88] sm:$0xff] %vm690, %v2395
      %2428 = vst.msk [vmem:[%s763 + $0x90] sm:$0xff] %vm690, %v2396
      %2429 = vst.msk [vmem:[%s763 + $0x98] sm:$0xff] %vm690, %v2397
      %2430 = vst.msk [vmem:[%s763 + $0xa0] sm:$0xff] %vm690, %v2398
      %2431 = vst.msk [vmem:[%s763 + $0xa8] sm:$0xff] %vm690, %v2399
      %2432 = vst.msk [vmem:[%s763 + $0xb0] sm:$0xff] %vm690, %v2400
      %2433 = vst.msk [vmem:[%s763 + $0xb8] sm:$0xff] %vm690, %v2401
      %2434 = vst.msk [vmem:[%s763 + $0xc0] sm:$0xff] %vm690, %v2402
      %2435 = vst.msk [vmem:[%s763 + $0xc8] sm:$0xff] %vm690, %v2403
      %2436 = vst.msk [vmem:[%s763 + $0xd0] sm:$0xff] %vm690, %v2404
      %2437 = vst.msk [vmem:[%s763 + $0xd8] sm:$0xff] %vm690, %v2405
      %2438 = vst.msk [vmem:[%s763 + $0xe0] sm:$0xff] %vm690, %v2406
      %2439 = vst.msk [vmem:[%s763 + $0xe8] sm:$0xff] %vm690, %v2407
      %2440 = vst.msk [vmem:[%s763 + $0xf0] sm:$0xff] %vm690, %v2408
      %2441 = vst.msk [vmem:[%s763 + $0xf8] sm:$0xff] %vm690, %v2409
      %v2442 = vld [vmem:[%s798] sm:$0xff]
      %v2443 = vld [vmem:[%s798 + $0x8] sm:$0xff]
      %v2444 = vld [vmem:[%s798 + $0x10] sm:$0xff]
      %v2445 = vld [vmem:[%s798 + $0x18] sm:$0xff]
      %v2446 = vld [vmem:[%s798 + $0x20] sm:$0xff]
      %v2447 = vld [vmem:[%s798 + $0x28] sm:$0xff]
      %v2448 = vld [vmem:[%s798 + $0x30] sm:$0xff]
      %v2449 = vld [vmem:[%s798 + $0x38] sm:$0xff]
      %v2450 = vpack.c.bf16 %v2443, %v2442
      %v2451 = vpack.c.bf16 %v2445, %v2444
      %v2452 = vpack.c.bf16 %v2447, %v2446
      %v2453 = vpack.c.bf16 %v2449, %v2448
      %v2454 = vld [vmem:[%s811] sm:$0xff]
      %v2455 = vld [vmem:[%s811 + $0x8] sm:$0xff]
      %v2456 = vld [vmem:[%s811 + $0x10] sm:$0xff]
      %v2457 = vld [vmem:[%s811 + $0x18] sm:$0xff]
      %v2458 = vld [vmem:[%s811 + $0x20] sm:$0xff]
      %v2459 = vld [vmem:[%s811 + $0x28] sm:$0xff]
      %v2460 = vld [vmem:[%s811 + $0x30] sm:$0xff]
      %v2461 = vld [vmem:[%s811 + $0x38] sm:$0xff]
      %v2462 = vld [vmem:[%s811 + $0x40] sm:$0xff]
      %v2463 = vld [vmem:[%s811 + $0x48] sm:$0xff]
      %v2464 = vld [vmem:[%s811 + $0x50] sm:$0xff]
      %v2465 = vld [vmem:[%s811 + $0x58] sm:$0xff]
      %v2466 = vld [vmem:[%s811 + $0x60] sm:$0xff]
      %v2467 = vld [vmem:[%s811 + $0x68] sm:$0xff]
      %v2468 = vld [vmem:[%s811 + $0x70] sm:$0xff]
      %v2469 = vld [vmem:[%s811 + $0x78] sm:$0xff]
      %v2470 = vld [vmem:[%s811 + $0x80] sm:$0xff]
      %v2471 = vld [vmem:[%s811 + $0x88] sm:$0xff]
      %v2472 = vld [vmem:[%s811 + $0x90] sm:$0xff]
      %v2473 = vld [vmem:[%s811 + $0x98] sm:$0xff]
      %v2474 = vld [vmem:[%s811 + $0xa0] sm:$0xff]
      %v2475 = vld [vmem:[%s811 + $0xa8] sm:$0xff]
      %v2476 = vld [vmem:[%s811 + $0xb0] sm:$0xff]
      %v2477 = vld [vmem:[%s811 + $0xb8] sm:$0xff]
      %v2478 = vld [vmem:[%s811 + $0xc0] sm:$0xff]
      %v2479 = vld [vmem:[%s811 + $0xc8] sm:$0xff]
      %v2480 = vld [vmem:[%s811 + $0xd0] sm:$0xff]
      %v2481 = vld [vmem:[%s811 + $0xd8] sm:$0xff]
      %v2482 = vld [vmem:[%s811 + $0xe0] sm:$0xff]
      %v2483 = vld [vmem:[%s811 + $0xe8] sm:$0xff]
      %v2484 = vld [vmem:[%s811 + $0xf0] sm:$0xff]
      %v2485 = vld [vmem:[%s811 + $0xf8] sm:$0xff]
      %v2486 = vmax.f32 %v2378, %v2454
      %v2487 = vmax.f32 %v2379, %v2455
      %v2488 = vmax.f32 %v2380, %v2456
      %v2489 = vmax.f32 %v2381, %v2457
      %v2490 = vmax.f32 %v2382, %v2458
      %v2491 = vmax.f32 %v2383, %v2459
      %v2492 = vmax.f32 %v2384, %v2460
      %v2493 = vmax.f32 %v2385, %v2461
      %v2494 = vmax.f32 %v2386, %v2462
      %v2495 = vmax.f32 %v2387, %v2463
      %v2496 = vmax.f32 %v2388, %v2464
      %v2497 = vmax.f32 %v2389, %v2465
      %v2498 = vmax.f32 %v2390, %v2466
      %v2499 = vmax.f32 %v2391, %v2467
      %v2500 = vmax.f32 %v2392, %v2468
      %v2501 = vmax.f32 %v2393, %v2469
      %v2502 = vmax.f32 %v2394, %v2470
      %v2503 = vmax.f32 %v2395, %v2471
      %v2504 = vmax.f32 %v2396, %v2472
      %v2505 = vmax.f32 %v2397, %v2473
      %v2506 = vmax.f32 %v2398, %v2474
      %v2507 = vmax.f32 %v2399, %v2475
      %v2508 = vmax.f32 %v2400, %v2476
      %v2509 = vmax.f32 %v2401, %v2477
      %v2510 = vmax.f32 %v2402, %v2478
      %v2511 = vmax.f32 %v2403, %v2479
      %v2512 = vmax.f32 %v2404, %v2480
      %v2513 = vmax.f32 %v2405, %v2481
      %v2514 = vmax.f32 %v2406, %v2482
      %v2515 = vmax.f32 %v2407, %v2483
      %v2516 = vmax.f32 %v2408, %v2484
      %v2517 = vmax.f32 %v2409, %v2485
      %v2518 = vld [vmem:[%s876] sm:$0xff]
      %v2519 = vld [vmem:[%s876 + $0x8] sm:$0xff]
      %v2520 = vld [vmem:[%s876 + $0x10] sm:$0xff]
      %v2521 = vld [vmem:[%s876 + $0x18] sm:$0xff]
      %v2522 = vld [vmem:[%s876 + $0x20] sm:$0xff]
      %v2523 = vld [vmem:[%s876 + $0x28] sm:$0xff]
      %v2524 = vld [vmem:[%s876 + $0x30] sm:$0xff]
      %v2525 = vld [vmem:[%s876 + $0x38] sm:$0xff]
      %v2526 = vld [vmem:[%s876 + $0x40] sm:$0xff]
      %v2527 = vld [vmem:[%s876 + $0x48] sm:$0xff]
      %v2528 = vld [vmem:[%s876 + $0x50] sm:$0xff]
      %v2529 = vld [vmem:[%s876 + $0x58] sm:$0xff]
      %v2530 = vld [vmem:[%s876 + $0x60] sm:$0xff]
      %v2531 = vld [vmem:[%s876 + $0x68] sm:$0xff]
      %v2532 = vld [vmem:[%s876 + $0x70] sm:$0xff]
      %v2533 = vld [vmem:[%s876 + $0x78] sm:$0xff]
      %v2534 = vld [vmem:[%s876 + $0x80] sm:$0xff]
      %v2535 = vld [vmem:[%s876 + $0x88] sm:$0xff]
      %v2536 = vld [vmem:[%s876 + $0x90] sm:$0xff]
      %v2537 = vld [vmem:[%s876 + $0x98] sm:$0xff]
      %v2538 = vld [vmem:[%s876 + $0xa0] sm:$0xff]
      %v2539 = vld [vmem:[%s876 + $0xa8] sm:$0xff]
      %v2540 = vld [vmem:[%s876 + $0xb0] sm:$0xff]
      %v2541 = vld [vmem:[%s876 + $0xb8] sm:$0xff]
      %v2542 = vld [vmem:[%s876 + $0xc0] sm:$0xff]
      %v2543 = vld [vmem:[%s876 + $0xc8] sm:$0xff]
      %v2544 = vld [vmem:[%s876 + $0xd0] sm:$0xff]
      %v2545 = vld [vmem:[%s876 + $0xd8] sm:$0xff]
      %v2546 = vld [vmem:[%s876 + $0xe0] sm:$0xff]
      %v2547 = vld [vmem:[%s876 + $0xe8] sm:$0xff]
      %v2548 = vld [vmem:[%s876 + $0xf0] sm:$0xff]
      %v2549 = vld [vmem:[%s876 + $0xf8] sm:$0xff]
      %v2550 = vmax.f32 %v2486, %v2518
      %v2551 = vmax.f32 %v2487, %v2519
      %v2552 = vmax.f32 %v2488, %v2520
      %v2553 = vmax.f32 %v2489, %v2521
      %v2554 = vmax.f32 %v2490, %v2522
      %v2555 = vmax.f32 %v2491, %v2523
      %v2556 = vmax.f32 %v2492, %v2524
      %v2557 = vmax.f32 %v2493, %v2525
      %v2558 = vmax.f32 %v2494, %v2526
      %v2559 = vmax.f32 %v2495, %v2527
      %v2560 = vmax.f32 %v2496, %v2528
      %v2561 = vmax.f32 %v2497, %v2529
      %v2562 = vmax.f32 %v2498, %v2530
      %v2563 = vmax.f32 %v2499, %v2531
      %v2564 = vmax.f32 %v2500, %v2532
      %v2565 = vmax.f32 %v2501, %v2533
      %v2566 = vmax.f32 %v2502, %v2534
      %v2567 = vmax.f32 %v2503, %v2535
      %v2568 = vmax.f32 %v2504, %v2536
      %v2569 = vmax.f32 %v2505, %v2537
      %v2570 = vmax.f32 %v2506, %v2538
      %v2571 = vmax.f32 %v2507, %v2539
      %v2572 = vmax.f32 %v2508, %v2540
      %v2573 = vmax.f32 %v2509, %v2541
      %v2574 = vmax.f32 %v2510, %v2542
      %v2575 = vmax.f32 %v2511, %v2543
      %v2576 = vmax.f32 %v2512, %v2544
      %v2577 = vmax.f32 %v2513, %v2545
      %v2578 = vmax.f32 %v2514, %v2546
      %v2579 = vmax.f32 %v2515, %v2547
      %v2580 = vmax.f32 %v2516, %v2548
      %v2581 = vmax.f32 %v2517, %v2549
      %v2582 = vld [vmem:[#allocation2] sm:$0xff]
      %v2583 = vld [vmem:[#allocation2 + $0x8] sm:$0xff]
      %v2584 = vld [vmem:[#allocation2 + $0x10] sm:$0xff]
      %v2585 = vld [vmem:[#allocation2 + $0x18] sm:$0xff]
      %v2586 = vld [vmem:[#allocation2 + $0x20] sm:$0xff]
      %v2587 = vld [vmem:[#allocation2 + $0x28] sm:$0xff]
      %v2588 = vld [vmem:[#allocation2 + $0x30] sm:$0xff]
      %v2589 = vld [vmem:[#allocation2 + $0x38] sm:$0xff]
      %v2590 = vld [vmem:[#allocation2 + $0x40] sm:$0xff]
      %v2591 = vld [vmem:[#allocation2 + $0x48] sm:$0xff]
      %v2592 = vld [vmem:[#allocation2 + $0x50] sm:$0xff]
      %v2593 = vld [vmem:[#allocation2 + $0x58] sm:$0xff]
      %v2594 = vld [vmem:[#allocation2 + $0x60] sm:$0xff]
      %v2595 = vld [vmem:[#allocation2 + $0x68] sm:$0xff]
      %v2596 = vld [vmem:[#allocation2 + $0x70] sm:$0xff]
      %v2597 = vld [vmem:[#allocation2 + $0x78] sm:$0xff]
      %v2598 = vld [vmem:[#allocation2 + $0x80] sm:$0xff]
      %v2599 = vld [vmem:[#allocation2 + $0x88] sm:$0xff]
      %v2600 = vld [vmem:[#allocation2 + $0x90] sm:$0xff]
      %v2601 = vld [vmem:[#allocation2 + $0x98] sm:$0xff]
      %v2602 = vld [vmem:[#allocation2 + $0xa0] sm:$0xff]
      %v2603 = vld [vmem:[#allocation2 + $0xa8] sm:$0xff]
      %v2604 = vld [vmem:[#allocation2 + $0xb0] sm:$0xff]
      %v2605 = vld [vmem:[#allocation2 + $0xb8] sm:$0xff]
      %v2606 = vld [vmem:[#allocation2 + $0xc0] sm:$0xff]
      %v2607 = vld [vmem:[#allocation2 + $0xc8] sm:$0xff]
      %v2608 = vld [vmem:[#allocation2 + $0xd0] sm:$0xff]
      %v2609 = vld [vmem:[#allocation2 + $0xd8] sm:$0xff]
      %v2610 = vld [vmem:[#allocation2 + $0xe0] sm:$0xff]
      %v2611 = vld [vmem:[#allocation2 + $0xe8] sm:$0xff]
      %v2612 = vld [vmem:[#allocation2 + $0xf0] sm:$0xff]
      %v2613 = vld [vmem:[#allocation2 + $0xf8] sm:$0xff]
      %v2614 = vmax.f32 %v2550, %v2582
      %v2615 = vmax.f32 %v2551, %v2583
      %v2616 = vmax.f32 %v2552, %v2584
      %v2617 = vmax.f32 %v2553, %v2585
      %v2618 = vmax.f32 %v2554, %v2586
      %v2619 = vmax.f32 %v2555, %v2587
      %v2620 = vmax.f32 %v2556, %v2588
      %v2621 = vmax.f32 %v2557, %v2589
      %v2622 = vmax.f32 %v2558, %v2590
      %v2623 = vmax.f32 %v2559, %v2591
      %v2624 = vmax.f32 %v2560, %v2592
      %v2625 = vmax.f32 %v2561, %v2593
      %v2626 = vmax.f32 %v2562, %v2594
      %v2627 = vmax.f32 %v2563, %v2595
      %v2628 = vmax.f32 %v2564, %v2596
      %v2629 = vmax.f32 %v2565, %v2597
      %v2630 = vmax.f32 %v2566, %v2598
      %v2631 = vmax.f32 %v2567, %v2599
      %v2632 = vmax.f32 %v2568, %v2600
      %v2633 = vmax.f32 %v2569, %v2601
      %v2634 = vmax.f32 %v2570, %v2602
      %v2635 = vmax.f32 %v2571, %v2603
      %v2636 = vmax.f32 %v2572, %v2604
      %v2637 = vmax.f32 %v2573, %v2605
      %v2638 = vmax.f32 %v2574, %v2606
      %v2639 = vmax.f32 %v2575, %v2607
      %v2640 = vmax.f32 %v2576, %v2608
      %v2641 = vmax.f32 %v2577, %v2609
      %v2642 = vmax.f32 %v2578, %v2610
      %v2643 = vmax.f32 %v2579, %v2611
      %v2644 = vmax.f32 %v2580, %v2612
      %v2645 = vmax.f32 %v2581, %v2613
      %v2646 = vld [vmem:[%s1005] sm:$0xff]
      %v2647 = vld [vmem:[%s1005 + $0x8] sm:$0xff]
      %v2648 = vld [vmem:[%s1005 + $0x10] sm:$0xff]
      %v2649 = vld [vmem:[%s1005 + $0x18] sm:$0xff]
      %v2650 = vld [vmem:[%s1005 + $0x20] sm:$0xff]
      %v2651 = vld [vmem:[%s1005 + $0x28] sm:$0xff]
      %v2652 = vld [vmem:[%s1005 + $0x30] sm:$0xff]
      %v2653 = vld [vmem:[%s1005 + $0x38] sm:$0xff]
      %v2654 = vld [vmem:[%s1005 + $0x40] sm:$0xff]
      %v2655 = vld [vmem:[%s1005 + $0x48] sm:$0xff]
      %v2656 = vld [vmem:[%s1005 + $0x50] sm:$0xff]
      %v2657 = vld [vmem:[%s1005 + $0x58] sm:$0xff]
      %v2658 = vld [vmem:[%s1005 + $0x60] sm:$0xff]
      %v2659 = vld [vmem:[%s1005 + $0x68] sm:$0xff]
      %v2660 = vld [vmem:[%s1005 + $0x70] sm:$0xff]
      %v2661 = vld [vmem:[%s1005 + $0x78] sm:$0xff]
      %v2662 = vld [vmem:[%s1005 + $0x80] sm:$0xff]
      %v2663 = vld [vmem:[%s1005 + $0x88] sm:$0xff]
      %v2664 = vld [vmem:[%s1005 + $0x90] sm:$0xff]
      %v2665 = vld [vmem:[%s1005 + $0x98] sm:$0xff]
      %v2666 = vld [vmem:[%s1005 + $0xa0] sm:$0xff]
      %v2667 = vld [vmem:[%s1005 + $0xa8] sm:$0xff]
      %v2668 = vld [vmem:[%s1005 + $0xb0] sm:$0xff]
      %v2669 = vld [vmem:[%s1005 + $0xb8] sm:$0xff]
      %v2670 = vld [vmem:[%s1005 + $0xc0] sm:$0xff]
      %v2671 = vld [vmem:[%s1005 + $0xc8] sm:$0xff]
      %v2672 = vld [vmem:[%s1005 + $0xd0] sm:$0xff]
      %v2673 = vld [vmem:[%s1005 + $0xd8] sm:$0xff]
      %v2674 = vld [vmem:[%s1005 + $0xe0] sm:$0xff]
      %v2675 = vld [vmem:[%s1005 + $0xe8] sm:$0xff]
      %v2676 = vld [vmem:[%s1005 + $0xf0] sm:$0xff]
      %v2677 = vld [vmem:[%s1005 + $0xf8] sm:$0xff]
      %v2678 = vmax.f32 %v2614, %v2646
      %v2679 = vmax.f32 %v2615, %v2647
      %v2680 = vmax.f32 %v2616, %v2648
      %v2681 = vmax.f32 %v2617, %v2649
      %v2682 = vmax.f32 %v2618, %v2650
      %v2683 = vmax.f32 %v2619, %v2651
      %v2684 = vmax.f32 %v2620, %v2652
      %v2685 = vmax.f32 %v2621, %v2653
      %v2686 = vmax.f32 %v2622, %v2654
      %v2687 = vmax.f32 %v2623, %v2655
      %v2688 = vmax.f32 %v2624, %v2656
      %v2689 = vmax.f32 %v2625, %v2657
      %v2690 = vmax.f32 %v2626, %v2658
      %v2691 = vmax.f32 %v2627, %v2659
      %v2692 = vmax.f32 %v2628, %v2660
      %v2693 = vmax.f32 %v2629, %v2661
      %v2694 = vmax.f32 %v2630, %v2662
      %v2695 = vmax.f32 %v2631, %v2663
      %v2696 = vmax.f32 %v2632, %v2664
      %v2697 = vmax.f32 %v2633, %v2665
      %v2698 = vmax.f32 %v2634, %v2666
      %v2699 = vmax.f32 %v2635, %v2667
      %v2700 = vmax.f32 %v2636, %v2668
      %v2701 = vmax.f32 %v2637, %v2669
      %v2702 = vmax.f32 %v2638, %v2670
      %v2703 = vmax.f32 %v2639, %v2671
      %v2704 = vmax.f32 %v2640, %v2672
      %v2705 = vmax.f32 %v2641, %v2673
      %v2706 = vmax.f32 %v2642, %v2674
      %v2707 = vmax.f32 %v2643, %v2675
      %v2708 = vmax.f32 %v2644, %v2676
      %v2709 = vmax.f32 %v2645, %v2677
      %v2710 = vrot.slane %v2678, 7
      %v2711 = vrot.slane %v2680, 7
      %v2712 = vrot.slane %v2682, 7
      %v2713 = vrot.slane %v2684, 7
      %v2714 = vrot.slane %v2686, 7
      %v2715 = vrot.slane %v2688, 7
      %v2716 = vrot.slane %v2690, 7
      %v2717 = vrot.slane %v2692, 7
      %v2718 = vrot.slane %v2694, 7
      %v2719 = vrot.slane %v2696, 7
      %v2720 = vrot.slane %v2698, 7
      %v2721 = vrot.slane %v2700, 7
      %v2722 = vrot.slane %v2702, 7
      %v2723 = vrot.slane %v2704, 7
      %v2724 = vrot.slane %v2706, 7
      %v2725 = vrot.slane %v2708, 7
      %v2726 = vrot.slane %v2679, 7
      %v2727 = vrot.slane %v2681, 7
      %v2728 = vrot.slane %v2683, 7
      %v2729 = vrot.slane %v2685, 7
      %v2730 = vrot.slane %v2687, 7
      %v2731 = vrot.slane %v2689, 7
      %v2732 = vrot.slane %v2691, 7
      %v2733 = vrot.slane %v2693, 7
      %v2734 = vrot.slane %v2695, 7
      %v2735 = vrot.slane %v2697, 7
      %v2736 = vrot.slane %v2699, 7
      %v2737 = vrot.slane %v2701, 7
      %v2738 = vrot.slane %v2703, 7
      %v2739 = vrot.slane %v2705, 7
      %v2740 = vrot.slane %v2707, 7
      %v2741 = vrot.slane %v2709, 7
      %v2742 = vsel %vm705, %v2710, %v2726
      %v2743 = vsel %vm705, %v2711, %v2727
      %v2744 = vsel %vm705, %v2712, %v2728
      %v2745 = vsel %vm705, %v2713, %v2729
      %v2746 = vsel %vm705, %v2714, %v2730
      %v2747 = vsel %vm705, %v2715, %v2731
      %v2748 = vsel %vm705, %v2716, %v2732
      %v2749 = vsel %vm705, %v2717, %v2733
      %v2750 = vsel %vm705, %v2718, %v2734
      %v2751 = vsel %vm705, %v2719, %v2735
      %v2752 = vsel %vm705, %v2720, %v2736
      %v2753 = vsel %vm705, %v2721, %v2737
      %v2754 = vsel %vm705, %v2722, %v2738
      %v2755 = vsel %vm705, %v2723, %v2739
      %v2756 = vsel %vm705, %v2724, %v2740
      %v2757 = vsel %vm705, %v2725, %v2741
      %v2758 = vsel %vm705, %v2726, %v2710
      %v2759 = vsel %vm705, %v2727, %v2711
      %v2760 = vsel %vm705, %v2728, %v2712
      %v2761 = vsel %vm705, %v2729, %v2713
      %v2762 = vsel %vm705, %v2730, %v2714
      %v2763 = vsel %vm705, %v2731, %v2715
      %v2764 = vsel %vm705, %v2732, %v2716
      %v2765 = vsel %vm705, %v2733, %v2717
      %v2766 = vsel %vm705, %v2734, %v2718
      %v2767 = vsel %vm705, %v2735, %v2719
      %v2768 = vsel %vm705, %v2736, %v2720
      %v2769 = vsel %vm705, %v2737, %v2721
      %v2770 = vsel %vm705, %v2738, %v2722
      %v2771 = vsel %vm705, %v2739, %v2723
      %v2772 = vsel %vm705, %v2740, %v2724
      %v2773 = vsel %vm705, %v2741, %v2725
      %v2774 = vsel %vm1136, %v2758, -3.4028235e+38
      %v2775 = vsel %vm1137, %v2742, -3.4028235e+38
      %v2776 = vsel %vm1136, %v2759, -3.4028235e+38
      %v2777 = vsel %vm1137, %v2743, -3.4028235e+38
      %v2778 = vsel %vm1136, %v2760, -3.4028235e+38
      %v2779 = vsel %vm1137, %v2744, -3.4028235e+38
      %v2780 = vsel %vm1136, %v2761, -3.4028235e+38
      %v2781 = vsel %vm1137, %v2745, -3.4028235e+38
      %v2782 = vsel %vm1136, %v2762, -3.4028235e+38
      %v2783 = vsel %vm1137, %v2746, -3.4028235e+38
      %v2784 = vsel %vm1136, %v2763, -3.4028235e+38
      %v2785 = vsel %vm1137, %v2747, -3.4028235e+38
      %v2786 = vsel %vm1136, %v2764, -3.4028235e+38
      %v2787 = vsel %vm1137, %v2748, -3.4028235e+38
      %v2788 = vsel %vm1136, %v2765, -3.4028235e+38
      %v2789 = vsel %vm1137, %v2749, -3.4028235e+38
      %v2790 = vsel %vm1136, %v2766, -3.4028235e+38
      %v2791 = vsel %vm1137, %v2750, -3.4028235e+38
      %v2792 = vsel %vm1136, %v2767, -3.4028235e+38
      %v2793 = vsel %vm1137, %v2751, -3.4028235e+38
      %v2794 = vsel %vm1136, %v2768, -3.4028235e+38
      %v2795 = vsel %vm1137, %v2752, -3.4028235e+38
      %v2796 = vsel %vm1136, %v2769, -3.4028235e+38
      %v2797 = vsel %vm1137, %v2753, -3.4028235e+38
      %v2798 = vsel %vm1136, %v2770, -3.4028235e+38
      %v2799 = vsel %vm1137, %v2754, -3.4028235e+38
      %v2800 = vsel %vm1136, %v2771, -3.4028235e+38
      %v2801 = vsel %vm1137, %v2755, -3.4028235e+38
      %v2802 = vsel %vm1136, %v2772, -3.4028235e+38
      %v2803 = vsel %vm1137, %v2756, -3.4028235e+38
      %v2804 = vsel %vm1136, %v2773, -3.4028235e+38
      %v2805 = vsel %vm1137, %v2757, -3.4028235e+38
      %v2806 = vmax.f32 %v2678, %v2774
      %v2807 = vmax.f32 %v2679, %v2775
      %v2808 = vmax.f32 %v2680, %v2776
      %v2809 = vmax.f32 %v2681, %v2777
      %v2810 = vmax.f32 %v2682, %v2778
      %v2811 = vmax.f32 %v2683, %v2779
      %v2812 = vmax.f32 %v2684, %v2780
      %v2813 = vmax.f32 %v2685, %v2781
      %v2814 = vmax.f32 %v2686, %v2782
      %v2815 = vmax.f32 %v2687, %v2783
      %v2816 = vmax.f32 %v2688, %v2784
      %v2817 = vmax.f32 %v2689, %v2785
      %v2818 = vmax.f32 %v2690, %v2786
      %v2819 = vmax.f32 %v2691, %v2787
      %v2820 = vmax.f32 %v2692, %v2788
      %v2821 = vmax.f32 %v2693, %v2789
      %v2822 = vmax.f32 %v2694, %v2790
      %v2823 = vmax.f32 %v2695, %v2791
      %v2824 = vmax.f32 %v2696, %v2792
      %v2825 = vmax.f32 %v2697, %v2793
      %v2826 = vmax.f32 %v2698, %v2794
      %v2827 = vmax.f32 %v2699, %v2795
      %v2828 = vmax.f32 %v2700, %v2796
      %v2829 = vmax.f32 %v2701, %v2797
      %v2830 = vmax.f32 %v2702, %v2798
      %v2831 = vmax.f32 %v2703, %v2799
      %v2832 = vmax.f32 %v2704, %v2800
      %v2833 = vmax.f32 %v2705, %v2801
      %v2834 = vmax.f32 %v2706, %v2802
      %v2835 = vmax.f32 %v2707, %v2803
      %v2836 = vmax.f32 %v2708, %v2804
      %v2837 = vmax.f32 %v2709, %v2805
      %v2838 = vrot.slane %v2678, 1
      %v2839 = vrot.slane %v2680, 1
      %v2840 = vrot.slane %v2682, 1
      %v2841 = vrot.slane %v2684, 1
      %v2842 = vrot.slane %v2686, 1
      %v2843 = vrot.slane %v2688, 1
      %v2844 = vrot.slane %v2690, 1
      %v2845 = vrot.slane %v2692, 1
      %v2846 = vrot.slane %v2694, 1
      %v2847 = vrot.slane %v2696, 1
      %v2848 = vrot.slane %v2698, 1
      %v2849 = vrot.slane %v2700, 1
      %v2850 = vrot.slane %v2702, 1
      %v2851 = vrot.slane %v2704, 1
      %v2852 = vrot.slane %v2706, 1
      %v2853 = vrot.slane %v2708, 1
      %v2854 = vrot.slane %v2679, 1
      %v2855 = vrot.slane %v2681, 1
      %v2856 = vrot.slane %v2683, 1
      %v2857 = vrot.slane %v2685, 1
      %v2858 = vrot.slane %v2687, 1
      %v2859 = vrot.slane %v2689, 1
      %v2860 = vrot.slane %v2691, 1
      %v2861 = vrot.slane %v2693, 1
      %v2862 = vrot.slane %v2695, 1
      %v2863 = vrot.slane %v2697, 1
      %v2864 = vrot.slane %v2699, 1
      %v2865 = vrot.slane %v2701, 1
      %v2866 = vrot.slane %v2703, 1
      %v2867 = vrot.slane %v2705, 1
      %v2868 = vrot.slane %v2707, 1
      %v2869 = vrot.slane %v2709, 1
      %v2870 = vsel %vm720, %v2838, %v2854
      %v2871 = vsel %vm720, %v2839, %v2855
      %v2872 = vsel %vm720, %v2840, %v2856
      %v2873 = vsel %vm720, %v2841, %v2857
      %v2874 = vsel %vm720, %v2842, %v2858
      %v2875 = vsel %vm720, %v2843, %v2859
      %v2876 = vsel %vm720, %v2844, %v2860
      %v2877 = vsel %vm720, %v2845, %v2861
      %v2878 = vsel %vm720, %v2846, %v2862
      %v2879 = vsel %vm720, %v2847, %v2863
      %v2880 = vsel %vm720, %v2848, %v2864
      %v2881 = vsel %vm720, %v2849, %v2865
      %v2882 = vsel %vm720, %v2850, %v2866
      %v2883 = vsel %vm720, %v2851, %v2867
      %v2884 = vsel %vm720, %v2852, %v2868
      %v2885 = vsel %vm720, %v2853, %v2869
      %v2886 = vsel %vm720, %v2854, %v2838
      %v2887 = vsel %vm720, %v2855, %v2839
      %v2888 = vsel %vm720, %v2856, %v2840
      %v2889 = vsel %vm720, %v2857, %v2841
      %v2890 = vsel %vm720, %v2858, %v2842
      %v2891 = vsel %vm720, %v2859, %v2843
      %v2892 = vsel %vm720, %v2860, %v2844
      %v2893 = vsel %vm720, %v2861, %v2845
      %v2894 = vsel %vm720, %v2862, %v2846
      %v2895 = vsel %vm720, %v2863, %v2847
      %v2896 = vsel %vm720, %v2864, %v2848
      %v2897 = vsel %vm720, %v2865, %v2849
      %v2898 = vsel %vm720, %v2866, %v2850
      %v2899 = vsel %vm720, %v2867, %v2851
      %v2900 = vsel %vm720, %v2868, %v2852
      %v2901 = vsel %vm720, %v2869, %v2853
      %v2902 = vsel %vm1268, %v2870, -3.4028235e+38
      %v2903 = vsel %vm1269, %v2886, -3.4028235e+38
      %v2904 = vsel %vm1268, %v2871, -3.4028235e+38
      %v2905 = vsel %vm1269, %v2887, -3.4028235e+38
      %v2906 = vsel %vm1268, %v2872, -3.4028235e+38
      %v2907 = vsel %vm1269, %v2888, -3.4028235e+38
      %v2908 = vsel %vm1268, %v2873, -3.4028235e+38
      %v2909 = vsel %vm1269, %v2889, -3.4028235e+38
      %v2910 = vsel %vm1268, %v2874, -3.4028235e+38
      %v2911 = vsel %vm1269, %v2890, -3.4028235e+38
      %v2912 = vsel %vm1268, %v2875, -3.4028235e+38
      %v2913 = vsel %vm1269, %v2891, -3.4028235e+38
      %v2914 = vsel %vm1268, %v2876, -3.4028235e+38
      %v2915 = vsel %vm1269, %v2892, -3.4028235e+38
      %v2916 = vsel %vm1268, %v2877, -3.4028235e+38
      %v2917 = vsel %vm1269, %v2893, -3.4028235e+38
      %v2918 = vsel %vm1268, %v2878, -3.4028235e+38
      %v2919 = vsel %vm1269, %v2894, -3.4028235e+38
      %v2920 = vsel %vm1268, %v2879, -3.4028235e+38
      %v2921 = vsel %vm1269, %v2895, -3.4028235e+38
      %v2922 = vsel %vm1268, %v2880, -3.4028235e+38
      %v2923 = vsel %vm1269, %v2896, -3.4028235e+38
      %v2924 = vsel %vm1268, %v2881, -3.4028235e+38
      %v2925 = vsel %vm1269, %v2897, -3.4028235e+38
      %v2926 = vsel %vm1268, %v2882, -3.4028235e+38
      %v2927 = vsel %vm1269, %v2898, -3.4028235e+38
      %v2928 = vsel %vm1268, %v2883, -3.4028235e+38
      %v2929 = vsel %vm1269, %v2899, -3.4028235e+38
      %v2930 = vsel %vm1268, %v2884, -3.4028235e+38
      %v2931 = vsel %vm1269, %v2900, -3.4028235e+38
      %v2932 = vsel %vm1268, %v2885, -3.4028235e+38
      %v2933 = vsel %vm1269, %v2901, -3.4028235e+38
      %v2934 = vmax.f32 %v2806, %v2902
      %v2935 = vmax.f32 %v2807, %v2903
      %v2936 = vmax.f32 %v2808, %v2904
      %v2937 = vmax.f32 %v2809, %v2905
      %v2938 = vmax.f32 %v2810, %v2906
      %v2939 = vmax.f32 %v2811, %v2907
      %v2940 = vmax.f32 %v2812, %v2908
      %v2941 = vmax.f32 %v2813, %v2909
      %v2942 = vmax.f32 %v2814, %v2910
      %v2943 = vmax.f32 %v2815, %v2911
      %v2944 = vmax.f32 %v2816, %v2912
      %v2945 = vmax.f32 %v2817, %v2913
      %v2946 = vmax.f32 %v2818, %v2914
      %v2947 = vmax.f32 %v2819, %v2915
      %v2948 = vmax.f32 %v2820, %v2916
      %v2949 = vmax.f32 %v2821, %v2917
      %v2950 = vmax.f32 %v2822, %v2918
      %v2951 = vmax.f32 %v2823, %v2919
      %v2952 = vmax.f32 %v2824, %v2920
      %v2953 = vmax.f32 %v2825, %v2921
      %v2954 = vmax.f32 %v2826, %v2922
      %v2955 = vmax.f32 %v2827, %v2923
      %v2956 = vmax.f32 %v2828, %v2924
      %v2957 = vmax.f32 %v2829, %v2925
      %v2958 = vmax.f32 %v2830, %v2926
      %v2959 = vmax.f32 %v2831, %v2927
      %v2960 = vmax.f32 %v2832, %v2928
      %v2961 = vmax.f32 %v2833, %v2929
      %v2962 = vmax.f32 %v2834, %v2930
      %v2963 = vmax.f32 %v2835, %v2931
      %v2964 = vmax.f32 %v2836, %v2932
      %v2965 = vmax.f32 %v2837, %v2933
      %v2966 = vrot.slane %v2678, 6
      %v2967 = vrot.slane %v2680, 6
      %v2968 = vrot.slane %v2682, 6
      %v2969 = vrot.slane %v2684, 6
      %v2970 = vrot.slane %v2686, 6
      %v2971 = vrot.slane %v2688, 6
      %v2972 = vrot.slane %v2690, 6
      %v2973 = vrot.slane %v2692, 6
      %v2974 = vrot.slane %v2694, 6
      %v2975 = vrot.slane %v2696, 6
      %v2976 = vrot.slane %v2698, 6
      %v2977 = vrot.slane %v2700, 6
      %v2978 = vrot.slane %v2702, 6
      %v2979 = vrot.slane %v2704, 6
      %v2980 = vrot.slane %v2706, 6
      %v2981 = vrot.slane %v2708, 6
      %v2982 = vrot.slane %v2679, 6
      %v2983 = vrot.slane %v2681, 6
      %v2984 = vrot.slane %v2683, 6
      %v2985 = vrot.slane %v2685, 6
      %v2986 = vrot.slane %v2687, 6
      %v2987 = vrot.slane %v2689, 6
      %v2988 = vrot.slane %v2691, 6
      %v2989 = vrot.slane %v2693, 6
      %v2990 = vrot.slane %v2695, 6
      %v2991 = vrot.slane %v2697, 6
      %v2992 = vrot.slane %v2699, 6
      %v2993 = vrot.slane %v2701, 6
      %v2994 = vrot.slane %v2703, 6
      %v2995 = vrot.slane %v2705, 6
      %v2996 = vrot.slane %v2707, 6
      %v2997 = vrot.slane %v2709, 6
      %v2998 = vsel %vm735, %v2966, %v2982
      %v2999 = vsel %vm735, %v2967, %v2983
      %v3000 = vsel %vm735, %v2968, %v2984
      %v3001 = vsel %vm735, %v2969, %v2985
      %v3002 = vsel %vm735, %v2970, %v2986
      %v3003 = vsel %vm735, %v2971, %v2987
      %v3004 = vsel %vm735, %v2972, %v2988
      %v3005 = vsel %vm735, %v2973, %v2989
      %v3006 = vsel %vm735, %v2974, %v2990
      %v3007 = vsel %vm735, %v2975, %v2991
      %v3008 = vsel %vm735, %v2976, %v2992
      %v3009 = vsel %vm735, %v2977, %v2993
      %v3010 = vsel %vm735, %v2978, %v2994
      %v3011 = vsel %vm735, %v2979, %v2995
      %v3012 = vsel %vm735, %v2980, %v2996
      %v3013 = vsel %vm735, %v2981, %v2997
      %v3014 = vsel %vm735, %v2982, %v2966
      %v3015 = vsel %vm735, %v2983, %v2967
      %v3016 = vsel %vm735, %v2984, %v2968
      %v3017 = vsel %vm735, %v2985, %v2969
      %v3018 = vsel %vm735, %v2986, %v2970
      %v3019 = vsel %vm735, %v2987, %v2971
      %v3020 = vsel %vm735, %v2988, %v2972
      %v3021 = vsel %vm735, %v2989, %v2973
      %v3022 = vsel %vm735, %v2990, %v2974
      %v3023 = vsel %vm735, %v2991, %v2975
      %v3024 = vsel %vm735, %v2992, %v2976
      %v3025 = vsel %vm735, %v2993, %v2977
      %v3026 = vsel %vm735, %v2994, %v2978
      %v3027 = vsel %vm735, %v2995, %v2979
      %v3028 = vsel %vm735, %v2996, %v2980
      %v3029 = vsel %vm735, %v2997, %v2981
      %v3030 = vsel %vm1400, %v3014, -3.4028235e+38
      %v3031 = vsel %vm1401, %v2998, -3.4028235e+38
      %v3032 = vsel %vm1400, %v3015, -3.4028235e+38
      %v3033 = vsel %vm1401, %v2999, -3.4028235e+38
      %v3034 = vsel %vm1400, %v3016, -3.4028235e+38
      %v3035 = vsel %vm1401, %v3000, -3.4028235e+38
      %v3036 = vsel %vm1400, %v3017, -3.4028235e+38
      %v3037 = vsel %vm1401, %v3001, -3.4028235e+38
      %v3038 = vsel %vm1400, %v3018, -3.4028235e+38
      %v3039 = vsel %vm1401, %v3002, -3.4028235e+38
      %v3040 = vsel %vm1400, %v3019, -3.4028235e+38
      %v3041 = vsel %vm1401, %v3003, -3.4028235e+38
      %v3042 = vsel %vm1400, %v3020, -3.4028235e+38
      %v3043 = vsel %vm1401, %v3004, -3.4028235e+38
      %v3044 = vsel %vm1400, %v3021, -3.4028235e+38
      %v3045 = vsel %vm1401, %v3005, -3.4028235e+38
      %v3046 = vsel %vm1400, %v3022, -3.4028235e+38
      %v3047 = vsel %vm1401, %v3006, -3.4028235e+38
      %v3048 = vsel %vm1400, %v3023, -3.4028235e+38
      %v3049 = vsel %vm1401, %v3007, -3.4028235e+38
      %v3050 = vsel %vm1400, %v3024, -3.4028235e+38
      %v3051 = vsel %vm1401, %v3008, -3.4028235e+38
      %v3052 = vsel %vm1400, %v3025, -3.4028235e+38
      %v3053 = vsel %vm1401, %v3009, -3.4028235e+38
      %v3054 = vsel %vm1400, %v3026, -3.4028235e+38
      %v3055 = vsel %vm1401, %v3010, -3.4028235e+38
      %v3056 = vsel %vm1400, %v3027, -3.4028235e+38
      %v3057 = vsel %vm1401, %v3011, -3.4028235e+38
      %v3058 = vsel %vm1400, %v3028, -3.4028235e+38
      %v3059 = vsel %vm1401, %v3012, -3.4028235e+38
      %v3060 = vsel %vm1400, %v3029, -3.4028235e+38
      %v3061 = vsel %vm1401, %v3013, -3.4028235e+38
      %v3062 = vmax.f32 %v2934, %v3030
      %v3063 = vmax.f32 %v2935, %v3031
      %v3064 = vmax.f32 %v2936, %v3032
      %v3065 = vmax.f32 %v2937, %v3033
      %v3066 = vmax.f32 %v2938, %v3034
      %v3067 = vmax.f32 %v2939, %v3035
      %v3068 = vmax.f32 %v2940, %v3036
      %v3069 = vmax.f32 %v2941, %v3037
      %v3070 = vmax.f32 %v2942, %v3038
      %v3071 = vmax.f32 %v2943, %v3039
      %v3072 = vmax.f32 %v2944, %v3040
      %v3073 = vmax.f32 %v2945, %v3041
      %v3074 = vmax.f32 %v2946, %v3042
      %v3075 = vmax.f32 %v2947, %v3043
      %v3076 = vmax.f32 %v2948, %v3044
      %v3077 = vmax.f32 %v2949, %v3045
      %v3078 = vmax.f32 %v2950, %v3046
      %v3079 = vmax.f32 %v2951, %v3047
      %v3080 = vmax.f32 %v2952, %v3048
      %v3081 = vmax.f32 %v2953, %v3049
      %v3082 = vmax.f32 %v2954, %v3050
      %v3083 = vmax.f32 %v2955, %v3051
      %v3084 = vmax.f32 %v2956, %v3052
      %v3085 = vmax.f32 %v2957, %v3053
      %v3086 = vmax.f32 %v2958, %v3054
      %v3087 = vmax.f32 %v2959, %v3055
      %v3088 = vmax.f32 %v2960, %v3056
      %v3089 = vmax.f32 %v2961, %v3057
      %v3090 = vmax.f32 %v2962, %v3058
      %v3091 = vmax.f32 %v2963, %v3059
      %v3092 = vmax.f32 %v2964, %v3060
      %v3093 = vmax.f32 %v2965, %v3061
      %v3094 = vrot.slane %v2678, 2
      %v3095 = vrot.slane %v2680, 2
      %v3096 = vrot.slane %v2682, 2
      %v3097 = vrot.slane %v2684, 2
      %v3098 = vrot.slane %v2686, 2
      %v3099 = vrot.slane %v2688, 2
      %v3100 = vrot.slane %v2690, 2
      %v3101 = vrot.slane %v2692, 2
      %v3102 = vrot.slane %v2694, 2
      %v3103 = vrot.slane %v2696, 2
      %v3104 = vrot.slane %v2698, 2
      %v3105 = vrot.slane %v2700, 2
      %v3106 = vrot.slane %v2702, 2
      %v3107 = vrot.slane %v2704, 2
      %v3108 = vrot.slane %v2706, 2
      %v3109 = vrot.slane %v2708, 2
      %v3110 = vrot.slane %v2679, 2
      %v3111 = vrot.slane %v2681, 2
      %v3112 = vrot.slane %v2683, 2
      %v3113 = vrot.slane %v2685, 2
      %v3114 = vrot.slane %v2687, 2
      %v3115 = vrot.slane %v2689, 2
      %v3116 = vrot.slane %v2691, 2
      %v3117 = vrot.slane %v2693, 2
      %v3118 = vrot.slane %v2695, 2
      %v3119 = vrot.slane %v2697, 2
      %v3120 = vrot.slane %v2699, 2
      %v3121 = vrot.slane %v2701, 2
      %v3122 = vrot.slane %v2703, 2
      %v3123 = vrot.slane %v2705, 2
      %v3124 = vrot.slane %v2707, 2
      %v3125 = vrot.slane %v2709, 2
      %v3126 = vsel %vm750, %v3094, %v3110
      %v3127 = vsel %vm750, %v3095, %v3111
      %v3128 = vsel %vm750, %v3096, %v3112
      %v3129 = vsel %vm750, %v3097, %v3113
      %v3130 = vsel %vm750, %v3098, %v3114
      %v3131 = vsel %vm750, %v3099, %v3115
      %v3132 = vsel %vm750, %v3100, %v3116
      %v3133 = vsel %vm750, %v3101, %v3117
      %v3134 = vsel %vm750, %v3102, %v3118
      %v3135 = vsel %vm750, %v3103, %v3119
      %v3136 = vsel %vm750, %v3104, %v3120
      %v3137 = vsel %vm750, %v3105, %v3121
      %v3138 = vsel %vm750, %v3106, %v3122
      %v3139 = vsel %vm750, %v3107, %v3123
      %v3140 = vsel %vm750, %v3108, %v3124
      %v3141 = vsel %vm750, %v3109, %v3125
      %v3142 = vsel %vm750, %v3110, %v3094
      %v3143 = vsel %vm750, %v3111, %v3095
      %v3144 = vsel %vm750, %v3112, %v3096
      %v3145 = vsel %vm750, %v3113, %v3097
      %v3146 = vsel %vm750, %v3114, %v3098
      %v3147 = vsel %vm750, %v3115, %v3099
      %v3148 = vsel %vm750, %v3116, %v3100
      %v3149 = vsel %vm750, %v3117, %v3101
      %v3150 = vsel %vm750, %v3118, %v3102
      %v3151 = vsel %vm750, %v3119, %v3103
      %v3152 = vsel %vm750, %v3120, %v3104
      %v3153 = vsel %vm750, %v3121, %v3105
      %v3154 = vsel %vm750, %v3122, %v3106
      %v3155 = vsel %vm750, %v3123, %v3107
      %v3156 = vsel %vm750, %v3124, %v3108
      %v3157 = vsel %vm750, %v3125, %v3109
      %v3158 = vsel %vm1532, %v3126, -3.4028235e+38
      %v3159 = vsel %vm1533, %v3142, -3.4028235e+38
      %v3160 = vsel %vm1532, %v3127, -3.4028235e+38
      %v3161 = vsel %vm1533, %v3143, -3.4028235e+38
      %v3162 = vsel %vm1532, %v3128, -3.4028235e+38
      %v3163 = vsel %vm1533, %v3144, -3.4028235e+38
      %v3164 = vsel %vm1532, %v3129, -3.4028235e+38
      %v3165 = vsel %vm1533, %v3145, -3.4028235e+38
      %v3166 = vsel %vm1532, %v3130, -3.4028235e+38
      %v3167 = vsel %vm1533, %v3146, -3.4028235e+38
      %v3168 = vsel %vm1532, %v3131, -3.4028235e+38
      %v3169 = vsel %vm1533, %v3147, -3.4028235e+38
      %v3170 = vsel %vm1532, %v3132, -3.4028235e+38
      %v3171 = vsel %vm1533, %v3148, -3.4028235e+38
      %v3172 = vsel %vm1532, %v3133, -3.4028235e+38
      %v3173 = vsel %vm1533, %v3149, -3.4028235e+38
      %v3174 = vsel %vm1532, %v3134, -3.4028235e+38
      %v3175 = vsel %vm1533, %v3150, -3.4028235e+38
      %v3176 = vsel %vm1532, %v3135, -3.4028235e+38
      %v3177 = vsel %vm1533, %v3151, -3.4028235e+38
      %v3178 = vsel %vm1532, %v3136, -3.4028235e+38
      %v3179 = vsel %vm1533, %v3152, -3.4028235e+38
      %v3180 = vsel %vm1532, %v3137, -3.4028235e+38
      %v3181 = vsel %vm1533, %v3153, -3.4028235e+38
      %v3182 = vsel %vm1532, %v3138, -3.4028235e+38
      %v3183 = vsel %vm1533, %v3154, -3.4028235e+38
      %v3184 = vsel %vm1532, %v3139, -3.4028235e+38
      %v3185 = vsel %vm1533, %v3155, -3.4028235e+38
      %v3186 = vsel %vm1532, %v3140, -3.4028235e+38
      %v3187 = vsel %vm1533, %v3156, -3.4028235e+38
      %v3188 = vsel %vm1532, %v3141, -3.4028235e+38
      %v3189 = vsel %vm1533, %v3157, -3.4028235e+38
      %v3190 = vmax.f32 %v3062, %v3158
      %v3191 = vmax.f32 %v3063, %v3159
      %v3192 = vmax.f32 %v3064, %v3160
      %v3193 = vmax.f32 %v3065, %v3161
      %v3194 = vmax.f32 %v3066, %v3162
      %v3195 = vmax.f32 %v3067, %v3163
      %v3196 = vmax.f32 %v3068, %v3164
      %v3197 = vmax.f32 %v3069, %v3165
      %v3198 = vmax.f32 %v3070, %v3166
      %v3199 = vmax.f32 %v3071, %v3167
      %v3200 = vmax.f32 %v3072, %v3168
      %v3201 = vmax.f32 %v3073, %v3169
      %v3202 = vmax.f32 %v3074, %v3170
      %v3203 = vmax.f32 %v3075, %v3171
      %v3204 = vmax.f32 %v3076, %v3172
      %v3205 = vmax.f32 %v3077, %v3173
      %v3206 = vmax.f32 %v3078, %v3174
      %v3207 = vmax.f32 %v3079, %v3175
      %v3208 = vmax.f32 %v3080, %v3176
      %v3209 = vmax.f32 %v3081, %v3177
      %v3210 = vmax.f32 %v3082, %v3178
      %v3211 = vmax.f32 %v3083, %v3179
      %v3212 = vmax.f32 %v3084, %v3180
      %v3213 = vmax.f32 %v3085, %v3181
      %v3214 = vmax.f32 %v3086, %v3182
      %v3215 = vmax.f32 %v3087, %v3183
      %v3216 = vmax.f32 %v3088, %v3184
      %v3217 = vmax.f32 %v3089, %v3185
      %v3218 = vmax.f32 %v3090, %v3186
      %v3219 = vmax.f32 %v3091, %v3187
      %v3220 = vmax.f32 %v3092, %v3188
      %v3221 = vmax.f32 %v3093, %v3189
      %3222 = vst.msk [vmem:[%s763] sm:$0xff] %vm690, %v3190
      %3223 = vst.msk [vmem:[%s763 + $0x8] sm:$0xff] %vm690, %v3191
      %3224 = vst.msk [vmem:[%s763 + $0x10] sm:$0xff] %vm690, %v3192
      %3225 = vst.msk [vmem:[%s763 + $0x18] sm:$0xff] %vm690, %v3193
      %3226 = vst.msk [vmem:[%s763 + $0x20] sm:$0xff] %vm690, %v3194
      %3227 = vst.msk [vmem:[%s763 + $0x28] sm:$0xff] %vm690, %v3195
      %3228 = vst.msk [vmem:[%s763 + $0x30] sm:$0xff] %vm690, %v3196
      %3229 = vst.msk [vmem:[%s763 + $0x38] sm:$0xff] %vm690, %v3197
      %3230 = vst.msk [vmem:[%s763 + $0x40] sm:$0xff] %vm690, %v3198
      %3231 = vst.msk [vmem:[%s763 + $0x48] sm:$0xff] %vm690, %v3199
      %3232 = vst.msk [vmem:[%s763 + $0x50] sm:$0xff] %vm690, %v3200
      %3233 = vst.msk [vmem:[%s763 + $0x58] sm:$0xff] %vm690, %v3201
      %3234 = vst.msk [vmem:[%s763 + $0x60] sm:$0xff] %vm690, %v3202
      %3235 = vst.msk [vmem:[%s763 + $0x68] sm:$0xff] %vm690, %v3203
      %3236 = vst.msk [vmem:[%s763 + $0x70] sm:$0xff] %vm690, %v3204
      %3237 = vst.msk [vmem:[%s763 + $0x78] sm:$0xff] %vm690, %v3205
      %3238 = vst.msk [vmem:[%s763 + $0x80] sm:$0xff] %vm690, %v3206
      %3239 = vst.msk [vmem:[%s763 + $0x88] sm:$0xff] %vm690, %v3207
      %3240 = vst.msk [vmem:[%s763 + $0x90] sm:$0xff] %vm690, %v3208
      %3241 = vst.msk [vmem:[%s763 + $0x98] sm:$0xff] %vm690, %v3209
      %3242 = vst.msk [vmem:[%s763 + $0xa0] sm:$0xff] %vm690, %v3210
      %3243 = vst.msk [vmem:[%s763 + $0xa8] sm:$0xff] %vm690, %v3211
      %3244 = vst.msk [vmem:[%s763 + $0xb0] sm:$0xff] %vm690, %v3212
      %3245 = vst.msk [vmem:[%s763 + $0xb8] sm:$0xff] %vm690, %v3213
      %3246 = vst.msk [vmem:[%s763 + $0xc0] sm:$0xff] %vm690, %v3214
      %3247 = vst.msk [vmem:[%s763 + $0xc8] sm:$0xff] %vm690, %v3215
      %3248 = vst.msk [vmem:[%s763 + $0xd0] sm:$0xff] %vm690, %v3216
      %3249 = vst.msk [vmem:[%s763 + $0xd8] sm:$0xff] %vm690, %v3217
      %3250 = vst.msk [vmem:[%s763 + $0xe0] sm:$0xff] %vm690, %v3218
      %3251 = vst.msk [vmem:[%s763 + $0xe8] sm:$0xff] %vm690, %v3219
      %3252 = vst.msk [vmem:[%s763 + $0xf0] sm:$0xff] %vm690, %v3220
      %3253 = vst.msk [vmem:[%s763 + $0xf8] sm:$0xff] %vm690, %v3221
      %v3254 = vld [vmem:[%s798] sm:$0xff]
      %v3255 = vld [vmem:[%s798 + $0x8] sm:$0xff]
      %v3256 = vld [vmem:[%s798 + $0x10] sm:$0xff]
      %v3257 = vld [vmem:[%s798 + $0x18] sm:$0xff]
      %v3258 = vld [vmem:[%s798 + $0x20] sm:$0xff]
      %v3259 = vld [vmem:[%s798 + $0x28] sm:$0xff]
      %v3260 = vld [vmem:[%s798 + $0x30] sm:$0xff]
      %v3261 = vld [vmem:[%s798 + $0x38] sm:$0xff]
      %v3262 = vpack.c.bf16 %v3255, %v3254
      %v3263 = vpack.c.bf16 %v3257, %v3256
      %v3264 = vpack.c.bf16 %v3259, %v3258
      %v3265 = vpack.c.bf16 %v3261, %v3260
      %3270 = vrot.lane.b32.xlu0 %v1638, 2
      %v3271 = vpop.permute.xlu0 %3270
      %3272 = vrot.lane.b32.xlu0 %v1639, 2
      %v3273 = vpop.permute.xlu0 %3272
      %3274 = vrot.lane.b32.xlu0 %v1640, 2
      %v3275 = vpop.permute.xlu0 %3274
      %3276 = vrot.lane.b32.xlu0 %v1641, 2
      %v3277 = vpop.permute.xlu0 %3276
      %3282 = vrot.lane.b32.xlu0 %v2450, 4
      %v3283 = vpop.permute.xlu0 %3282
      %3284 = vrot.lane.b32.xlu0 %v2451, 4
      %v3285 = vpop.permute.xlu0 %3284
      %3286 = vrot.lane.b32.xlu0 %v2452, 4
      %v3287 = vpop.permute.xlu0 %3286
      %3288 = vrot.lane.b32.xlu0 %v2453, 4
      %v3289 = vpop.permute.xlu0 %3288
      %3294 = vrot.lane.b32.xlu0 %v3262, 6
      %v3295 = vpop.permute.xlu0 %3294
      %3296 = vrot.lane.b32.xlu0 %v3263, 6
      %v3297 = vpop.permute.xlu0 %3296
      %3298 = vrot.lane.b32.xlu0 %v3264, 6
      %v3299 = vpop.permute.xlu0 %3298
      %3300 = vrot.lane.b32.xlu0 %v3265, 6
      %v3301 = vpop.permute.xlu0 %3300
      %v3304 = vsel %vm690, %v807, %v3271
      %v3307 = vsel %vm690, %v808, %v3273
      %v3310 = vsel %vm690, %v809, %v3275
      %v3313 = vsel %vm690, %v810, %v3277
      %v3315 = vsel %vm316, %v3304, %v3283
      %v3317 = vsel %vm316, %v3307, %v3285
      %v3319 = vsel %vm316, %v3310, %v3287
      %v3321 = vsel %vm316, %v3313, %v3289
      %vm3322 = vcmask 48128
      %v3324 = vsel %vm3322, %v3315, %v3295
      %v3326 = vsel %vm3322, %v3317, %v3297
      %v3328 = vsel %vm3322, %v3319, %v3299
      %v3330 = vsel %vm3322, %v3321, %v3301
      %v3331 = vld [vmem:[%s3] sm:$0xf]
      %v3332 = vld [vmem:[%s4] sm:$0x1]
      %v3334 = vlaneseq
      %v3335 = vshrl.u32 %v3334, 7
      %v3336 = vsub.s32 0, %v3335
      %v3337 = vrot.slane %v3332, %v3336
      %vm3339 = vcmask 64512
      %v3340 = vsel %vm3339, %v3324, 0
      %v3342 = vsel %vm3339, %v3326, 0
      %v3344 = vsel %vm3339, %v3328, 0
      %v3346 = vsel %vm3339, %v3330, 0
      %vm3348 = vcmask 1043456
      %v3350 = vsel %vm3348, %v3331, 0
      %3352 = vmatprep.subr.bf16.mxu0 0
      %3353 = vmatpush1.bf16.msra.mxu0 %v3350
      %3354 = vmatprep.subr.bf16.mxu0 0
      %3355 = vmatpush1.bf16.msra.mxu0 0
      %3356 = vmatprep.subr.bf16.mxu0 0
      %3357 = vmatpush1.bf16.msra.mxu0 0
      %3358 = vmatprep.subr.bf16.mxu0 0
      %3359 = vmatpush1.bf16.msra.mxu0 0
      %3360 = vmatprep.subr.bf16.mxu0 0
      %3361 = vmatpush1.bf16.msra.mxu0 0
      %3362 = vmatprep.subr.bf16.mxu0 0
      %3363 = vmatpush1.bf16.msra.mxu0 0
      %3364 = vmatprep.subr.bf16.mxu0 0
      %3365 = vmatpush1.bf16.msra.mxu0 0
      %3366 = vmatprep.subr.bf16.mxu0 0
      %3367 = vmatpush1.bf16.msra.mxu0 0
      %3368 = vmatprep.subr.bf16.mxu0 0
      %3369 = vmatpush1.bf16.msra.mxu0 0
      %3370 = vmatprep.subr.bf16.mxu0 0
      %3371 = vmatpush1.bf16.msra.mxu0 0
      %3372 = vmatprep.subr.bf16.mxu0 0
      %3373 = vmatpush1.bf16.msra.mxu0 0
      %3374 = vmatprep.subr.bf16.mxu0 0
      %3375 = vmatpush1.bf16.msra.mxu0 0
      %3376 = vmatprep.subr.bf16.mxu0 0
      %3377 = vmatpush1.bf16.msra.mxu0 0
      %3378 = vmatprep.subr.bf16.mxu0 0
      %3379 = vmatpush1.bf16.msra.mxu0 0
      %3380 = vmatprep.subr.bf16.mxu0 0
      %3381 = vmatpush1.bf16.msra.mxu0 0
      %3382 = vmatprep.subr.bf16.mxu0 0
      %3383 = vmatpush1.bf16.msra.mxu0 0
      %3384 = vmatprep.mubr.bf16.mxu0 0
      %3385 = vmatmul.mubr.bf16.gmra.mrb[0].mxu0 %v3340
      %v3386 = vpop.f32.mrb[0].mxu0
      %v3387 = vadd.f32 %v3337, %v3386
      %v3388 = vpop.f32.mrb[0].mxu0
      %v3389 = vpop.f32.mrb[0].mxu0
      %v3390 = vadd.f32 %v3337, %v3389
      %v3391 = vpop.f32.mrb[0].mxu0
      %3392 = vmatprep.mubr.bf16.mxu0 0
      %3393 = vmatmul.mubr.bf16.gmra.mrb[0].mxu0 %v3342
      %v3394 = vpop.f32.mrb[0].mxu0
      %v3395 = vadd.f32 %v3337, %v3394
      %v3396 = vpop.f32.mrb[0].mxu0
      %v3397 = vpop.f32.mrb[0].mxu0
      %v3398 = vadd.f32 %v3337, %v3397
      %v3399 = vpop.f32.mrb[0].mxu0
      %3400 = vmatprep.mubr.bf16.mxu0 0
      %3401 = vmatmul.mubr.bf16.gmra.mrb[0].mxu0 %v3344
      %v3402 = vpop.f32.mrb[0].mxu0
      %v3403 = vadd.f32 %v3337, %v3402
      %v3404 = vpop.f32.mrb[0].mxu0
      %v3405 = vpop.f32.mrb[0].mxu0
      %v3406 = vadd.f32 %v3337, %v3405
      %v3407 = vpop.f32.mrb[0].mxu0
      %3408 = vmatprep.mubr.bf16.mxu0 0
      %3409 = vmatmul.mubr.bf16.gmra.mrb[0].mxu0 %v3346
      %v3410 = vpop.f32.mrb[0].mxu0
      %v3411 = vadd.f32 %v3337, %v3410
      %v3412 = vpop.f32.mrb[0].mxu0
      %v3413 = vpop.f32.mrb[0].mxu0
      %v3414 = vadd.f32 %v3337, %v3413
      %v3415 = vpop.f32.mrb[0].mxu0
      %3416 = vdwg.mxu0
      %v3417 = vadd.f32 %v3387, 3.0
      %v3418 = vadd.f32 %v3390, 3.0
      %v3419 = vadd.f32 %v3395, 3.0
      %v3420 = vadd.f32 %v3398, 3.0
      %v3421 = vadd.f32 %v3403, 3.0
      %v3422 = vadd.f32 %v3406, 3.0
      %v3423 = vadd.f32 %v3411, 3.0
      %v3424 = vadd.f32 %v3414, 3.0
      %v3425 = vmax.f32 %v3417, 0.0
      %v3426 = vmax.f32 %v3418, 0.0
      %v3427 = vmax.f32 %v3419, 0.0
      %v3428 = vmax.f32 %v3420, 0.0
      %v3429 = vmax.f32 %v3421, 0.0
      %v3430 = vmax.f32 %v3422, 0.0
      %v3431 = vmax.f32 %v3423, 0.0
      %v3432 = vmax.f32 %v3424, 0.0
      %v3433 = vmin.f32 %v3425, 6.0
      %v3434 = vmin.f32 %v3426, 6.0
      %v3435 = vmin.f32 %v3427, 6.0
      %v3436 = vmin.f32 %v3428, 6.0
      %v3437 = vmin.f32 %v3429, 6.0
      %v3438 = vmin.f32 %v3430, 6.0
      %v3439 = vmin.f32 %v3431, 6.0
      %v3440 = vmin.f32 %v3432, 6.0
      %v3441 = vmul.f32 %v3387, %v3433
      %v3442 = vmul.f32 %v3390, %v3434
      %v3443 = vmul.f32 %v3395, %v3435
      %v3444 = vmul.f32 %v3398, %v3436
      %v3445 = vmul.f32 %v3403, %v3437
      %v3446 = vmul.f32 %v3406, %v3438
      %v3447 = vmul.f32 %v3411, %v3439
      %v3448 = vmul.f32 %v3414, %v3440
      %v3449 = vmul.f32 %v3441, 0.16666667
      %v3450 = vmul.f32 %v3442, 0.16666667
      %v3451 = vmul.f32 %v3443, 0.16666667
      %v3452 = vmul.f32 %v3444, 0.16666667
      %v3453 = vmul.f32 %v3445, 0.16666667
      %v3454 = vmul.f32 %v3446, 0.16666667
      %v3455 = vmul.f32 %v3447, 0.16666667
      %v3456 = vmul.f32 %v3448, 0.16666667
      %3457 = vst.msk [vmem:[%s248] sm:$0xff] %vm316, %v3449
      %3458 = vst.msk [vmem:[%s248 + $0x8] sm:$0xff] %vm316, %v3450
      %3459 = vst.msk [vmem:[%s248 + $0x10] sm:$0xff] %vm316, %v3451
      %3460 = vst.msk [vmem:[%s248 + $0x18] sm:$0xff] %vm316, %v3452
      %3461 = vst.msk [vmem:[%s248 + $0x20] sm:$0xff] %vm316, %v3453
      %3462 = vst.msk [vmem:[%s248 + $0x28] sm:$0xff] %vm316, %v3454
      %3463 = vst.msk [vmem:[%s248 + $0x30] sm:$0xff] %vm316, %v3455
      %3464 = vst.msk [vmem:[%s248 + $0x38] sm:$0xff] %vm316, %v3456
      %s3465 = smul.u32 4, %s21
      %p3466 = scmp.lt.s32.totalorder %s20, 1
      %s3467 = scalar_select %p3466, %s20, 1
      %p3468 = scmp.lt.s32.totalorder %s3465, 15
      %s3469 = scalar_select %p3468, %s3465, 15
      %s3470 = smul.addr %s3469, 2
      %s3471 = smul.addr %s3467, 32
      %s3472 = sadd.s32 %s3470, %s3471
      %s3473 = smul.addr %s3472, 8
      %s3474 = scalar_lea.vmem %s5, %s3473
      // Predicated region
      $region41: #{spp_forward_nhwc.1} parent=39 // pred_check
        %p3475 = pneg %p158
      $region42: #{spp_forward_nhwc.1} parent=39 // pred_check_branch
        %3477 = sbr.rel (%p3475) target = $region44
      $region43: #{spp_forward_nhwc.1} parent=39 // pred_region
        %s3478 = smul.u32 4, %s21
      $region44: #{spp_forward_nhwc.1} parent=39 // pred_fallthru
        _
    $region40: #{spp_forward_nhwc.1} parent=5 // pred_fallthru
      _
    %p3479 = scmp.le.s32.totalorder 2, %s11
    // Predicated region
    $region45: #{spp_forward_nhwc.1} parent=5 // pred_check
      %p3480 = pneg %p3479
    $region46: #{spp_forward_nhwc.1} parent=5 // pred_check_branch
      %3482 = sbr.rel (%p3480) target = $region48
    $region47: #{spp_forward_nhwc.1} parent=5 // pred_region
      %s3483 = ssub.s32 %s11, 2
      // Predicated region
      $region49: #{spp_forward_nhwc.1} parent=47 // pred_check
        %p3484 = pneg %p164
      $region50: #{spp_forward_nhwc.1} parent=47 // pred_check_branch
        %3486 = sbr.rel (%p3484) target = $region52
      $region51: #{spp_forward_nhwc.1} parent=47 // pred_region
        %s3487 = smul.u32 4, %s23
        %p3488 = scmp.lt.s32.totalorder %s22, 1
        %s3489 = scalar_select %p3488, %s22, 1
        %p3490 = scmp.lt.s32.totalorder %s3487, 15
        %s3491 = scalar_select %p3490, %s3487, 15
        %s3492 = smul.addr %s3491, 2
        %s3493 = smul.addr %s3489, 32
        %s3494 = sadd.s32 %s3492, %s3493
        %s3495 = smul.addr %s3494, 8
        %s3496 = scalar_lea.vmem %s5, %s3495
      $region52: #{spp_forward_nhwc.1} parent=47 // pred_fallthru
        _
    $region48: #{spp_forward_nhwc.1} parent=5 // pred_fallthru
      _
  $region6: #{spp_forward_nhwc.1} parent=0 // loop_footer
    %s15 = sadd.s32 1, %s11
  $region7: #{spp_forward_nhwc.1} parent=0 // loop_footer_branch
    %10 = sbr.rel target = $region3
  $region8: #{spp_forward_nhwc.1} parent=0 // loop_exit
    _

</llo_original>
